<compile_context>
chip_gen: v6e
topology: v6e:2x2x1
jax: 0.10.0
libtpu: 0.0.40
codegen_flags: <defaults>
</compile_context>

<pallas_src>
import functools

import jax
import jax.numpy as jnp
from jax.experimental import pallas as pl
from jax.experimental.pallas import tpu as pltpu

H = W = 28
HW = H * W                    # 784
C1, C2, OUT = 3, 5, 10
OUT_PAD = 128                 # lane-dense output; sliced back to 10 in the wrapper


def simple_model_kernel(x_ref, w1_ref, b1_ref, w2_ref, b2_ref, wl_ref, o_ref, *, cdt):
    """One batch tile per grid step.

    x_ref  : (TN, 784)      VMEM  f32   batch rows on sublanes, pixels on lanes
    w1_ref : (3,)           SMEM  f32   conv1 weight (Cin=1 -> per-channel scalars)
    b1_ref : (3,)           SMEM  f32   conv1 bias
    w2_ref : (5, 3)         SMEM  f32   conv2 weight
    b2_ref : (5,)           SMEM  f32   conv2 bias
    wl_ref : (5, 784, 128)  VMEM  bf16  linear weight, channel-major, lane-padded 10->128
    o_ref  : (TN, 128)      VMEM  f32   output tile (only first 10 lanes meaningful)
    cdt    : compute dtype for the VPU conv chain (bf16 on v6e/v7x, f32 on older chips)
    """
    x = x_ref[...].astype(cdt)                                        # (TN, 784)

    # conv1 (1x1, Cin=1) + ReLU: pure VPU, fully packed vregs.
    h1 = [jnp.maximum(w1_ref[c].astype(cdt) * x + b1_ref[c].astype(cdt), 0.0)
          for c in range(C1)]

    # Fused conv2 channel -> MXU matmul over PyTorch's channel-major flatten:
    #   out[n, o] = sum_k sum_p h2[k][n, p] * wl[k, p, o]
    # Each k: a handful of VPU scalar*tile MACs followed by a bf16 MXU matmul with
    # M=TN, K=784, N=128 (lane-dense RHS and accumulator), accumulated in f32.
    out = jnp.zeros(o_ref.shape, jnp.float32)
    for k in range(C2):
        acc = w2_ref[k, 0].astype(cdt) * h1[0]
        for c in range(1, C1):
            acc = acc + w2_ref[k, c].astype(cdt) * h1[c]
        h2_k = jnp.maximum(acc + b2_ref[k].astype(cdt), 0.0)          # (TN, 784)
        out = out + jnp.dot(h2_k.astype(jnp.bfloat16), wl_ref[k],
                            preferred_element_type=jnp.float32)

    o_ref[...] = jnp.maximum(out, 0.0)                                # final ReLU


def prepare_params(w1, b1, w2, b2, wl):
    """Hoisted, call-invariant parameter repack (do this once, not per forward)."""
    w1v = w1.reshape(C1).astype(jnp.float32)              # (3,)
    b1v = b1.reshape(C1).astype(jnp.float32)               # (3,)
    w2v = w2.reshape(C2, C1).astype(jnp.float32)            # (5, 3)
    b2v = b2.reshape(C2).astype(jnp.float32)                 # (5,)
    # (10, 5*784) -> (5, 784, 10) (matches Flatten(start_dim=1) channel-major order),
    # lane-pad 10 -> 128 so the MXU RHS and output stores are lane-dense, store bf16.
    wl_r = wl.reshape(OUT, C2, HW).transpose(1, 2, 0)
    wl_p = jnp.pad(wl_r, ((0, 0), (0, 0), (0, OUT_PAD - OUT))).astype(jnp.bfloat16)
    return w1v, b1v, w2v, b2v, wl_p


def _round_up(a, m):
    return ((a + m - 1) // m) * m


def simple_model_forward(x_nchw, params, *, tile_n=512, conv_dtype=None):
    w1v, b1v, w2v, b2v, wl_p = params
    N, Cin, Hh, Ww = x_nchw.shape
    assert (Cin, Hh, Ww) == (1, H, W)

    if conv_dtype is None:
        # bf16 VALU exists on v6e/v7x; keep the VPU conv chain in f32 on older chips.
        kind = jax.devices()[0].device_kind.lower()
        old_gen = any(tag in kind for tag in ("v2", "v3", "v4", "v5"))
        conv_dtype = jnp.float32 if old_gen else jnp.bfloat16

    # Batch tile: multiple of 8 sublanes; aim for >=2 grid steps so the "parallel"
    # axis can shard across both TensorCores on v7x. (On v6e with very large batches,
    # tile_n=1024 is also safe within its 128 MiB VMEM.)
    TN = int(min(tile_n, max(8, _round_up(pl.cdiv(N, 2), 8))))
    nb = pl.cdiv(N, TN)

    # No wrapper-side batch padding: Pallas masks the partial boundary block. OOB rows
    # of the last input block are unspecified but stay row-local (elementwise convs,
    # row-wise matmul) and their output rows are never written back.
    x = x_nchw.reshape(N, HW).astype(jnp.float32)            # (N, 784); Cin == 1

    kernel = functools.partial(simple_model_kernel, cdt=conv_dtype)

    out = pl.pallas_call(
        kernel,
        out_shape=jax.ShapeDtypeStruct((N, OUT_PAD), jnp.float32),
        grid=(nb,),
        in_specs=[
            pl.BlockSpec((TN, HW), lambda i: (i, 0)),                  # x tile
            pl.BlockSpec(memory_space=pltpu.MemorySpace.SMEM),         # w1
            pl.BlockSpec(memory_space=pltpu.MemorySpace.SMEM),         # b1
            pl.BlockSpec(memory_space=pltpu.MemorySpace.SMEM),         # w2
            pl.BlockSpec(memory_space=pltpu.MemorySpace.SMEM),         # b2
            pl.BlockSpec((C2, HW, OUT_PAD), lambda i: (0, 0, 0)),      # linear weight (invariant)
        ],
        out_specs=pl.BlockSpec((TN, OUT_PAD), lambda i: (i, 0)),
        compiler_params=pltpu.CompilerParams(
            dimension_semantics=("parallel",),
        ),
    )(x, w1v, b1v, w2v, b2v, wl_p)

    # Consumers that accept the padded (N, 128) output can skip this narrowing.
    return out[:N, :OUT]


def reference_forward(x_nchw, w1, b1, w2, b2, wl):
    # Pure-JAX replica of the PyTorch forward (NCHW semantics).
    N = x_nchw.shape[0]
    h1 = jnp.einsum('oi,nihw->nohw', w1.reshape(C1, 1), x_nchw,
                    precision=jax.lax.Precision.HIGHEST) + b1.reshape(1, C1, 1, 1)
    h1 = jnp.maximum(h1, 0.0)
    h2 = jnp.einsum('oi,nihw->nohw', w2.reshape(C2, C1), h1,
                    precision=jax.lax.Precision.HIGHEST) + b2.reshape(1, C2, 1, 1)
    h2 = jnp.maximum(h2, 0.0)
    flat = h2.reshape(N, -1)                                  # channel-major flatten
    out = jnp.dot(flat, wl.T, precision=jax.lax.Precision.HIGHEST)
    return jnp.maximum(out, 0.0)


if __name__ == "__main__":
    key = jax.random.PRNGKey(0)
    kx, k1, k2, k3, k4, k5 = jax.random.split(key, 6)

    N = 2
    x = jax.random.normal(kx, (N, 1, H, W), dtype=jnp.float32)

    # PyTorch parameter shapes:
    #   conv1.weight (3,1,1,1), conv1.bias (3,)
    #   conv2.weight (5,3,1,1), conv2.bias (5,)
    #   linear.weight (10, 5*28*28), bias=False
    w1 = 0.5 * jax.random.normal(k1, (C1, 1, 1, 1), dtype=jnp.float32)
    b1 = 0.1 * jax.random.normal(k2, (C1,), dtype=jnp.float32)
    w2 = 0.3 * jax.random.normal(k3, (C2, C1, 1, 1), dtype=jnp.float32)
    b2 = 0.1 * jax.random.normal(k4, (C2,), dtype=jnp.float32)
    wl = 0.05 * jax.random.normal(k5, (OUT, C2 * HW), dtype=jnp.float32)

    params = prepare_params(w1, b1, w2, b2, wl)

    out = simple_model_forward(x, params)
    out = jax.block_until_ready(out)
    ref = reference_forward(x, w1, b1, w2, b2, wl)
    assert out.shape == (N, OUT)
    # Tolerance covers the bf16 MXU / bf16-VPU path vs. the f32 HIGHEST reference.
    assert jnp.allclose(out, ref, rtol=2e-2, atol=2e-2), (out, ref)

    # Exercise the multi-tile grid + unpadded ragged-batch-tail path at a small size.
    N2 = 13
    x2 = jax.random.normal(kx, (N2, 1, H, W), dtype=jnp.float32)
    out2 = jax.block_until_ready(simple_model_forward(x2, params, tile_n=8))
    ref2 = reference_forward(x2, w1, b1, w2, b2, wl)
    assert out2.shape == (N2, OUT)
    assert jnp.allclose(out2, ref2, rtol=2e-2, atol=2e-2), (out2, ref2)

    print("KERNEL_OK")
</pallas_src>

<mosaic_0001>
module attributes {stable_mosaic.version = 11 : i64} {
  func.func @simple_model_kernel(%arg0: i32, %arg1: memref<8x784xf32, #tpu.memory_space<vmem>>, %arg2: memref<3xf32, #tpu.memory_space<smem>>, %arg3: memref<3xf32, #tpu.memory_space<smem>>, %arg4: memref<5x3xf32, #tpu.memory_space<smem>>, %arg5: memref<5xf32, #tpu.memory_space<smem>>, %arg6: memref<5x784x128xbf16, #tpu.memory_space<vmem>>, %arg7: memref<8x128xf32, #tpu.memory_space<vmem>>) attributes {dimension_semantics = [#tpu.dimension_semantics<parallel>], iteration_bounds = array<i64: 1>, scalar_prefetch = 0 : i64, scratch_operands = 0 : i64, tpu.core_type = #tpu.core_type<tc>, window_params = [{transform_indices = @transform_0, window_bounds = array<i64: 8, 784>}, {transform_indices = @transform_1, window_bounds = array<i64: 3>}, {transform_indices = @transform_2, window_bounds = array<i64: 3>}, {transform_indices = @transform_3, window_bounds = array<i64: 5, 3>}, {transform_indices = @transform_4, window_bounds = array<i64: 5>}, {pipeline_mode = #tpu.pipeline_mode<synchronous>, transform_indices = @transform_5, window_bounds = array<i64: 5, 784, 128>}, {transform_indices = @transform_6, window_bounds = array<i64: 8, 128>}]} {
    %c0 = arith.constant 0 : index
    %c0_0 = arith.constant 0 : index
    %0 = vector.load %arg1[%c0, %c0_0] : memref<8x784xf32, #tpu.memory_space<vmem>>, vector<8x784xf32>
    %1 = arith.truncf %0 : vector<8x784xf32> to vector<8x784xbf16>
    %c0_1 = arith.constant 0 : index
    %2 = memref.load %arg2[%c0_1] : memref<3xf32, #tpu.memory_space<smem>>
    %3 = arith.truncf %2 : f32 to bf16
    %4 = vector.broadcast %3 : bf16 to vector<8x784xbf16>
    %5 = arith.mulf %4, %1 : vector<8x784xbf16>
    %c0_2 = arith.constant 0 : index
    %6 = memref.load %arg3[%c0_2] : memref<3xf32, #tpu.memory_space<smem>>
    %7 = arith.truncf %6 : f32 to bf16
    %8 = vector.broadcast %7 : bf16 to vector<8x784xbf16>
    %9 = arith.addf %5, %8 : vector<8x784xbf16>
    %cst = arith.constant 0.000000e+00 : bf16
    %10 = vector.broadcast %cst : bf16 to vector<8x784xbf16>
    %11 = arith.maximumf %9, %10 : vector<8x784xbf16>
    %c1 = arith.constant 1 : index
    %12 = memref.load %arg2[%c1] : memref<3xf32, #tpu.memory_space<smem>>
    %13 = arith.truncf %12 : f32 to bf16
    %14 = vector.broadcast %13 : bf16 to vector<8x784xbf16>
    %15 = arith.mulf %14, %1 : vector<8x784xbf16>
    %c1_3 = arith.constant 1 : index
    %16 = memref.load %arg3[%c1_3] : memref<3xf32, #tpu.memory_space<smem>>
    %17 = arith.truncf %16 : f32 to bf16
    %18 = vector.broadcast %17 : bf16 to vector<8x784xbf16>
    %19 = arith.addf %15, %18 : vector<8x784xbf16>
    %cst_4 = arith.constant 0.000000e+00 : bf16
    %20 = vector.broadcast %cst_4 : bf16 to vector<8x784xbf16>
    %21 = arith.maximumf %19, %20 : vector<8x784xbf16>
    %c2 = arith.constant 2 : index
    %22 = memref.load %arg2[%c2] : memref<3xf32, #tpu.memory_space<smem>>
    %23 = arith.truncf %22 : f32 to bf16
    %24 = vector.broadcast %23 : bf16 to vector<8x784xbf16>
    %25 = arith.mulf %24, %1 : vector<8x784xbf16>
    %c2_5 = arith.constant 2 : index
    %26 = memref.load %arg3[%c2_5] : memref<3xf32, #tpu.memory_space<smem>>
    %27 = arith.truncf %26 : f32 to bf16
    %28 = vector.broadcast %27 : bf16 to vector<8x784xbf16>
    %29 = arith.addf %25, %28 : vector<8x784xbf16>
    %cst_6 = arith.constant 0.000000e+00 : bf16
    %30 = vector.broadcast %cst_6 : bf16 to vector<8x784xbf16>
    %31 = arith.maximumf %29, %30 : vector<8x784xbf16>
    %cst_7 = arith.constant 0.000000e+00 : f32
    %32 = vector.broadcast %cst_7 : f32 to vector<8x128xf32>
    %c0_8 = arith.constant 0 : index
    %c0_9 = arith.constant 0 : index
    %33 = memref.load %arg4[%c0_8, %c0_9] : memref<5x3xf32, #tpu.memory_space<smem>>
    %34 = arith.truncf %33 : f32 to bf16
    %35 = vector.broadcast %34 : bf16 to vector<8x784xbf16>
    %36 = arith.mulf %35, %11 : vector<8x784xbf16>
    %c0_10 = arith.constant 0 : index
    %c1_11 = arith.constant 1 : index
    %37 = memref.load %arg4[%c0_10, %c1_11] : memref<5x3xf32, #tpu.memory_space<smem>>
    %38 = arith.truncf %37 : f32 to bf16
    %39 = vector.broadcast %38 : bf16 to vector<8x784xbf16>
    %40 = arith.mulf %39, %21 : vector<8x784xbf16>
    %41 = arith.addf %36, %40 : vector<8x784xbf16>
    %c0_12 = arith.constant 0 : index
    %c2_13 = arith.constant 2 : index
    %42 = memref.load %arg4[%c0_12, %c2_13] : memref<5x3xf32, #tpu.memory_space<smem>>
    %43 = arith.truncf %42 : f32 to bf16
    %44 = vector.broadcast %43 : bf16 to vector<8x784xbf16>
    %45 = arith.mulf %44, %31 : vector<8x784xbf16>
    %46 = arith.addf %41, %45 : vector<8x784xbf16>
    %c0_14 = arith.constant 0 : index
    %47 = memref.load %arg5[%c0_14] : memref<5xf32, #tpu.memory_space<smem>>
    %48 = arith.truncf %47 : f32 to bf16
    %49 = vector.broadcast %48 : bf16 to vector<8x784xbf16>
    %50 = arith.addf %46, %49 : vector<8x784xbf16>
    %cst_15 = arith.constant 0.000000e+00 : bf16
    %51 = vector.broadcast %cst_15 : bf16 to vector<8x784xbf16>
    %52 = arith.maximumf %50, %51 : vector<8x784xbf16>
    %c0_16 = arith.constant 0 : index
    %c0_17 = arith.constant 0 : index
    %c0_18 = arith.constant 0 : index
    %53 = vector.load %arg6[%c0_16, %c0_17, %c0_18] : memref<5x784x128xbf16, #tpu.memory_space<vmem>>, vector<1x784x128xbf16>
    %54 = vector.shape_cast %53 : vector<1x784x128xbf16> to vector<784x128xbf16>
    %cst_19 = arith.constant dense<0.000000e+00> : vector<8x128xf32>
    %55 = tpu.matmul %52, %54, %cst_19 {dimension_numbers = #tpu.dot_dimension_numbers<[1], [0], [0], [1], [0, 0, 1, 1], [], []>} : vector<8x784xbf16>, vector<784x128xbf16>, vector<8x128xf32> -> vector<8x128xf32>
    %56 = arith.addf %32, %55 : vector<8x128xf32>
    %c1_20 = arith.constant 1 : index
    %c0_21 = arith.constant 0 : index
    %57 = memref.load %arg4[%c1_20, %c0_21] : memref<5x3xf32, #tpu.memory_space<smem>>
    %58 = arith.truncf %57 : f32 to bf16
    %59 = vector.broadcast %58 : bf16 to vector<8x784xbf16>
    %60 = arith.mulf %59, %11 : vector<8x784xbf16>
    %c1_22 = arith.constant 1 : index
    %c1_23 = arith.constant 1 : index
    %61 = memref.load %arg4[%c1_22, %c1_23] : memref<5x3xf32, #tpu.memory_space<smem>>
    %62 = arith.truncf %61 : f32 to bf16
    %63 = vector.broadcast %62 : bf16 to vector<8x784xbf16>
    %64 = arith.mulf %63, %21 : vector<8x784xbf16>
    %65 = arith.addf %60, %64 : vector<8x784xbf16>
    %c1_24 = arith.constant 1 : index
    %c2_25 = arith.constant 2 : index
    %66 = memref.load %arg4[%c1_24, %c2_25] : memref<5x3xf32, #tpu.memory_space<smem>>
    %67 = arith.truncf %66 : f32 to bf16
    %68 = vector.broadcast %67 : bf16 to vector<8x784xbf16>
    %69 = arith.mulf %68, %31 : vector<8x784xbf16>
    %70 = arith.addf %65, %69 : vector<8x784xbf16>
    %c1_26 = arith.constant 1 : index
    %71 = memref.load %arg5[%c1_26] : memref<5xf32, #tpu.memory_space<smem>>
    %72 = arith.truncf %71 : f32 to bf16
    %73 = vector.broadcast %72 : bf16 to vector<8x784xbf16>
    %74 = arith.addf %70, %73 : vector<8x784xbf16>
    %cst_27 = arith.constant 0.000000e+00 : bf16
    %75 = vector.broadcast %cst_27 : bf16 to vector<8x784xbf16>
    %76 = arith.maximumf %74, %75 : vector<8x784xbf16>
    %c1_28 = arith.constant 1 : index
    %c0_29 = arith.constant 0 : index
    %c0_30 = arith.constant 0 : index
    %77 = vector.load %arg6[%c1_28, %c0_29, %c0_30] : memref<5x784x128xbf16, #tpu.memory_space<vmem>>, vector<1x784x128xbf16>
    %78 = vector.shape_cast %77 : vector<1x784x128xbf16> to vector<784x128xbf16>
    %cst_31 = arith.constant dense<0.000000e+00> : vector<8x128xf32>
    %79 = tpu.matmul %76, %78, %cst_31 {dimension_numbers = #tpu.dot_dimension_numbers<[1], [0], [0], [1], [0, 0, 1, 1], [], []>} : vector<8x784xbf16>, vector<784x128xbf16>, vector<8x128xf32> -> vector<8x128xf32>
    %80 = arith.addf %56, %79 : vector<8x128xf32>
    %c2_32 = arith.constant 2 : index
    %c0_33 = arith.constant 0 : index
    %81 = memref.load %arg4[%c2_32, %c0_33] : memref<5x3xf32, #tpu.memory_space<smem>>
    %82 = arith.truncf %81 : f32 to bf16
    %83 = vector.broadcast %82 : bf16 to vector<8x784xbf16>
    %84 = arith.mulf %83, %11 : vector<8x784xbf16>
    %c2_34 = arith.constant 2 : index
    %c1_35 = arith.constant 1 : index
    %85 = memref.load %arg4[%c2_34, %c1_35] : memref<5x3xf32, #tpu.memory_space<smem>>
    %86 = arith.truncf %85 : f32 to bf16
    %87 = vector.broadcast %86 : bf16 to vector<8x784xbf16>
    %88 = arith.mulf %87, %21 : vector<8x784xbf16>
    %89 = arith.addf %84, %88 : vector<8x784xbf16>
    %c2_36 = arith.constant 2 : index
    %c2_37 = arith.constant 2 : index
    %90 = memref.load %arg4[%c2_36, %c2_37] : memref<5x3xf32, #tpu.memory_space<smem>>
    %91 = arith.truncf %90 : f32 to bf16
    %92 = vector.broadcast %91 : bf16 to vector<8x784xbf16>
    %93 = arith.mulf %92, %31 : vector<8x784xbf16>
    %94 = arith.addf %89, %93 : vector<8x784xbf16>
    %c2_38 = arith.constant 2 : index
    %95 = memref.load %arg5[%c2_38] : memref<5xf32, #tpu.memory_space<smem>>
    %96 = arith.truncf %95 : f32 to bf16
    %97 = vector.broadcast %96 : bf16 to vector<8x784xbf16>
    %98 = arith.addf %94, %97 : vector<8x784xbf16>
    %cst_39 = arith.constant 0.000000e+00 : bf16
    %99 = vector.broadcast %cst_39 : bf16 to vector<8x784xbf16>
    %100 = arith.maximumf %98, %99 : vector<8x784xbf16>
    %c2_40 = arith.constant 2 : index
    %c0_41 = arith.constant 0 : index
    %c0_42 = arith.constant 0 : index
    %101 = vector.load %arg6[%c2_40, %c0_41, %c0_42] : memref<5x784x128xbf16, #tpu.memory_space<vmem>>, vector<1x784x128xbf16>
    %102 = vector.shape_cast %101 : vector<1x784x128xbf16> to vector<784x128xbf16>
    %cst_43 = arith.constant dense<0.000000e+00> : vector<8x128xf32>
    %103 = tpu.matmul %100, %102, %cst_43 {dimension_numbers = #tpu.dot_dimension_numbers<[1], [0], [0], [1], [0, 0, 1, 1], [], []>} : vector<8x784xbf16>, vector<784x128xbf16>, vector<8x128xf32> -> vector<8x128xf32>
    %104 = arith.addf %80, %103 : vector<8x128xf32>
    %c3 = arith.constant 3 : index
    %c0_44 = arith.constant 0 : index
    %105 = memref.load %arg4[%c3, %c0_44] : memref<5x3xf32, #tpu.memory_space<smem>>
    %106 = arith.truncf %105 : f32 to bf16
    %107 = vector.broadcast %106 : bf16 to vector<8x784xbf16>
    %108 = arith.mulf %107, %11 : vector<8x784xbf16>
    %c3_45 = arith.constant 3 : index
    %c1_46 = arith.constant 1 : index
    %109 = memref.load %arg4[%c3_45, %c1_46] : memref<5x3xf32, #tpu.memory_space<smem>>
    %110 = arith.truncf %109 : f32 to bf16
    %111 = vector.broadcast %110 : bf16 to vector<8x784xbf16>
    %112 = arith.mulf %111, %21 : vector<8x784xbf16>
    %113 = arith.addf %108, %112 : vector<8x784xbf16>
    %c3_47 = arith.constant 3 : index
    %c2_48 = arith.constant 2 : index
    %114 = memref.load %arg4[%c3_47, %c2_48] : memref<5x3xf32, #tpu.memory_space<smem>>
    %115 = arith.truncf %114 : f32 to bf16
    %116 = vector.broadcast %115 : bf16 to vector<8x784xbf16>
    %117 = arith.mulf %116, %31 : vector<8x784xbf16>
    %118 = arith.addf %113, %117 : vector<8x784xbf16>
    %c3_49 = arith.constant 3 : index
    %119 = memref.load %arg5[%c3_49] : memref<5xf32, #tpu.memory_space<smem>>
    %120 = arith.truncf %119 : f32 to bf16
    %121 = vector.broadcast %120 : bf16 to vector<8x784xbf16>
    %122 = arith.addf %118, %121 : vector<8x784xbf16>
    %cst_50 = arith.constant 0.000000e+00 : bf16
    %123 = vector.broadcast %cst_50 : bf16 to vector<8x784xbf16>
    %124 = arith.maximumf %122, %123 : vector<8x784xbf16>
    %c3_51 = arith.constant 3 : index
    %c0_52 = arith.constant 0 : index
    %c0_53 = arith.constant 0 : index
    %125 = vector.load %arg6[%c3_51, %c0_52, %c0_53] : memref<5x784x128xbf16, #tpu.memory_space<vmem>>, vector<1x784x128xbf16>
    %126 = vector.shape_cast %125 : vector<1x784x128xbf16> to vector<784x128xbf16>
    %cst_54 = arith.constant dense<0.000000e+00> : vector<8x128xf32>
    %127 = tpu.matmul %124, %126, %cst_54 {dimension_numbers = #tpu.dot_dimension_numbers<[1], [0], [0], [1], [0, 0, 1, 1], [], []>} : vector<8x784xbf16>, vector<784x128xbf16>, vector<8x128xf32> -> vector<8x128xf32>
    %128 = arith.addf %104, %127 : vector<8x128xf32>
    %c4 = arith.constant 4 : index
    %c0_55 = arith.constant 0 : index
    %129 = memref.load %arg4[%c4, %c0_55] : memref<5x3xf32, #tpu.memory_space<smem>>
    %130 = arith.truncf %129 : f32 to bf16
    %131 = vector.broadcast %130 : bf16 to vector<8x784xbf16>
    %132 = arith.mulf %131, %11 : vector<8x784xbf16>
    %c4_56 = arith.constant 4 : index
    %c1_57 = arith.constant 1 : index
    %133 = memref.load %arg4[%c4_56, %c1_57] : memref<5x3xf32, #tpu.memory_space<smem>>
    %134 = arith.truncf %133 : f32 to bf16
    %135 = vector.broadcast %134 : bf16 to vector<8x784xbf16>
    %136 = arith.mulf %135, %21 : vector<8x784xbf16>
    %137 = arith.addf %132, %136 : vector<8x784xbf16>
    %c4_58 = arith.constant 4 : index
    %c2_59 = arith.constant 2 : index
    %138 = memref.load %arg4[%c4_58, %c2_59] : memref<5x3xf32, #tpu.memory_space<smem>>
    %139 = arith.truncf %138 : f32 to bf16
    %140 = vector.broadcast %139 : bf16 to vector<8x784xbf16>
    %141 = arith.mulf %140, %31 : vector<8x784xbf16>
    %142 = arith.addf %137, %141 : vector<8x784xbf16>
    %c4_60 = arith.constant 4 : index
    %143 = memref.load %arg5[%c4_60] : memref<5xf32, #tpu.memory_space<smem>>
    %144 = arith.truncf %143 : f32 to bf16
    %145 = vector.broadcast %144 : bf16 to vector<8x784xbf16>
    %146 = arith.addf %142, %145 : vector<8x784xbf16>
    %cst_61 = arith.constant 0.000000e+00 : bf16
    %147 = vector.broadcast %cst_61 : bf16 to vector<8x784xbf16>
    %148 = arith.maximumf %146, %147 : vector<8x784xbf16>
    %c4_62 = arith.constant 4 : index
    %c0_63 = arith.constant 0 : index
    %c0_64 = arith.constant 0 : index
    %149 = vector.load %arg6[%c4_62, %c0_63, %c0_64] : memref<5x784x128xbf16, #tpu.memory_space<vmem>>, vector<1x784x128xbf16>
    %150 = vector.shape_cast %149 : vector<1x784x128xbf16> to vector<784x128xbf16>
    %cst_65 = arith.constant dense<0.000000e+00> : vector<8x128xf32>
    %151 = tpu.matmul %148, %150, %cst_65 {dimension_numbers = #tpu.dot_dimension_numbers<[1], [0], [0], [1], [0, 0, 1, 1], [], []>} : vector<8x784xbf16>, vector<784x128xbf16>, vector<8x128xf32> -> vector<8x128xf32>
    %152 = arith.addf %128, %151 : vector<8x128xf32>
    %cst_66 = arith.constant 0.000000e+00 : f32
    %153 = vector.broadcast %cst_66 : f32 to vector<8x128xf32>
    %154 = arith.maximumf %152, %153 : vector<8x128xf32>
    %c0_67 = arith.constant 0 : index
    %c0_68 = arith.constant 0 : index
    %155 = vector.load %arg7[%c0_67, %c0_68] : memref<8x128xf32, #tpu.memory_space<vmem>>, vector<8x128xf32>
    tpu.vector_store %arg7[%c0_67, %c0_68], %154 {strides = array<i32>} : memref<8x128xf32, #tpu.memory_space<vmem>>, vector<8x128xf32>,
    return
  }
  func.func @transform_0(%arg0: i32) -> (i32, i32) {
    %c0_i32 = arith.constant 0 : i32
    %c0_i32_0 = arith.constant 0 : i32
    return %arg0, %c0_i32 : i32, i32
  }
  func.func @transform_1(%arg0: i32) -> i32 {
    %c0_i32 = arith.constant 0 : i32
    %c0_i32_0 = arith.constant 0 : i32
    return %c0_i32 : i32
  }
  func.func @transform_2(%arg0: i32) -> i32 {
    %c0_i32 = arith.constant 0 : i32
    %c0_i32_0 = arith.constant 0 : i32
    return %c0_i32 : i32
  }
  func.func @transform_3(%arg0: i32) -> (i32, i32) {
    %c0_i32 = arith.constant 0 : i32
    %c0_i32_0 = arith.constant 0 : i32
    %c0_i32_1 = arith.constant 0 : i32
    return %c0_i32, %c0_i32_0 : i32, i32
  }
  func.func @transform_4(%arg0: i32) -> i32 {
    %c0_i32 = arith.constant 0 : i32
    %c0_i32_0 = arith.constant 0 : i32
    return %c0_i32 : i32
  }
  func.func @transform_5(%arg0: i32) -> (i32, i32, i32) {
    %c0_i32 = arith.constant 0 : i32
    %c0_i32_0 = arith.constant 0 : i32
    %c0_i32_1 = arith.constant 0 : i32
    %c0_i32_2 = arith.constant 0 : i32
    return %c0_i32, %c0_i32_0, %c0_i32_1 : i32, i32, i32
  }
  func.func @transform_6(%arg0: i32) -> (i32, i32) {
    %c0_i32 = arith.constant 0 : i32
    %c0_i32_0 = arith.constant 0 : i32
    return %arg0, %c0_i32 : i32, i32
  }
}

</mosaic_0001>

<llo_original>
// kernel: tpu_custom_call.1
$region0: #{tpu_custom_call.1}
  #allocation0 [shape = 'u32[]', space=smem, size = 0x4, offset = 0x4, fixed_abs, tag = 'smem constant byte address 0x4 - core index']
  #allocation1 [shape = 'u32[144,128]{1,0:T(1,128)}', space=vmem, size = 0x12000, scoped, tag = 'internal scratch']
  %s0 = inlined_call_operand.hbm [shape: f32[2,784], index: 0, kind: input, shape index: {}]
  %s1 = inlined_call_operand.vmem [shape: f32[3], index: 1, kind: input, shape index: {}]
  %s2 = inlined_call_operand.vmem [shape: f32[3], index: 2, kind: input, shape index: {}]
  %s3 = inlined_call_operand.vmem [shape: f32[5,3], index: 3, kind: input, shape index: {}]
  %s4 = inlined_call_operand.vmem [shape: f32[5], index: 4, kind: input, shape index: {}]
  %s5 = inlined_call_operand.hbm [shape: bf16[5,784,128], index: 5, kind: input, shape index: {}]
  %s6 = inlined_call_operand.hbm [shape: f32[2,128], index: 6, kind: output, shape index: {}]
  %s7 = sld [smem:[#allocation0]]
  $region58: #{tpu_custom_call.1} parent=0
    _
  %s9 = ssub.s32 1, %s7
  %s10 = scalar_select 0, %s9, %s7
  $region1: #{tpu_custom_call.1} parent=0
    #allocation2 [shape = 'u8[28672]{0}', space=vmem, size = 0x7000, scoped, tag = 'input window, operand 0, single buffered']
    #allocation3 [shape = 's32[1]{0}', space=sflag, size = 0x4, scoped, tag = 'scoped memory for tpu_custom_call.1']
    #allocation4 [shape = 's32[1]{0}', space=sflag, size = 0x4, scoped, tag = 'scoped memory for tpu_custom_call.1']
    #allocation5 [shape = 's32[1]{0}', space=sflag, size = 0x4, scoped, tag = 'scoped memory for tpu_custom_call.1']
    #allocation6 [shape = 'u8[512]{0}', space=smem, size = 0x200, scoped, tag = 'input window, operand 1, single buffered']
    #allocation7 [shape = 'u8[512]{0}', space=smem, size = 0x200, scoped, tag = 'input window, operand 2, single buffered']
    #allocation8 [shape = 's32[1]{0}', space=sflag, size = 0x4, scoped, tag = 'scoped memory for tpu_custom_call.1']
    #allocation9 [shape = 'u8[4096]{0}', space=smem, size = 0x1000, scoped, tag = 'input window, operand 3, single buffered']
    #allocation10 [shape = 'u8[512]{0}', space=smem, size = 0x200, scoped, tag = 'input window, operand 4, single buffered']
    #allocation11 [shape = 's32[1]{0}', space=sflag, size = 0x4, scoped, tag = 'scoped memory for tpu_custom_call.1']
    #allocation12 [shape = 'u8[1003520]{0}', space=vmem, size = 0xf5000, scoped, tag = 'input window, operand 5, single buffered']
    #allocation13 [shape = 's32[1]{0}', space=sflag, size = 0x4, scoped, tag = 'scoped memory for tpu_custom_call.1']
    #allocation14 [shape = 'u8[4096]{0}', space=vmem, size = 0x1000, scoped, tag = 'output window, operand 0, single buffered']
    %11 = vsyncpa [#allocation3], 0
    %12 = vsyncpa [#allocation5], 0
    %13 = vsyncpa [#allocation8], 0
    %14 = vsyncpa [#allocation11], 0
    %15 = vsyncpa [#allocation13], 0
    %16 = vsyncpa [#allocation4], 0
    // Predicated region
    $region2: #{tpu_custom_call.1} parent=1 // pred_check
      _
    $region3: #{tpu_custom_call.1} parent=1 // pred_check_branch
      %18 = sbr.rel (0) target = $region5
    $region4: #{tpu_custom_call.1} parent=1 // pred_region
      %s20 = ssub.s32 896, 224
      %21 = vsyncadd [#allocation3], %s20
      %s22 = sshll.u32 [#allocation2], 4
      %s23 = int_to_ptr.vmem [resolvable:$true] %s22
      %28 = dma.hbm_to_vmem [thread:$0]  %s0, 224, %s23, [#allocation3], 224, 224, 14
    $region5: #{tpu_custom_call.1} parent=1 // pred_fallthru
      _
    // Predicated region
    $region6: #{tpu_custom_call.1} parent=1 // pred_check
      _
    $region7: #{tpu_custom_call.1} parent=1 // pred_check_branch
      %30 = sbr.rel (0) target = $region9
    $region8: #{tpu_custom_call.1} parent=1 // pred_region
      %s32 = ssub.s32 16, 16
      %33 = vsyncadd [#allocation5], %s32
      %s35 = sshll.u32 %s1, 4
      %s36 = int_to_ptr.vmem [resolvable:$true] %s35
      %38 = dma.vmem_to_smem %s36, 16, [#allocation6], [#allocation5]
    $region9: #{tpu_custom_call.1} parent=1 // pred_fallthru
      _
    // Predicated region
    $region10: #{tpu_custom_call.1} parent=1 // pred_check
      _
    $region11: #{tpu_custom_call.1} parent=1 // pred_check_branch
      %40 = sbr.rel (0) target = $region13
    $region12: #{tpu_custom_call.1} parent=1 // pred_region
      %s42 = ssub.s32 16, 16
      %43 = vsyncadd [#allocation8], %s42
      %s45 = sshll.u32 %s2, 4
      %s46 = int_to_ptr.vmem [resolvable:$true] %s45
      %48 = dma.vmem_to_smem %s46, 16, [#allocation7], [#allocation8]
    $region13: #{tpu_custom_call.1} parent=1 // pred_fallthru
      _
    // Predicated region
    $region14: #{tpu_custom_call.1} parent=1 // pred_check
      _
    $region15: #{tpu_custom_call.1} parent=1 // pred_check_branch
      %50 = sbr.rel (0) target = $region17
    $region16: #{tpu_custom_call.1} parent=1 // pred_region
      %s52 = ssub.s32 128, 128
      %53 = vsyncadd [#allocation8], %s52
      %s55 = sshll.u32 %s3, 4
      %s56 = int_to_ptr.vmem [resolvable:$true] %s55
      %58 = dma.vmem_to_smem %s56, 128, [#allocation9], [#allocation8]
    $region17: #{tpu_custom_call.1} parent=1 // pred_fallthru
      _
    // Predicated region
    $region18: #{tpu_custom_call.1} parent=1 // pred_check
      _
    $region19: #{tpu_custom_call.1} parent=1 // pred_check_branch
      %60 = sbr.rel (0) target = $region21
    $region20: #{tpu_custom_call.1} parent=1 // pred_region
      %s62 = ssub.s32 16, 16
      %63 = vsyncadd [#allocation11], %s62
      %s65 = sshll.u32 %s4, 4
      %s66 = int_to_ptr.vmem [resolvable:$true] %s65
      %68 = dma.vmem_to_smem %s66, 16, [#allocation10], [#allocation11]
    $region21: #{tpu_custom_call.1} parent=1 // pred_fallthru
      _
    // Predicated region
    $region22: #{tpu_custom_call.1} parent=1 // pred_check
      _
    $region23: #{tpu_custom_call.1} parent=1 // pred_check_branch
      %70 = sbr.rel (0) target = $region25
    $region24: #{tpu_custom_call.1} parent=1 // pred_region
      %s72 = ssub.s32 31360, 31360
      %73 = vsyncadd [#allocation13], %s72
      %s74 = sshll.u32 [#allocation12], 4
      %s75 = int_to_ptr.vmem [resolvable:$true] %s74
      %80 = dma.hbm_to_vmem [thread:$0]  %s5, 31360, %s75, [#allocation13], 64, 64, 4
    $region25: #{tpu_custom_call.1} parent=1 // pred_fallthru
      _
    // Predicated region
    $region26: #{tpu_custom_call.1} parent=1 // pred_check
      _
    $region27: #{tpu_custom_call.1} parent=1 // pred_check_branch
      %82 = sbr.rel (0) target = $region29
    $region28: #{tpu_custom_call.1} parent=1 // pred_region
      %83 = dma.done [#allocation3], 896
    $region29: #{tpu_custom_call.1} parent=1 // pred_fallthru
      _
    // Predicated region
    $region30: #{tpu_custom_call.1} parent=1 // pred_check
      _
    $region31: #{tpu_custom_call.1} parent=1 // pred_check_branch
      %85 = sbr.rel (0) target = $region33
    $region32: #{tpu_custom_call.1} parent=1 // pred_region
      %86 = dma.done [#allocation5], 16
    $region33: #{tpu_custom_call.1} parent=1 // pred_fallthru
      _
    // Predicated region
    $region34: #{tpu_custom_call.1} parent=1 // pred_check
      _
    $region35: #{tpu_custom_call.1} parent=1 // pred_check_branch
      %88 = sbr.rel (0) target = $region37
    $region36: #{tpu_custom_call.1} parent=1 // pred_region
      %89 = dma.done [#allocation8], 16
    $region37: #{tpu_custom_call.1} parent=1 // pred_fallthru
      _
    // Predicated region
    $region38: #{tpu_custom_call.1} parent=1 // pred_check
      _
    $region39: #{tpu_custom_call.1} parent=1 // pred_check_branch
      %91 = sbr.rel (0) target = $region41
    $region40: #{tpu_custom_call.1} parent=1 // pred_region
      %92 = dma.done [#allocation8], 128
    $region41: #{tpu_custom_call.1} parent=1 // pred_fallthru
      _
    // Predicated region
    $region42: #{tpu_custom_call.1} parent=1 // pred_check
      _
    $region43: #{tpu_custom_call.1} parent=1 // pred_check_branch
      %94 = sbr.rel (0) target = $region45
    $region44: #{tpu_custom_call.1} parent=1 // pred_region
      %95 = dma.done [#allocation11], 16
    $region45: #{tpu_custom_call.1} parent=1 // pred_fallthru
      _
    // Predicated region
    $region46: #{tpu_custom_call.1} parent=1 // pred_check
      _
    $region47: #{tpu_custom_call.1} parent=1 // pred_check_branch
      %97 = sbr.rel (0) target = $region49
    $region48: #{tpu_custom_call.1} parent=1 // pred_region
      %98 = dma.done [#allocation13], 31360
    $region49: #{tpu_custom_call.1} parent=1 // pred_fallthru
      _
    %99 = sfence
    %v101 = vld [vmem:[#allocation2] sm:$0xff]
    %v102 = vld [vmem:[#allocation2 + $0x8] sm:$0x3f]
    %v103 = vld [vmem:[#allocation2 + $0xe] sm:$0xff]
    %v104 = vld [vmem:[#allocation2 + $0x16] sm:$0x3f]
    %v105 = vld [vmem:[#allocation2 + $0x1c] sm:$0xff]
    %v106 = vld [vmem:[#allocation2 + $0x24] sm:$0x3f]
    %v107 = vld [vmem:[#allocation2 + $0x2a] sm:$0xff]
    %v108 = vld [vmem:[#allocation2 + $0x32] sm:$0x3f]
    %v117 = vcombine.low %v101, %v103
    %v118 = vcombine.high %v101, %v103
    %v119 = vcombine.low %v105, %v107
    %v120 = vcombine.high %v105, %v107
    %v122 = vunpack.c.l.s4 1983009808
    %v123 = vunpack.c.0.s8 %v122
    %v124 = vlaneseq
    %v125 = vshrl.u32 %v124, 7
    %v126 = vsub.s32 %v123, %v125
    %v127 = vrot.slane %v117, %v126
    %v129 = vunpack.c.l.s4 1983009808
    %v130 = vunpack.c.0.s8 %v129
    %v131 = vlaneseq
    %v132 = vshrl.u32 %v131, 7
    %v133 = vsub.s32 %v130, %v132
    %v134 = vrot.slane %v118, %v133
    %v136 = vunpack.c.l.s4 1983009808
    %v137 = vunpack.c.0.s8 %v136
    %v138 = vlaneseq
    %v139 = vshrl.u32 %v138, 7
    %v140 = vsub.s32 %v137, %v139
    %v141 = vrot.slane %v119, %v140
    %v143 = vunpack.c.l.s4 1983009808
    %v144 = vunpack.c.0.s8 %v143
    %v145 = vlaneseq
    %v146 = vshrl.u32 %v145, 7
    %v147 = vsub.s32 %v144, %v146
    %v148 = vrot.slane %v120, %v147
    %v149 = vcombine.low %v127, %v141
    %v150 = vcombine.high %v127, %v141
    %v151 = vcombine.low %v134, %v148
    %v152 = vcombine.high %v134, %v148
    %v153 = vcombine.low %v102, %v104
    %v154 = vcombine.high %v102, %v104
    %v155 = vcombine.low %v106, %v108
    %v156 = vcombine.high %v106, %v108
    %v158 = vunpack.c.l.s4 1983009808
    %v159 = vunpack.c.0.s8 %v158
    %v160 = vlaneseq
    %v161 = vshrl.u32 %v160, 7
    %v162 = vsub.s32 %v159, %v161
    %v163 = vrot.slane %v153, %v162
    %v165 = vunpack.c.l.s4 1983009808
    %v166 = vunpack.c.0.s8 %v165
    %v167 = vlaneseq
    %v168 = vshrl.u32 %v167, 7
    %v169 = vsub.s32 %v166, %v168
    %v170 = vrot.slane %v154, %v169
    %v172 = vunpack.c.l.s4 1983009808
    %v173 = vunpack.c.0.s8 %v172
    %v174 = vlaneseq
    %v175 = vshrl.u32 %v174, 7
    %v176 = vsub.s32 %v173, %v175
    %v177 = vrot.slane %v155, %v176
    %v179 = vunpack.c.l.s4 1983009808
    %v180 = vunpack.c.0.s8 %v179
    %v181 = vlaneseq
    %v182 = vshrl.u32 %v181, 7
    %v183 = vsub.s32 %v180, %v182
    %v184 = vrot.slane %v156, %v183
    %v185 = vcombine.low %v163, %v177
    %v186 = vcombine.high %v163, %v177
    %v187 = vcombine.low %v170, %v184
    %v195 = vpack.c.bf16 %v149, %v149
    %v196 = vpack.c.bf16 %v150, %v150
    %v197 = vpack.c.bf16 %v151, %v151
    %v198 = vpack.c.bf16 %v152, %v152
    %v199 = vpack.c.bf16 %v185, %v185
    %v200 = vpack.c.bf16 %v186, %v186
    %v201 = vpack.c.bf16 %v187, %v187
    %s202 = sld [smem:[#allocation6]]
    %p204 = scmp.ne.f32.partialorder %s202, %s202
    %s205 = sshrl.u32 %s202, 16
    %s206 = sand.u32 %s205, 1
    %s207 = sadd.s32 32767, %s206
    %s208 = sadd.s32 %s202, %s207
    %s209 = sand.u32 %s208, 4294901760
    %s210 = scalar_select %p204, 2143289344, %s209
    %s212 = sshrl.u32 %s210, 16
    %s213 = sshll.u32 %s212, 16
    %s214 = sor.u32 %s212, %s213
    %v215 = vstv %s214
    %v217 = vmul.bf16 %v215, %v195
    %v218 = vmul.bf16 %v215, %v196
    %v219 = vmul.bf16 %v215, %v197
    %v220 = vmul.bf16 %v215, %v198
    %v221 = vmul.bf16 %v215, %v199
    %v222 = vmul.bf16 %v215, %v200
    %v223 = vmul.bf16 %v215, %v201
    %s224 = sld [smem:[#allocation7]]
    %p226 = scmp.ne.f32.partialorder %s224, %s224
    %s227 = sshrl.u32 %s224, 16
    %s228 = sand.u32 %s227, 1
    %s229 = sadd.s32 32767, %s228
    %s230 = sadd.s32 %s224, %s229
    %s231 = sand.u32 %s230, 4294901760
    %s232 = scalar_select %p226, 2143289344, %s231
    %s234 = sshrl.u32 %s232, 16
    %s235 = sshll.u32 %s234, 16
    %s236 = sor.u32 %s234, %s235
    %v237 = vstv %s236
    %v239 = vadd.bf16 %v217, %v237
    %v240 = vadd.bf16 %v218, %v237
    %v241 = vadd.bf16 %v219, %v237
    %v242 = vadd.bf16 %v220, %v237
    %v243 = vadd.bf16 %v221, %v237
    %v244 = vadd.bf16 %v222, %v237
    %v245 = vadd.bf16 %v223, %v237
    %v246 = vmax.bf16 %v239, 0
    %v247 = vmax.bf16 %v240, 0
    %v248 = vmax.bf16 %v241, 0
    %v249 = vmax.bf16 %v242, 0
    %v250 = vmax.bf16 %v243, 0
    %v251 = vmax.bf16 %v244, 0
    %v252 = vmax.bf16 %v245, 0
    %s253 = sld [smem:[#allocation6 + $0x1]]
    %p255 = scmp.ne.f32.partialorder %s253, %s253
    %s256 = sshrl.u32 %s253, 16
    %s257 = sand.u32 %s256, 1
    %s258 = sadd.s32 32767, %s257
    %s259 = sadd.s32 %s253, %s258
    %s260 = sand.u32 %s259, 4294901760
    %s261 = scalar_select %p255, 2143289344, %s260
    %s263 = sshrl.u32 %s261, 16
    %s264 = sshll.u32 %s263, 16
    %s265 = sor.u32 %s263, %s264
    %v266 = vstv %s265
    %v268 = vmul.bf16 %v266, %v195
    %v269 = vmul.bf16 %v266, %v196
    %v270 = vmul.bf16 %v266, %v197
    %v271 = vmul.bf16 %v266, %v198
    %v272 = vmul.bf16 %v266, %v199
    %v273 = vmul.bf16 %v266, %v200
    %v274 = vmul.bf16 %v266, %v201
    %s275 = sld [smem:[#allocation7 + $0x1]]
    %p277 = scmp.ne.f32.partialorder %s275, %s275
    %s278 = sshrl.u32 %s275, 16
    %s279 = sand.u32 %s278, 1
    %s280 = sadd.s32 32767, %s279
    %s281 = sadd.s32 %s275, %s280
    %s282 = sand.u32 %s281, 4294901760
    %s283 = scalar_select %p277, 2143289344, %s282
    %s285 = sshrl.u32 %s283, 16
    %s286 = sshll.u32 %s285, 16
    %s287 = sor.u32 %s285, %s286
    %v288 = vstv %s287
    %v290 = vadd.bf16 %v268, %v288
    %v291 = vadd.bf16 %v269, %v288
    %v292 = vadd.bf16 %v270, %v288
    %v293 = vadd.bf16 %v271, %v288
    %v294 = vadd.bf16 %v272, %v288
    %v295 = vadd.bf16 %v273, %v288
    %v296 = vadd.bf16 %v274, %v288
    %v297 = vmax.bf16 %v290, 0
    %v298 = vmax.bf16 %v291, 0
    %v299 = vmax.bf16 %v292, 0
    %v300 = vmax.bf16 %v293, 0
    %v301 = vmax.bf16 %v294, 0
    %v302 = vmax.bf16 %v295, 0
    %v303 = vmax.bf16 %v296, 0
    %s304 = sld [smem:[#allocation6 + $0x2]]
    %p306 = scmp.ne.f32.partialorder %s304, %s304
    %s307 = sshrl.u32 %s304, 16
    %s308 = sand.u32 %s307, 1
    %s309 = sadd.s32 32767, %s308
    %s310 = sadd.s32 %s304, %s309
    %s311 = sand.u32 %s310, 4294901760
    %s312 = scalar_select %p306, 2143289344, %s311
    %s314 = sshrl.u32 %s312, 16
    %s315 = sshll.u32 %s314, 16
    %s316 = sor.u32 %s314, %s315
    %v317 = vstv %s316
    %v319 = vmul.bf16 %v317, %v195
    %v320 = vmul.bf16 %v317, %v196
    %v321 = vmul.bf16 %v317, %v197
    %v322 = vmul.bf16 %v317, %v198
    %v323 = vmul.bf16 %v317, %v199
    %v324 = vmul.bf16 %v317, %v200
    %v325 = vmul.bf16 %v317, %v201
    %s326 = sld [smem:[#allocation7 + $0x2]]
    %p328 = scmp.ne.f32.partialorder %s326, %s326
    %s329 = sshrl.u32 %s326, 16
    %s330 = sand.u32 %s329, 1
    %s331 = sadd.s32 32767, %s330
    %s332 = sadd.s32 %s326, %s331
    %s333 = sand.u32 %s332, 4294901760
    %s334 = scalar_select %p328, 2143289344, %s333
    %s336 = sshrl.u32 %s334, 16
    %s337 = sshll.u32 %s336, 16
    %s338 = sor.u32 %s336, %s337
    %v339 = vstv %s338
    %v341 = vadd.bf16 %v319, %v339
    %v342 = vadd.bf16 %v320, %v339
    %v343 = vadd.bf16 %v321, %v339
    %v344 = vadd.bf16 %v322, %v339
    %v345 = vadd.bf16 %v323, %v339
    %v346 = vadd.bf16 %v324, %v339
    %v347 = vadd.bf16 %v325, %v339
    %v348 = vmax.bf16 %v341, 0
    %v349 = vmax.bf16 %v342, 0
    %v350 = vmax.bf16 %v343, 0
    %v351 = vmax.bf16 %v344, 0
    %v352 = vmax.bf16 %v345, 0
    %v353 = vmax.bf16 %v346, 0
    %v354 = vmax.bf16 %v347, 0
    %s355 = sld [smem:[#allocation9]]
    %p357 = scmp.ne.f32.partialorder %s355, %s355
    %s358 = sshrl.u32 %s355, 16
    %s359 = sand.u32 %s358, 1
    %s360 = sadd.s32 32767, %s359
    %s361 = sadd.s32 %s355, %s360
    %s362 = sand.u32 %s361, 4294901760
    %s363 = scalar_select %p357, 2143289344, %s362
    %s365 = sshrl.u32 %s363, 16
    %s366 = sshll.u32 %s365, 16
    %s367 = sor.u32 %s365, %s366
    %v368 = vstv %s367
    %v370 = vmul.bf16 %v368, %v246
    %v371 = vmul.bf16 %v368, %v247
    %v372 = vmul.bf16 %v368, %v248
    %v373 = vmul.bf16 %v368, %v249
    %v374 = vmul.bf16 %v368, %v250
    %v375 = vmul.bf16 %v368, %v251
    %v376 = vmul.bf16 %v368, %v252
    %s377 = sld [smem:[#allocation9 + $0x1]]
    %p379 = scmp.ne.f32.partialorder %s377, %s377
    %s380 = sshrl.u32 %s377, 16
    %s381 = sand.u32 %s380, 1
    %s382 = sadd.s32 32767, %s381
    %s383 = sadd.s32 %s377, %s382
    %s384 = sand.u32 %s383, 4294901760
    %s385 = scalar_select %p379, 2143289344, %s384
    %s387 = sshrl.u32 %s385, 16
    %s388 = sshll.u32 %s387, 16
    %s389 = sor.u32 %s387, %s388
    %v390 = vstv %s389
    %v392 = vmul.bf16 %v390, %v297
    %v393 = vmul.bf16 %v390, %v298
    %v394 = vmul.bf16 %v390, %v299
    %v395 = vmul.bf16 %v390, %v300
    %v396 = vmul.bf16 %v390, %v301
    %v397 = vmul.bf16 %v390, %v302
    %v398 = vmul.bf16 %v390, %v303
    %v399 = vadd.bf16 %v370, %v392
    %v400 = vadd.bf16 %v371, %v393
    %v401 = vadd.bf16 %v372, %v394
    %v402 = vadd.bf16 %v373, %v395
    %v403 = vadd.bf16 %v374, %v396
    %v404 = vadd.bf16 %v375, %v397
    %v405 = vadd.bf16 %v376, %v398
    %s406 = sld [smem:[#allocation9 + $0x2]]
    %p408 = scmp.ne.f32.partialorder %s406, %s406
    %s409 = sshrl.u32 %s406, 16
    %s410 = sand.u32 %s409, 1
    %s411 = sadd.s32 32767, %s410
    %s412 = sadd.s32 %s406, %s411
    %s413 = sand.u32 %s412, 4294901760
    %s414 = scalar_select %p408, 2143289344, %s413
    %s416 = sshrl.u32 %s414, 16
    %s417 = sshll.u32 %s416, 16
    %s418 = sor.u32 %s416, %s417
    %v419 = vstv %s418
    %v421 = vmul.bf16 %v419, %v348
    %v422 = vmul.bf16 %v419, %v349
    %v423 = vmul.bf16 %v419, %v350
    %v424 = vmul.bf16 %v419, %v351
    %v425 = vmul.bf16 %v419, %v352
    %v426 = vmul.bf16 %v419, %v353
    %v427 = vmul.bf16 %v419, %v354
    %v428 = vadd.bf16 %v399, %v421
    %v429 = vadd.bf16 %v400, %v422
    %v430 = vadd.bf16 %v401, %v423
    %v431 = vadd.bf16 %v402, %v424
    %v432 = vadd.bf16 %v403, %v425
    %v433 = vadd.bf16 %v404, %v426
    %v434 = vadd.bf16 %v405, %v427
    %s435 = sld [smem:[#allocation10]]
    %p437 = scmp.ne.f32.partialorder %s435, %s435
    %s438 = sshrl.u32 %s435, 16
    %s439 = sand.u32 %s438, 1
    %s440 = sadd.s32 32767, %s439
    %s441 = sadd.s32 %s435, %s440
    %s442 = sand.u32 %s441, 4294901760
    %s443 = scalar_select %p437, 2143289344, %s442
    %s445 = sshrl.u32 %s443, 16
    %s446 = sshll.u32 %s445, 16
    %s447 = sor.u32 %s445, %s446
    %v448 = vstv %s447
    %v450 = vadd.bf16 %v428, %v448
    %v451 = vadd.bf16 %v429, %v448
    %v452 = vadd.bf16 %v430, %v448
    %v453 = vadd.bf16 %v431, %v448
    %v454 = vadd.bf16 %v432, %v448
    %v455 = vadd.bf16 %v433, %v448
    %v456 = vadd.bf16 %v434, %v448
    %v457 = vmax.bf16 %v450, 0
    %v458 = vmax.bf16 %v451, 0
    %v459 = vmax.bf16 %v452, 0
    %v460 = vmax.bf16 %v453, 0
    %v461 = vmax.bf16 %v454, 0
    %v462 = vmax.bf16 %v455, 0
    %v463 = vmax.bf16 %v456, 0
    %v464 = vld [vmem:[#allocation12] sm:$0xf]
    %v465 = vld [vmem:[#allocation12 + $0x4] sm:$0xf]
    %v466 = vld [vmem:[#allocation12 + $0x8] sm:$0xf]
    %v467 = vld [vmem:[#allocation12 + $0xc] sm:$0xf]
    %v468 = vld [vmem:[#allocation12 + $0x10] sm:$0xf]
    %v469 = vld [vmem:[#allocation12 + $0x14] sm:$0xf]
    %v470 = vld [vmem:[#allocation12 + $0x18] sm:$0xf]
    %v471 = vld [vmem:[#allocation12 + $0x1c] sm:$0xf]
    %v472 = vld [vmem:[#allocation12 + $0x20] sm:$0xf]
    %v473 = vld [vmem:[#allocation12 + $0x24] sm:$0xf]
    %v474 = vld [vmem:[#allocation12 + $0x28] sm:$0xf]
    %v475 = vld [vmem:[#allocation12 + $0x2c] sm:$0xf]
    %v476 = vld [vmem:[#allocation12 + $0x30] sm:$0xf]
    %v477 = vld [vmem:[#allocation12 + $0x34] sm:$0xf]
    %v478 = vld [vmem:[#allocation12 + $0x38] sm:$0xf]
    %v479 = vld [vmem:[#allocation12 + $0x3c] sm:$0xf]
    %v480 = vld [vmem:[#allocation12 + $0x40] sm:$0xf]
    %v481 = vld [vmem:[#allocation12 + $0x44] sm:$0xf]
    %v482 = vld [vmem:[#allocation12 + $0x48] sm:$0xf]
    %v483 = vld [vmem:[#allocation12 + $0x4c] sm:$0xf]
    %v484 = vld [vmem:[#allocation12 + $0x50] sm:$0xf]
    %v485 = vld [vmem:[#allocation12 + $0x54] sm:$0xf]
    %v486 = vld [vmem:[#allocation12 + $0x58] sm:$0xf]
    %v487 = vld [vmem:[#allocation12 + $0x5c] sm:$0xf]
    %v488 = vld [vmem:[#allocation12 + $0x60] sm:$0xf]
    %v489 = vld [vmem:[#allocation12 + $0x64] sm:$0xf]
    %v490 = vld [vmem:[#allocation12 + $0x68] sm:$0xf]
    %v491 = vld [vmem:[#allocation12 + $0x6c] sm:$0xf]
    %v492 = vld [vmem:[#allocation12 + $0x70] sm:$0xf]
    %v493 = vld [vmem:[#allocation12 + $0x74] sm:$0xf]
    %v494 = vld [vmem:[#allocation12 + $0x78] sm:$0xf]
    %v495 = vld [vmem:[#allocation12 + $0x7c] sm:$0xf]
    %v496 = vld [vmem:[#allocation12 + $0x80] sm:$0xf]
    %v497 = vld [vmem:[#allocation12 + $0x84] sm:$0xf]
    %v498 = vld [vmem:[#allocation12 + $0x88] sm:$0xf]
    %v499 = vld [vmem:[#allocation12 + $0x8c] sm:$0xf]
    %v500 = vld [vmem:[#allocation12 + $0x90] sm:$0xf]
    %v501 = vld [vmem:[#allocation12 + $0x94] sm:$0xf]
    %v502 = vld [vmem:[#allocation12 + $0x98] sm:$0xf]
    %v503 = vld [vmem:[#allocation12 + $0x9c] sm:$0xf]
    %v504 = vld [vmem:[#allocation12 + $0xa0] sm:$0xf]
    %v505 = vld [vmem:[#allocation12 + $0xa4] sm:$0xf]
    %v506 = vld [vmem:[#allocation12 + $0xa8] sm:$0xf]
    %v507 = vld [vmem:[#allocation12 + $0xac] sm:$0xf]
    %v508 = vld [vmem:[#allocation12 + $0xb0] sm:$0xf]
    %v509 = vld [vmem:[#allocation12 + $0xb4] sm:$0xf]
    %v510 = vld [vmem:[#allocation12 + $0xb8] sm:$0xf]
    %v511 = vld [vmem:[#allocation12 + $0xbc] sm:$0xf]
    %v512 = vld [vmem:[#allocation12 + $0xc0] sm:$0xf]
    %v513 = vld [vmem:[#allocation12 + $0xc4] sm:$0xf]
    %v514 = vld [vmem:[#allocation12 + $0xc8] sm:$0xf]
    %v515 = vld [vmem:[#allocation12 + $0xcc] sm:$0xf]
    %v516 = vld [vmem:[#allocation12 + $0xd0] sm:$0xf]
    %v517 = vld [vmem:[#allocation12 + $0xd4] sm:$0xf]
    %v518 = vld [vmem:[#allocation12 + $0xd8] sm:$0xf]
    %v519 = vld [vmem:[#allocation12 + $0xdc] sm:$0xf]
    %v520 = vld [vmem:[#allocation12 + $0xe0] sm:$0xf]
    %v521 = vld [vmem:[#allocation12 + $0xe4] sm:$0xf]
    %v522 = vld [vmem:[#allocation12 + $0xe8] sm:$0xf]
    %v523 = vld [vmem:[#allocation12 + $0xec] sm:$0xf]
    %v524 = vld [vmem:[#allocation12 + $0xf0] sm:$0xf]
    %v525 = vld [vmem:[#allocation12 + $0xf4] sm:$0xf]
    %v526 = vld [vmem:[#allocation12 + $0xf8] sm:$0xf]
    %v527 = vld [vmem:[#allocation12 + $0xfc] sm:$0xf]
    %v528 = vld [vmem:[#allocation12 + $0x100] sm:$0xf]
    %v529 = vld [vmem:[#allocation12 + $0x104] sm:$0xf]
    %v530 = vld [vmem:[#allocation12 + $0x108] sm:$0xf]
    %v531 = vld [vmem:[#allocation12 + $0x10c] sm:$0xf]
    %v532 = vld [vmem:[#allocation12 + $0x110] sm:$0xf]
    %v533 = vld [vmem:[#allocation12 + $0x114] sm:$0xf]
    %v534 = vld [vmem:[#allocation12 + $0x118] sm:$0xf]
    %v535 = vld [vmem:[#allocation12 + $0x11c] sm:$0xf]
    %v536 = vld [vmem:[#allocation12 + $0x120] sm:$0xf]
    %v537 = vld [vmem:[#allocation12 + $0x124] sm:$0xf]
    %v538 = vld [vmem:[#allocation12 + $0x128] sm:$0xf]
    %v539 = vld [vmem:[#allocation12 + $0x12c] sm:$0xf]
    %v540 = vld [vmem:[#allocation12 + $0x130] sm:$0xf]
    %v541 = vld [vmem:[#allocation12 + $0x134] sm:$0xf]
    %v542 = vld [vmem:[#allocation12 + $0x138] sm:$0xf]
    %v543 = vld [vmem:[#allocation12 + $0x13c] sm:$0xf]
    %v544 = vld [vmem:[#allocation12 + $0x140] sm:$0xf]
    %v545 = vld [vmem:[#allocation12 + $0x144] sm:$0xf]
    %v546 = vld [vmem:[#allocation12 + $0x148] sm:$0xf]
    %v547 = vld [vmem:[#allocation12 + $0x14c] sm:$0xf]
    %v548 = vld [vmem:[#allocation12 + $0x150] sm:$0xf]
    %v549 = vld [vmem:[#allocation12 + $0x154] sm:$0xf]
    %v550 = vld [vmem:[#allocation12 + $0x158] sm:$0xf]
    %v551 = vld [vmem:[#allocation12 + $0x15c] sm:$0xf]
    %v552 = vld [vmem:[#allocation12 + $0x160] sm:$0xf]
    %v553 = vld [vmem:[#allocation12 + $0x164] sm:$0xf]
    %v554 = vld [vmem:[#allocation12 + $0x168] sm:$0xf]
    %v555 = vld [vmem:[#allocation12 + $0x16c] sm:$0xf]
    %v556 = vld [vmem:[#allocation12 + $0x170] sm:$0xf]
    %v557 = vld [vmem:[#allocation12 + $0x174] sm:$0xf]
    %v558 = vld [vmem:[#allocation12 + $0x178] sm:$0xf]
    %v559 = vld [vmem:[#allocation12 + $0x17c] sm:$0xf]
    %v560 = vld [vmem:[#allocation12 + $0x180] sm:$0xf]
    %v561 = vld [vmem:[#allocation12 + $0x184] sm:$0xf]
    %s562 = sld [smem:[#allocation9 + $0x80]]
    %p564 = scmp.ne.f32.partialorder %s562, %s562
    %s565 = sshrl.u32 %s562, 16
    %s566 = sand.u32 %s565, 1
    %s567 = sadd.s32 32767, %s566
    %s568 = sadd.s32 %s562, %s567
    %s569 = sand.u32 %s568, 4294901760
    %s570 = scalar_select %p564, 2143289344, %s569
    %s572 = sshrl.u32 %s570, 16
    %s573 = sshll.u32 %s572, 16
    %s574 = sor.u32 %s572, %s573
    %v575 = vstv %s574
    %v577 = vmul.bf16 %v575, %v246
    %v578 = vmul.bf16 %v575, %v247
    %v579 = vmul.bf16 %v575, %v248
    %v580 = vmul.bf16 %v575, %v249
    %v581 = vmul.bf16 %v575, %v250
    %v582 = vmul.bf16 %v575, %v251
    %v583 = vmul.bf16 %v575, %v252
    %s584 = sld [smem:[#allocation9 + $0x81]]
    %p586 = scmp.ne.f32.partialorder %s584, %s584
    %s587 = sshrl.u32 %s584, 16
    %s588 = sand.u32 %s587, 1
    %s589 = sadd.s32 32767, %s588
    %s590 = sadd.s32 %s584, %s589
    %s591 = sand.u32 %s590, 4294901760
    %s592 = scalar_select %p586, 2143289344, %s591
    %s594 = sshrl.u32 %s592, 16
    %s595 = sshll.u32 %s594, 16
    %s596 = sor.u32 %s594, %s595
    %v597 = vstv %s596
    %v599 = vmul.bf16 %v597, %v297
    %v600 = vmul.bf16 %v597, %v298
    %v601 = vmul.bf16 %v597, %v299
    %v602 = vmul.bf16 %v597, %v300
    %v603 = vmul.bf16 %v597, %v301
    %v604 = vmul.bf16 %v597, %v302
    %v605 = vmul.bf16 %v597, %v303
    %v606 = vadd.bf16 %v577, %v599
    %v607 = vadd.bf16 %v578, %v600
    %v608 = vadd.bf16 %v579, %v601
    %v609 = vadd.bf16 %v580, %v602
    %v610 = vadd.bf16 %v581, %v603
    %v611 = vadd.bf16 %v582, %v604
    %v612 = vadd.bf16 %v583, %v605
    %s613 = sld [smem:[#allocation9 + $0x82]]
    %p615 = scmp.ne.f32.partialorder %s613, %s613
    %s616 = sshrl.u32 %s613, 16
    %s617 = sand.u32 %s616, 1
    %s618 = sadd.s32 32767, %s617
    %s619 = sadd.s32 %s613, %s618
    %s620 = sand.u32 %s619, 4294901760
    %s621 = scalar_select %p615, 2143289344, %s620
    %s623 = sshrl.u32 %s621, 16
    %s624 = sshll.u32 %s623, 16
    %s625 = sor.u32 %s623, %s624
    %v626 = vstv %s625
    %v628 = vmul.bf16 %v626, %v348
    %v629 = vmul.bf16 %v626, %v349
    %v630 = vmul.bf16 %v626, %v350
    %v631 = vmul.bf16 %v626, %v351
    %v632 = vmul.bf16 %v626, %v352
    %v633 = vmul.bf16 %v626, %v353
    %v634 = vmul.bf16 %v626, %v354
    %v635 = vadd.bf16 %v606, %v628
    %v636 = vadd.bf16 %v607, %v629
    %v637 = vadd.bf16 %v608, %v630
    %v638 = vadd.bf16 %v609, %v631
    %v639 = vadd.bf16 %v610, %v632
    %v640 = vadd.bf16 %v611, %v633
    %v641 = vadd.bf16 %v612, %v634
    %s642 = sld [smem:[#allocation10 + $0x1]]
    %p644 = scmp.ne.f32.partialorder %s642, %s642
    %s645 = sshrl.u32 %s642, 16
    %s646 = sand.u32 %s645, 1
    %s647 = sadd.s32 32767, %s646
    %s648 = sadd.s32 %s642, %s647
    %s649 = sand.u32 %s648, 4294901760
    %s650 = scalar_select %p644, 2143289344, %s649
    %s652 = sshrl.u32 %s650, 16
    %s653 = sshll.u32 %s652, 16
    %s654 = sor.u32 %s652, %s653
    %v655 = vstv %s654
    %v657 = vadd.bf16 %v635, %v655
    %v658 = vadd.bf16 %v636, %v655
    %v659 = vadd.bf16 %v637, %v655
    %v660 = vadd.bf16 %v638, %v655
    %v661 = vadd.bf16 %v639, %v655
    %v662 = vadd.bf16 %v640, %v655
    %v663 = vadd.bf16 %v641, %v655
    %v664 = vmax.bf16 %v657, 0
    %v665 = vmax.bf16 %v658, 0
    %v666 = vmax.bf16 %v659, 0
    %v667 = vmax.bf16 %v660, 0
    %v668 = vmax.bf16 %v661, 0
    %v669 = vmax.bf16 %v662, 0
    %v670 = vmax.bf16 %v663, 0
    %s671 = scalar_lea.vmem [#allocation12], 392
    %v672 = vld [vmem:[%s671] sm:$0xf]
    %v673 = vld [vmem:[%s671 + $0x4] sm:$0xf]
    %v674 = vld [vmem:[%s671 + $0x8] sm:$0xf]
    %v675 = vld [vmem:[%s671 + $0xc] sm:$0xf]
    %v676 = vld [vmem:[%s671 + $0x10] sm:$0xf]
    %v677 = vld [vmem:[%s671 + $0x14] sm:$0xf]
    %v678 = vld [vmem:[%s671 + $0x18] sm:$0xf]
    %v679 = vld [vmem:[%s671 + $0x1c] sm:$0xf]
    %v680 = vld [vmem:[%s671 + $0x20] sm:$0xf]
    %v681 = vld [vmem:[%s671 + $0x24] sm:$0xf]
    %v682 = vld [vmem:[%s671 + $0x28] sm:$0xf]
    %v683 = vld [vmem:[%s671 + $0x2c] sm:$0xf]
    %v684 = vld [vmem:[%s671 + $0x30] sm:$0xf]
    %v685 = vld [vmem:[%s671 + $0x34] sm:$0xf]
    %v686 = vld [vmem:[%s671 + $0x38] sm:$0xf]
    %v687 = vld [vmem:[%s671 + $0x3c] sm:$0xf]
    %v688 = vld [vmem:[%s671 + $0x40] sm:$0xf]
    %v689 = vld [vmem:[%s671 + $0x44] sm:$0xf]
    %v690 = vld [vmem:[%s671 + $0x48] sm:$0xf]
    %v691 = vld [vmem:[%s671 + $0x4c] sm:$0xf]
    %v692 = vld [vmem:[%s671 + $0x50] sm:$0xf]
    %v693 = vld [vmem:[%s671 + $0x54] sm:$0xf]
    %v694 = vld [vmem:[%s671 + $0x58] sm:$0xf]
    %v695 = vld [vmem:[%s671 + $0x5c] sm:$0xf]
    %v696 = vld [vmem:[%s671 + $0x60] sm:$0xf]
    %v697 = vld [vmem:[%s671 + $0x64] sm:$0xf]
    %v698 = vld [vmem:[%s671 + $0x68] sm:$0xf]
    %v699 = vld [vmem:[%s671 + $0x6c] sm:$0xf]
    %v700 = vld [vmem:[%s671 + $0x70] sm:$0xf]
    %v701 = vld [vmem:[%s671 + $0x74] sm:$0xf]
    %v702 = vld [vmem:[%s671 + $0x78] sm:$0xf]
    %v703 = vld [vmem:[%s671 + $0x7c] sm:$0xf]
    %v704 = vld [vmem:[%s671 + $0x80] sm:$0xf]
    %v705 = vld [vmem:[%s671 + $0x84] sm:$0xf]
    %v706 = vld [vmem:[%s671 + $0x88] sm:$0xf]
    %v707 = vld [vmem:[%s671 + $0x8c] sm:$0xf]
    %v708 = vld [vmem:[%s671 + $0x90] sm:$0xf]
    %v709 = vld [vmem:[%s671 + $0x94] sm:$0xf]
    %v710 = vld [vmem:[%s671 + $0x98] sm:$0xf]
    %v711 = vld [vmem:[%s671 + $0x9c] sm:$0xf]
    %v712 = vld [vmem:[%s671 + $0xa0] sm:$0xf]
    %v713 = vld [vmem:[%s671 + $0xa4] sm:$0xf]
    %v714 = vld [vmem:[%s671 + $0xa8] sm:$0xf]
    %v715 = vld [vmem:[%s671 + $0xac] sm:$0xf]
    %v716 = vld [vmem:[%s671 + $0xb0] sm:$0xf]
    %v717 = vld [vmem:[%s671 + $0xb4] sm:$0xf]
    %v718 = vld [vmem:[%s671 + $0xb8] sm:$0xf]
    %v719 = vld [vmem:[%s671 + $0xbc] sm:$0xf]
    %v720 = vld [vmem:[%s671 + $0xc0] sm:$0xf]
    %v721 = vld [vmem:[%s671 + $0xc4] sm:$0xf]
    %v722 = vld [vmem:[%s671 + $0xc8] sm:$0xf]
    %v723 = vld [vmem:[%s671 + $0xcc] sm:$0xf]
    %v724 = vld [vmem:[%s671 + $0xd0] sm:$0xf]
    %v725 = vld [vmem:[%s671 + $0xd4] sm:$0xf]
    %v726 = vld [vmem:[%s671 + $0xd8] sm:$0xf]
    %v727 = vld [vmem:[%s671 + $0xdc] sm:$0xf]
    %v728 = vld [vmem:[%s671 + $0xe0] sm:$0xf]
    %v729 = vld [vmem:[%s671 + $0xe4] sm:$0xf]
    %v730 = vld [vmem:[%s671 + $0xe8] sm:$0xf]
    %v731 = vld [vmem:[%s671 + $0xec] sm:$0xf]
    %v732 = vld [vmem:[%s671 + $0xf0] sm:$0xf]
    %v733 = vld [vmem:[%s671 + $0xf4] sm:$0xf]
    %v734 = vld [vmem:[%s671 + $0xf8] sm:$0xf]
    %v735 = vld [vmem:[%s671 + $0xfc] sm:$0xf]
    %v736 = vld [vmem:[%s671 + $0x100] sm:$0xf]
    %v737 = vld [vmem:[%s671 + $0x104] sm:$0xf]
    %v738 = vld [vmem:[%s671 + $0x108] sm:$0xf]
    %v739 = vld [vmem:[%s671 + $0x10c] sm:$0xf]
    %v740 = vld [vmem:[%s671 + $0x110] sm:$0xf]
    %v741 = vld [vmem:[%s671 + $0x114] sm:$0xf]
    %v742 = vld [vmem:[%s671 + $0x118] sm:$0xf]
    %v743 = vld [vmem:[%s671 + $0x11c] sm:$0xf]
    %v744 = vld [vmem:[%s671 + $0x120] sm:$0xf]
    %v745 = vld [vmem:[%s671 + $0x124] sm:$0xf]
    %v746 = vld [vmem:[%s671 + $0x128] sm:$0xf]
    %v747 = vld [vmem:[%s671 + $0x12c] sm:$0xf]
    %v748 = vld [vmem:[%s671 + $0x130] sm:$0xf]
    %v749 = vld [vmem:[%s671 + $0x134] sm:$0xf]
    %v750 = vld [vmem:[%s671 + $0x138] sm:$0xf]
    %v751 = vld [vmem:[%s671 + $0x13c] sm:$0xf]
    %v752 = vld [vmem:[%s671 + $0x140] sm:$0xf]
    %v753 = vld [vmem:[%s671 + $0x144] sm:$0xf]
    %v754 = vld [vmem:[%s671 + $0x148] sm:$0xf]
    %v755 = vld [vmem:[%s671 + $0x14c] sm:$0xf]
    %v756 = vld [vmem:[%s671 + $0x150] sm:$0xf]
    %v757 = vld [vmem:[%s671 + $0x154] sm:$0xf]
    %v758 = vld [vmem:[%s671 + $0x158] sm:$0xf]
    %v759 = vld [vmem:[%s671 + $0x15c] sm:$0xf]
    %v760 = vld [vmem:[%s671 + $0x160] sm:$0xf]
    %v761 = vld [vmem:[%s671 + $0x164] sm:$0xf]
    %v762 = vld [vmem:[%s671 + $0x168] sm:$0xf]
    %v763 = vld [vmem:[%s671 + $0x16c] sm:$0xf]
    %v764 = vld [vmem:[%s671 + $0x170] sm:$0xf]
    %v765 = vld [vmem:[%s671 + $0x174] sm:$0xf]
    %v766 = vld [vmem:[%s671 + $0x178] sm:$0xf]
    %v767 = vld [vmem:[%s671 + $0x17c] sm:$0xf]
    %v768 = vld [vmem:[%s671 + $0x180] sm:$0xf]
    %v769 = vld [vmem:[%s671 + $0x184] sm:$0xf]
    %v868 = vunpack.c.l.b16 %v672
    %v869 = vunpack.c.l.b16 %v673
    %v870 = vunpack.c.l.b16 %v674
    %v871 = vunpack.c.l.b16 %v675
    %v872 = vunpack.c.l.b16 %v676
    %v873 = vunpack.c.l.b16 %v677
    %v874 = vunpack.c.l.b16 %v678
    %v875 = vunpack.c.l.b16 %v679
    %v876 = vunpack.c.l.b16 %v680
    %v877 = vunpack.c.l.b16 %v681
    %v878 = vunpack.c.l.b16 %v682
    %v879 = vunpack.c.l.b16 %v683
    %v880 = vunpack.c.l.b16 %v684
    %v881 = vunpack.c.l.b16 %v685
    %v882 = vunpack.c.l.b16 %v686
    %v883 = vunpack.c.l.b16 %v687
    %v884 = vunpack.c.l.b16 %v688
    %v885 = vunpack.c.l.b16 %v689
    %v886 = vunpack.c.l.b16 %v690
    %v887 = vunpack.c.l.b16 %v691
    %v888 = vunpack.c.l.b16 %v692
    %v889 = vunpack.c.l.b16 %v693
    %v890 = vunpack.c.l.b16 %v694
    %v891 = vunpack.c.l.b16 %v695
    %v892 = vunpack.c.l.b16 %v696
    %v893 = vunpack.c.l.b16 %v697
    %v894 = vunpack.c.l.b16 %v698
    %v895 = vunpack.c.l.b16 %v699
    %v896 = vunpack.c.l.b16 %v700
    %v897 = vunpack.c.l.b16 %v701
    %v898 = vunpack.c.l.b16 %v702
    %v899 = vunpack.c.l.b16 %v703
    %v900 = vunpack.c.l.b16 %v704
    %v901 = vunpack.c.l.b16 %v705
    %v902 = vunpack.c.l.b16 %v706
    %v903 = vunpack.c.l.b16 %v707
    %v904 = vunpack.c.l.b16 %v708
    %v905 = vunpack.c.l.b16 %v709
    %v906 = vunpack.c.l.b16 %v710
    %v907 = vunpack.c.l.b16 %v711
    %v908 = vunpack.c.l.b16 %v712
    %v909 = vunpack.c.l.b16 %v713
    %v910 = vunpack.c.l.b16 %v714
    %v911 = vunpack.c.l.b16 %v715
    %v912 = vunpack.c.l.b16 %v716
    %v913 = vunpack.c.l.b16 %v717
    %v914 = vunpack.c.l.b16 %v718
    %v915 = vunpack.c.l.b16 %v719
    %v916 = vunpack.c.l.b16 %v720
    %v917 = vunpack.c.l.b16 %v721
    %v918 = vunpack.c.l.b16 %v722
    %v919 = vunpack.c.l.b16 %v723
    %v920 = vunpack.c.l.b16 %v724
    %v921 = vunpack.c.l.b16 %v725
    %v922 = vunpack.c.l.b16 %v726
    %v923 = vunpack.c.l.b16 %v727
    %v924 = vunpack.c.l.b16 %v728
    %v925 = vunpack.c.l.b16 %v729
    %v926 = vunpack.c.l.b16 %v730
    %v927 = vunpack.c.l.b16 %v731
    %v928 = vunpack.c.l.b16 %v732
    %v929 = vunpack.c.l.b16 %v733
    %v930 = vunpack.c.l.b16 %v734
    %v931 = vunpack.c.l.b16 %v735
    %v932 = vunpack.c.l.b16 %v736
    %v933 = vunpack.c.l.b16 %v737
    %v934 = vunpack.c.l.b16 %v738
    %v935 = vunpack.c.l.b16 %v739
    %v936 = vunpack.c.l.b16 %v740
    %v937 = vunpack.c.l.b16 %v741
    %v938 = vunpack.c.l.b16 %v742
    %v939 = vunpack.c.l.b16 %v743
    %v940 = vunpack.c.l.b16 %v744
    %v941 = vunpack.c.l.b16 %v745
    %v942 = vunpack.c.l.b16 %v746
    %v943 = vunpack.c.l.b16 %v747
    %v944 = vunpack.c.l.b16 %v748
    %v945 = vunpack.c.l.b16 %v749
    %v946 = vunpack.c.l.b16 %v750
    %v947 = vunpack.c.l.b16 %v751
    %v948 = vunpack.c.l.b16 %v752
    %v949 = vunpack.c.l.b16 %v753
    %v950 = vunpack.c.l.b16 %v754
    %v951 = vunpack.c.l.b16 %v755
    %v952 = vunpack.c.l.b16 %v756
    %v953 = vunpack.c.l.b16 %v757
    %v954 = vunpack.c.l.b16 %v758
    %v955 = vunpack.c.l.b16 %v759
    %v956 = vunpack.c.l.b16 %v760
    %v957 = vunpack.c.l.b16 %v761
    %v958 = vunpack.c.l.b16 %v762
    %v959 = vunpack.c.l.b16 %v763
    %v960 = vunpack.c.l.b16 %v764
    %v961 = vunpack.c.l.b16 %v765
    %v962 = vunpack.c.l.b16 %v766
    %v963 = vunpack.c.l.b16 %v767
    %v964 = vunpack.c.l.b16 %v768
    %v965 = vunpack.c.l.b16 %v769
    %v966 = vpack.c.b16 %v869, %v868
    %v967 = vpack.c.b16 %v871, %v870
    %v968 = vpack.c.b16 %v873, %v872
    %v969 = vpack.c.b16 %v875, %v874
    %v970 = vpack.c.b16 %v877, %v876
    %v971 = vpack.c.b16 %v879, %v878
    %v972 = vpack.c.b16 %v881, %v880
    %v973 = vpack.c.b16 %v883, %v882
    %v974 = vpack.c.b16 %v885, %v884
    %v975 = vpack.c.b16 %v887, %v886
    %v976 = vpack.c.b16 %v889, %v888
    %v977 = vpack.c.b16 %v891, %v890
    %v978 = vpack.c.b16 %v893, %v892
    %v979 = vpack.c.b16 %v895, %v894
    %v980 = vpack.c.b16 %v897, %v896
    %v981 = vpack.c.b16 %v899, %v898
    %v982 = vpack.c.b16 %v901, %v900
    %v983 = vpack.c.b16 %v903, %v902
    %v984 = vpack.c.b16 %v905, %v904
    %v985 = vpack.c.b16 %v907, %v906
    %v986 = vpack.c.b16 %v909, %v908
    %v987 = vpack.c.b16 %v911, %v910
    %v988 = vpack.c.b16 %v913, %v912
    %v989 = vpack.c.b16 %v915, %v914
    %v990 = vpack.c.b16 %v917, %v916
    %v991 = vpack.c.b16 %v919, %v918
    %v992 = vpack.c.b16 %v921, %v920
    %v993 = vpack.c.b16 %v923, %v922
    %v994 = vpack.c.b16 %v925, %v924
    %v995 = vpack.c.b16 %v927, %v926
    %v996 = vpack.c.b16 %v929, %v928
    %v997 = vpack.c.b16 %v931, %v930
    %v998 = vpack.c.b16 %v933, %v932
    %v999 = vpack.c.b16 %v935, %v934
    %v1000 = vpack.c.b16 %v937, %v936
    %v1001 = vpack.c.b16 %v939, %v938
    %v1002 = vpack.c.b16 %v941, %v940
    %v1003 = vpack.c.b16 %v943, %v942
    %v1004 = vpack.c.b16 %v945, %v944
    %v1005 = vpack.c.b16 %v947, %v946
    %v1006 = vpack.c.b16 %v949, %v948
    %v1007 = vpack.c.b16 %v951, %v950
    %v1008 = vpack.c.b16 %v953, %v952
    %v1009 = vpack.c.b16 %v955, %v954
    %v1010 = vpack.c.b16 %v957, %v956
    %v1011 = vpack.c.b16 %v959, %v958
    %v1012 = vpack.c.b16 %v961, %v960
    %v1013 = vpack.c.b16 %v963, %v962
    %v1014 = vpack.c.b16 %v965, %v964
    %vm1064 = vcmask 130048
    %v1066 = vsel %vm1064, %v670, 0
    %1068 = vmatprep.subr.bf16.mxu0 0
    %1069 = vmatpush1.bf16.msra.mxu0 %v973
    %1070 = vmatprep.subr.bf16.mxu0 0
    %1071 = vmatpush1.bf16.msra.mxu0 %v972
    %1072 = vmatprep.subr.bf16.mxu0 0
    %1073 = vmatpush1.bf16.msra.mxu0 %v971
    %1074 = vmatprep.subr.bf16.mxu0 0
    %1075 = vmatpush1.bf16.msra.mxu0 %v970
    %1076 = vmatprep.subr.bf16.mxu0 0
    %1077 = vmatpush1.bf16.msra.mxu0 %v969
    %1078 = vmatprep.subr.bf16.mxu0 0
    %1079 = vmatpush1.bf16.msra.mxu0 %v968
    %1080 = vmatprep.subr.bf16.mxu0 0
    %1081 = vmatpush1.bf16.msra.mxu0 %v967
    %1082 = vmatprep.subr.bf16.mxu0 0
    %1083 = vmatpush1.bf16.msra.mxu0 %v966
    %1084 = vmatprep.subr.bf16.mxu0 0
    %1085 = vmatpush2.bf16.msra.mxu0 %v981
    %1086 = vmatprep.subr.bf16.mxu0 0
    %1087 = vmatpush2.bf16.msra.mxu0 %v980
    %1088 = vmatprep.subr.bf16.mxu0 0
    %1089 = vmatpush2.bf16.msra.mxu0 %v979
    %1090 = vmatprep.subr.bf16.mxu0 0
    %1091 = vmatpush2.bf16.msra.mxu0 %v978
    %1092 = vmatprep.subr.bf16.mxu0 0
    %1093 = vmatpush2.bf16.msra.mxu0 %v977
    %1094 = vmatprep.subr.bf16.mxu0 0
    %1095 = vmatpush2.bf16.msra.mxu0 %v976
    %1096 = vmatprep.subr.bf16.mxu0 0
    %1097 = vmatpush2.bf16.msra.mxu0 %v975
    %1098 = vmatprep.subr.bf16.mxu0 0
    %1099 = vmatpush2.bf16.msra.mxu0 %v974
    %1100 = vmatprep.mubr.bf16.mxu0 %v665
    %1101 = vmatmul.mubr.bf16.gmra.mxu0 %v664
    %v1102 = vpop.f32.mrf.mxu0
    %v1103 = vadd.f32 0.0, %v1102
    %v1104 = vpop.f32.mrf.mxu0
    %v1105 = vpop.f32.mrf.mxu0
    %v1106 = vpop.f32.mrf.mxu0
    %1107 = vdwg.mxu0
    %1108 = vmatprep.subr.bf16.mxu0 0
    %1109 = vmatpush1.bf16.msra.mxu0 %v989
    %1110 = vmatprep.subr.bf16.mxu0 0
    %1111 = vmatpush1.bf16.msra.mxu0 %v988
    %1112 = vmatprep.subr.bf16.mxu0 0
    %1113 = vmatpush1.bf16.msra.mxu0 %v987
    %1114 = vmatprep.subr.bf16.mxu0 0
    %1115 = vmatpush1.bf16.msra.mxu0 %v986
    %1116 = vmatprep.subr.bf16.mxu0 0
    %1117 = vmatpush1.bf16.msra.mxu0 %v985
    %1118 = vmatprep.subr.bf16.mxu0 0
    %1119 = vmatpush1.bf16.msra.mxu0 %v984
    %1120 = vmatprep.subr.bf16.mxu0 0
    %1121 = vmatpush1.bf16.msra.mxu0 %v983
    %1122 = vmatprep.subr.bf16.mxu0 0
    %1123 = vmatpush1.bf16.msra.mxu0 %v982
    %1124 = vmatprep.subr.bf16.mxu0 0
    %1125 = vmatpush2.bf16.msra.mxu0 %v997
    %1126 = vmatprep.subr.bf16.mxu0 0
    %1127 = vmatpush2.bf16.msra.mxu0 %v996
    %1128 = vmatprep.subr.bf16.mxu0 0
    %1129 = vmatpush2.bf16.msra.mxu0 %v995
    %1130 = vmatprep.subr.bf16.mxu0 0
    %1131 = vmatpush2.bf16.msra.mxu0 %v994
    %1132 = vmatprep.subr.bf16.mxu0 0
    %1133 = vmatpush2.bf16.msra.mxu0 %v993
    %1134 = vmatprep.subr.bf16.mxu0 0
    %1135 = vmatpush2.bf16.msra.mxu0 %v992
    %1136 = vmatprep.subr.bf16.mxu0 0
    %1137 = vmatpush2.bf16.msra.mxu0 %v991
    %1138 = vmatprep.subr.bf16.mxu0 0
    %1139 = vmatpush2.bf16.msra.mxu0 %v990
    %1140 = vmatprep.mubr.bf16.mxu0 %v667
    %1141 = vmatmul.mubr.bf16.gmra.mxu0 %v666
    %v1142 = vpop.f32.mrf.mxu0
    %v1143 = vadd.f32 %v1103, %v1142
    %v1144 = vpop.f32.mrf.mxu0
    %v1145 = vpop.f32.mrf.mxu0
    %v1146 = vpop.f32.mrf.mxu0
    %1147 = vdwg.mxu0
    %1148 = vmatprep.subr.bf16.mxu0 0
    %1149 = vmatpush1.bf16.msra.mxu0 %v1005
    %1150 = vmatprep.subr.bf16.mxu0 0
    %1151 = vmatpush1.bf16.msra.mxu0 %v1004
    %1152 = vmatprep.subr.bf16.mxu0 0
    %1153 = vmatpush1.bf16.msra.mxu0 %v1003
    %1154 = vmatprep.subr.bf16.mxu0 0
    %1155 = vmatpush1.bf16.msra.mxu0 %v1002
    %1156 = vmatprep.subr.bf16.mxu0 0
    %1157 = vmatpush1.bf16.msra.mxu0 %v1001
    %1158 = vmatprep.subr.bf16.mxu0 0
    %1159 = vmatpush1.bf16.msra.mxu0 %v1000
    %1160 = vmatprep.subr.bf16.mxu0 0
    %1161 = vmatpush1.bf16.msra.mxu0 %v999
    %1162 = vmatprep.subr.bf16.mxu0 0
    %1163 = vmatpush1.bf16.msra.mxu0 %v998
    %1164 = vmatprep.subr.bf16.mxu0 0
    %1165 = vmatpush2.bf16.msra.mxu0 %v1013
    %1166 = vmatprep.subr.bf16.mxu0 0
    %1167 = vmatpush2.bf16.msra.mxu0 %v1012
    %1168 = vmatprep.subr.bf16.mxu0 0
    %1169 = vmatpush2.bf16.msra.mxu0 %v1011
    %1170 = vmatprep.subr.bf16.mxu0 0
    %1171 = vmatpush2.bf16.msra.mxu0 %v1010
    %1172 = vmatprep.subr.bf16.mxu0 0
    %1173 = vmatpush2.bf16.msra.mxu0 %v1009
    %1174 = vmatprep.subr.bf16.mxu0 0
    %1175 = vmatpush2.bf16.msra.mxu0 %v1008
    %1176 = vmatprep.subr.bf16.mxu0 0
    %1177 = vmatpush2.bf16.msra.mxu0 %v1007
    %1178 = vmatprep.subr.bf16.mxu0 0
    %1179 = vmatpush2.bf16.msra.mxu0 %v1006
    %1180 = vmatprep.mubr.bf16.mxu0 %v669
    %1181 = vmatmul.mubr.bf16.gmra.mxu0 %v668
    %v1182 = vpop.f32.mrf.mxu0
    %v1183 = vadd.f32 %v1143, %v1182
    %v1184 = vpop.f32.mrf.mxu0
    %v1185 = vpop.f32.mrf.mxu0
    %v1186 = vpop.f32.mrf.mxu0
    %1187 = vdwg.mxu0
    %1188 = vmatprep.subr.bf16.mxu0 0
    %1189 = vmatpush1.bf16.msra.mxu0 0
    %1190 = vmatprep.subr.bf16.mxu0 0
    %1191 = vmatpush1.bf16.msra.mxu0 0
    %1192 = vmatprep.subr.bf16.mxu0 0
    %1193 = vmatpush1.bf16.msra.mxu0 0
    %1194 = vmatprep.subr.bf16.mxu0 0
    %1195 = vmatpush1.bf16.msra.mxu0 0
    %1196 = vmatprep.subr.bf16.mxu0 0
    %1197 = vmatpush1.bf16.msra.mxu0 0
    %1198 = vmatprep.subr.bf16.mxu0 0
    %1199 = vmatpush1.bf16.msra.mxu0 0
    %1200 = vmatprep.subr.bf16.mxu0 0
    %1201 = vmatpush1.bf16.msra.mxu0 0
    %1202 = vmatprep.subr.bf16.mxu0 0
    %1203 = vmatpush1.bf16.msra.mxu0 %v1014
    %1204 = vmatprep.subr.bf16.mxu0 0
    %1205 = vmatpush2.bf16.msra.mxu0 0
    %1206 = vmatprep.subr.bf16.mxu0 0
    %1207 = vmatpush2.bf16.msra.mxu0 0
    %1208 = vmatprep.subr.bf16.mxu0 0
    %1209 = vmatpush2.bf16.msra.mxu0 0
    %1210 = vmatprep.subr.bf16.mxu0 0
    %1211 = vmatpush2.bf16.msra.mxu0 0
    %1212 = vmatprep.subr.bf16.mxu0 0
    %1213 = vmatpush2.bf16.msra.mxu0 0
    %1214 = vmatprep.subr.bf16.mxu0 0
    %1215 = vmatpush2.bf16.msra.mxu0 0
    %1216 = vmatprep.subr.bf16.mxu0 0
    %1217 = vmatpush2.bf16.msra.mxu0 0
    %1218 = vmatprep.subr.bf16.mxu0 0
    %1219 = vmatpush2.bf16.msra.mxu0 0
    %1220 = vmatprep.mubr.bf16.mxu0 0
    %1221 = vmatmul.mubr.bf16.gmra.mxu0 %v1066
    %v1222 = vpop.f32.mrf.mxu0
    %v1223 = vadd.f32 %v1183, %v1222
    %v1224 = vpop.f32.mrf.mxu0
    %v1225 = vpop.f32.mrf.mxu0
    %v1226 = vpop.f32.mrf.mxu0
    %1227 = vdwg.mxu0
    %v1326 = vunpack.c.l.b16 %v464
    %v1327 = vunpack.c.l.b16 %v465
    %v1328 = vunpack.c.l.b16 %v466
    %v1329 = vunpack.c.l.b16 %v467
    %v1330 = vunpack.c.l.b16 %v468
    %v1331 = vunpack.c.l.b16 %v469
    %v1332 = vunpack.c.l.b16 %v470
    %v1333 = vunpack.c.l.b16 %v471
    %v1334 = vunpack.c.l.b16 %v472
    %v1335 = vunpack.c.l.b16 %v473
    %v1336 = vunpack.c.l.b16 %v474
    %v1337 = vunpack.c.l.b16 %v475
    %v1338 = vunpack.c.l.b16 %v476
    %v1339 = vunpack.c.l.b16 %v477
    %v1340 = vunpack.c.l.b16 %v478
    %v1341 = vunpack.c.l.b16 %v479
    %v1342 = vunpack.c.l.b16 %v480
    %v1343 = vunpack.c.l.b16 %v481
    %v1344 = vunpack.c.l.b16 %v482
    %v1345 = vunpack.c.l.b16 %v483
    %v1346 = vunpack.c.l.b16 %v484
    %v1347 = vunpack.c.l.b16 %v485
    %v1348 = vunpack.c.l.b16 %v486
    %v1349 = vunpack.c.l.b16 %v487
    %v1350 = vunpack.c.l.b16 %v488
    %v1351 = vunpack.c.l.b16 %v489
    %v1352 = vunpack.c.l.b16 %v490
    %v1353 = vunpack.c.l.b16 %v491
    %v1354 = vunpack.c.l.b16 %v492
    %v1355 = vunpack.c.l.b16 %v493
    %v1356 = vunpack.c.l.b16 %v494
    %v1357 = vunpack.c.l.b16 %v495
    %v1358 = vunpack.c.l.b16 %v496
    %v1359 = vunpack.c.l.b16 %v497
    %v1360 = vunpack.c.l.b16 %v498
    %v1361 = vunpack.c.l.b16 %v499
    %v1362 = vunpack.c.l.b16 %v500
    %v1363 = vunpack.c.l.b16 %v501
    %v1364 = vunpack.c.l.b16 %v502
    %v1365 = vunpack.c.l.b16 %v503
    %v1366 = vunpack.c.l.b16 %v504
    %v1367 = vunpack.c.l.b16 %v505
    %v1368 = vunpack.c.l.b16 %v506
    %v1369 = vunpack.c.l.b16 %v507
    %v1370 = vunpack.c.l.b16 %v508
    %v1371 = vunpack.c.l.b16 %v509
    %v1372 = vunpack.c.l.b16 %v510
    %v1373 = vunpack.c.l.b16 %v511
    %v1374 = vunpack.c.l.b16 %v512
    %v1375 = vunpack.c.l.b16 %v513
    %v1376 = vunpack.c.l.b16 %v514
    %v1377 = vunpack.c.l.b16 %v515
    %v1378 = vunpack.c.l.b16 %v516
    %v1379 = vunpack.c.l.b16 %v517
    %v1380 = vunpack.c.l.b16 %v518
    %v1381 = vunpack.c.l.b16 %v519
    %v1382 = vunpack.c.l.b16 %v520
    %v1383 = vunpack.c.l.b16 %v521
    %v1384 = vunpack.c.l.b16 %v522
    %v1385 = vunpack.c.l.b16 %v523
    %v1386 = vunpack.c.l.b16 %v524
    %v1387 = vunpack.c.l.b16 %v525
    %v1388 = vunpack.c.l.b16 %v526
    %v1389 = vunpack.c.l.b16 %v527
    %v1390 = vunpack.c.l.b16 %v528
    %v1391 = vunpack.c.l.b16 %v529
    %v1392 = vunpack.c.l.b16 %v530
    %v1393 = vunpack.c.l.b16 %v531
    %v1394 = vunpack.c.l.b16 %v532
    %v1395 = vunpack.c.l.b16 %v533
    %v1396 = vunpack.c.l.b16 %v534
    %v1397 = vunpack.c.l.b16 %v535
    %v1398 = vunpack.c.l.b16 %v536
    %v1399 = vunpack.c.l.b16 %v537
    %v1400 = vunpack.c.l.b16 %v538
    %v1401 = vunpack.c.l.b16 %v539
    %v1402 = vunpack.c.l.b16 %v540
    %v1403 = vunpack.c.l.b16 %v541
    %v1404 = vunpack.c.l.b16 %v542
    %v1405 = vunpack.c.l.b16 %v543
    %v1406 = vunpack.c.l.b16 %v544
    %v1407 = vunpack.c.l.b16 %v545
    %v1408 = vunpack.c.l.b16 %v546
    %v1409 = vunpack.c.l.b16 %v547
    %v1410 = vunpack.c.l.b16 %v548
    %v1411 = vunpack.c.l.b16 %v549
    %v1412 = vunpack.c.l.b16 %v550
    %v1413 = vunpack.c.l.b16 %v551
    %v1414 = vunpack.c.l.b16 %v552
    %v1415 = vunpack.c.l.b16 %v553
    %v1416 = vunpack.c.l.b16 %v554
    %v1417 = vunpack.c.l.b16 %v555
    %v1418 = vunpack.c.l.b16 %v556
    %v1419 = vunpack.c.l.b16 %v557
    %v1420 = vunpack.c.l.b16 %v558
    %v1421 = vunpack.c.l.b16 %v559
    %v1422 = vunpack.c.l.b16 %v560
    %v1423 = vunpack.c.l.b16 %v561
    %v1424 = vpack.c.b16 %v1327, %v1326
    %v1425 = vpack.c.b16 %v1329, %v1328
    %v1426 = vpack.c.b16 %v1331, %v1330
    %v1427 = vpack.c.b16 %v1333, %v1332
    %v1428 = vpack.c.b16 %v1335, %v1334
    %v1429 = vpack.c.b16 %v1337, %v1336
    %v1430 = vpack.c.b16 %v1339, %v1338
    %v1431 = vpack.c.b16 %v1341, %v1340
    %v1432 = vpack.c.b16 %v1343, %v1342
    %v1433 = vpack.c.b16 %v1345, %v1344
    %v1434 = vpack.c.b16 %v1347, %v1346
    %v1435 = vpack.c.b16 %v1349, %v1348
    %v1436 = vpack.c.b16 %v1351, %v1350
    %v1437 = vpack.c.b16 %v1353, %v1352
    %v1438 = vpack.c.b16 %v1355, %v1354
    %v1439 = vpack.c.b16 %v1357, %v1356
    %v1440 = vpack.c.b16 %v1359, %v1358
    %v1441 = vpack.c.b16 %v1361, %v1360
    %v1442 = vpack.c.b16 %v1363, %v1362
    %v1443 = vpack.c.b16 %v1365, %v1364
    %v1444 = vpack.c.b16 %v1367, %v1366
    %v1445 = vpack.c.b16 %v1369, %v1368
    %v1446 = vpack.c.b16 %v1371, %v1370
    %v1447 = vpack.c.b16 %v1373, %v1372
    %v1448 = vpack.c.b16 %v1375, %v1374
    %v1449 = vpack.c.b16 %v1377, %v1376
    %v1450 = vpack.c.b16 %v1379, %v1378
    %v1451 = vpack.c.b16 %v1381, %v1380
    %v1452 = vpack.c.b16 %v1383, %v1382
    %v1453 = vpack.c.b16 %v1385, %v1384
    %v1454 = vpack.c.b16 %v1387, %v1386
    %v1455 = vpack.c.b16 %v1389, %v1388
    %v1456 = vpack.c.b16 %v1391, %v1390
    %v1457 = vpack.c.b16 %v1393, %v1392
    %v1458 = vpack.c.b16 %v1395, %v1394
    %v1459 = vpack.c.b16 %v1397, %v1396
    %v1460 = vpack.c.b16 %v1399, %v1398
    %v1461 = vpack.c.b16 %v1401, %v1400
    %v1462 = vpack.c.b16 %v1403, %v1402
    %v1463 = vpack.c.b16 %v1405, %v1404
    %v1464 = vpack.c.b16 %v1407, %v1406
    %v1465 = vpack.c.b16 %v1409, %v1408
    %v1466 = vpack.c.b16 %v1411, %v1410
    %v1467 = vpack.c.b16 %v1413, %v1412
    %v1468 = vpack.c.b16 %v1415, %v1414
    %v1469 = vpack.c.b16 %v1417, %v1416
    %v1470 = vpack.c.b16 %v1419, %v1418
    %v1471 = vpack.c.b16 %v1421, %v1420
    %v1472 = vpack.c.b16 %v1423, %v1422
    %v1523 = vsel %vm1064, %v463, 0
    %1525 = vmatprep.subr.bf16.mxu0 0
    %1526 = vmatpush1.bf16.msra.mxu0 %v1431
    %1527 = vmatprep.subr.bf16.mxu0 0
    %1528 = vmatpush1.bf16.msra.mxu0 %v1430
    %1529 = vmatprep.subr.bf16.mxu0 0
    %1530 = vmatpush1.bf16.msra.mxu0 %v1429
    %1531 = vmatprep.subr.bf16.mxu0 0
    %1532 = vmatpush1.bf16.msra.mxu0 %v1428
    %1533 = vmatprep.subr.bf16.mxu0 0
    %1534 = vmatpush1.bf16.msra.mxu0 %v1427
    %1535 = vmatprep.subr.bf16.mxu0 0
    %1536 = vmatpush1.bf16.msra.mxu0 %v1426
    %1537 = vmatprep.subr.bf16.mxu0 0
    %1538 = vmatpush1.bf16.msra.mxu0 %v1425
    %1539 = vmatprep.subr.bf16.mxu0 0
    %1540 = vmatpush1.bf16.msra.mxu0 %v1424
    %1541 = vmatprep.subr.bf16.mxu0 0
    %1542 = vmatpush2.bf16.msra.mxu0 %v1439
    %1543 = vmatprep.subr.bf16.mxu0 0
    %1544 = vmatpush2.bf16.msra.mxu0 %v1438
    %1545 = vmatprep.subr.bf16.mxu0 0
    %1546 = vmatpush2.bf16.msra.mxu0 %v1437
    %1547 = vmatprep.subr.bf16.mxu0 0
    %1548 = vmatpush2.bf16.msra.mxu0 %v1436
    %1549 = vmatprep.subr.bf16.mxu0 0
    %1550 = vmatpush2.bf16.msra.mxu0 %v1435
    %1551 = vmatprep.subr.bf16.mxu0 0
    %1552 = vmatpush2.bf16.msra.mxu0 %v1434
    %1553 = vmatprep.subr.bf16.mxu0 0
    %1554 = vmatpush2.bf16.msra.mxu0 %v1433
    %1555 = vmatprep.subr.bf16.mxu0 0
    %1556 = vmatpush2.bf16.msra.mxu0 %v1432
    %1557 = vmatprep.mubr.bf16.mxu0 %v458
    %1558 = vmatmul.mubr.bf16.gmra.mxu0 %v457
    %v1559 = vpop.f32.mrf.mxu0
    %v1560 = vadd.f32 %v1223, %v1559
    %v1561 = vpop.f32.mrf.mxu0
    %v1562 = vpop.f32.mrf.mxu0
    %v1563 = vpop.f32.mrf.mxu0
    %1564 = vdwg.mxu0
    %1565 = vmatprep.subr.bf16.mxu0 0
    %1566 = vmatpush1.bf16.msra.mxu0 %v1447
    %1567 = vmatprep.subr.bf16.mxu0 0
    %1568 = vmatpush1.bf16.msra.mxu0 %v1446
    %1569 = vmatprep.subr.bf16.mxu0 0
    %1570 = vmatpush1.bf16.msra.mxu0 %v1445
    %1571 = vmatprep.subr.bf16.mxu0 0
    %1572 = vmatpush1.bf16.msra.mxu0 %v1444
    %1573 = vmatprep.subr.bf16.mxu0 0
    %1574 = vmatpush1.bf16.msra.mxu0 %v1443
    %1575 = vmatprep.subr.bf16.mxu0 0
    %1576 = vmatpush1.bf16.msra.mxu0 %v1442
    %1577 = vmatprep.subr.bf16.mxu0 0
    %1578 = vmatpush1.bf16.msra.mxu0 %v1441
    %1579 = vmatprep.subr.bf16.mxu0 0
    %1580 = vmatpush1.bf16.msra.mxu0 %v1440
    %1581 = vmatprep.subr.bf16.mxu0 0
    %1582 = vmatpush2.bf16.msra.mxu0 %v1455
    %1583 = vmatprep.subr.bf16.mxu0 0
    %1584 = vmatpush2.bf16.msra.mxu0 %v1454
    %1585 = vmatprep.subr.bf16.mxu0 0
    %1586 = vmatpush2.bf16.msra.mxu0 %v1453
    %1587 = vmatprep.subr.bf16.mxu0 0
    %1588 = vmatpush2.bf16.msra.mxu0 %v1452
    %1589 = vmatprep.subr.bf16.mxu0 0
    %1590 = vmatpush2.bf16.msra.mxu0 %v1451
    %1591 = vmatprep.subr.bf16.mxu0 0
    %1592 = vmatpush2.bf16.msra.mxu0 %v1450
    %1593 = vmatprep.subr.bf16.mxu0 0
    %1594 = vmatpush2.bf16.msra.mxu0 %v1449
    %1595 = vmatprep.subr.bf16.mxu0 0
    %1596 = vmatpush2.bf16.msra.mxu0 %v1448
    %1597 = vmatprep.mubr.bf16.mxu0 %v460
    %1598 = vmatmul.mubr.bf16.gmra.mxu0 %v459
    %v1599 = vpop.f32.mrf.mxu0
    %v1600 = vadd.f32 %v1560, %v1599
    %v1601 = vpop.f32.mrf.mxu0
    %v1602 = vpop.f32.mrf.mxu0
    %v1603 = vpop.f32.mrf.mxu0
    %1604 = vdwg.mxu0
    %1605 = vmatprep.subr.bf16.mxu0 0
    %1606 = vmatpush1.bf16.msra.mxu0 %v1463
    %1607 = vmatprep.subr.bf16.mxu0 0
    %1608 = vmatpush1.bf16.msra.mxu0 %v1462
    %1609 = vmatprep.subr.bf16.mxu0 0
    %1610 = vmatpush1.bf16.msra.mxu0 %v1461
    %1611 = vmatprep.subr.bf16.mxu0 0
    %1612 = vmatpush1.bf16.msra.mxu0 %v1460
    %1613 = vmatprep.subr.bf16.mxu0 0
    %1614 = vmatpush1.bf16.msra.mxu0 %v1459
    %1615 = vmatprep.subr.bf16.mxu0 0
    %1616 = vmatpush1.bf16.msra.mxu0 %v1458
    %1617 = vmatprep.subr.bf16.mxu0 0
    %1618 = vmatpush1.bf16.msra.mxu0 %v1457
    %1619 = vmatprep.subr.bf16.mxu0 0
    %1620 = vmatpush1.bf16.msra.mxu0 %v1456
    %1621 = vmatprep.subr.bf16.mxu0 0
    %1622 = vmatpush2.bf16.msra.mxu0 %v1471
    %1623 = vmatprep.subr.bf16.mxu0 0
    %1624 = vmatpush2.bf16.msra.mxu0 %v1470
    %1625 = vmatprep.subr.bf16.mxu0 0
    %1626 = vmatpush2.bf16.msra.mxu0 %v1469
    %1627 = vmatprep.subr.bf16.mxu0 0
    %1628 = vmatpush2.bf16.msra.mxu0 %v1468
    %1629 = vmatprep.subr.bf16.mxu0 0
    %1630 = vmatpush2.bf16.msra.mxu0 %v1467
    %1631 = vmatprep.subr.bf16.mxu0 0
    %1632 = vmatpush2.bf16.msra.mxu0 %v1466
    %1633 = vmatprep.subr.bf16.mxu0 0
    %1634 = vmatpush2.bf16.msra.mxu0 %v1465
    %1635 = vmatprep.subr.bf16.mxu0 0
    %1636 = vmatpush2.bf16.msra.mxu0 %v1464
    %1637 = vmatprep.mubr.bf16.mxu0 %v462
    %1638 = vmatmul.mubr.bf16.gmra.mxu0 %v461
    %v1639 = vpop.f32.mrf.mxu0
    %v1640 = vadd.f32 %v1600, %v1639
    %v1641 = vpop.f32.mrf.mxu0
    %v1642 = vpop.f32.mrf.mxu0
    %v1643 = vpop.f32.mrf.mxu0
    %1644 = vdwg.mxu0
    %1645 = vmatprep.subr.bf16.mxu0 0
    %1646 = vmatpush1.bf16.msra.mxu0 0
    %1647 = vmatprep.subr.bf16.mxu0 0
    %1648 = vmatpush1.bf16.msra.mxu0 0
    %1649 = vmatprep.subr.bf16.mxu0 0
    %1650 = vmatpush1.bf16.msra.mxu0 0
    %1651 = vmatprep.subr.bf16.mxu0 0
    %1652 = vmatpush1.bf16.msra.mxu0 0
    %1653 = vmatprep.subr.bf16.mxu0 0
    %1654 = vmatpush1.bf16.msra.mxu0 0
    %1655 = vmatprep.subr.bf16.mxu0 0
    %1656 = vmatpush1.bf16.msra.mxu0 0
    %1657 = vmatprep.subr.bf16.mxu0 0
    %1658 = vmatpush1.bf16.msra.mxu0 0
    %1659 = vmatprep.subr.bf16.mxu0 0
    %1660 = vmatpush1.bf16.msra.mxu0 %v1472
    %1661 = vmatprep.subr.bf16.mxu0 0
    %1662 = vmatpush2.bf16.msra.mxu0 0
    %1663 = vmatprep.subr.bf16.mxu0 0
    %1664 = vmatpush2.bf16.msra.mxu0 0
    %1665 = vmatprep.subr.bf16.mxu0 0
    %1666 = vmatpush2.bf16.msra.mxu0 0
    %1667 = vmatprep.subr.bf16.mxu0 0
    %1668 = vmatpush2.bf16.msra.mxu0 0
    %1669 = vmatprep.subr.bf16.mxu0 0
    %1670 = vmatpush2.bf16.msra.mxu0 0
    %1671 = vmatprep.subr.bf16.mxu0 0
    %1672 = vmatpush2.bf16.msra.mxu0 0
    %1673 = vmatprep.subr.bf16.mxu0 0
    %1674 = vmatpush2.bf16.msra.mxu0 0
    %1675 = vmatprep.subr.bf16.mxu0 0
    %1676 = vmatpush2.bf16.msra.mxu0 0
    %1677 = vmatprep.mubr.bf16.mxu0 0
    %1678 = vmatmul.mubr.bf16.gmra.mxu0 %v1523
    %v1679 = vpop.f32.mrf.mxu0
    %v1680 = vadd.f32 %v1640, %v1679
    %v1681 = vpop.f32.mrf.mxu0
    %v1682 = vpop.f32.mrf.mxu0
    %v1683 = vpop.f32.mrf.mxu0
    %1684 = vdwg.mxu0
    %s1685 = sld [smem:[#allocation9 + $0x100]]
    %p1687 = scmp.ne.f32.partialorder %s1685, %s1685
    %s1688 = sshrl.u32 %s1685, 16
    %s1689 = sand.u32 %s1688, 1
    %s1690 = sadd.s32 32767, %s1689
    %s1691 = sadd.s32 %s1685, %s1690
    %s1692 = sand.u32 %s1691, 4294901760
    %s1693 = scalar_select %p1687, 2143289344, %s1692
    %s1695 = sshrl.u32 %s1693, 16
    %s1696 = sshll.u32 %s1695, 16
    %s1697 = sor.u32 %s1695, %s1696
    %v1698 = vstv %s1697
    %v1700 = vmul.bf16 %v1698, %v246
    %v1701 = vmul.bf16 %v1698, %v247
    %v1702 = vmul.bf16 %v1698, %v248
    %v1703 = vmul.bf16 %v1698, %v249
    %v1704 = vmul.bf16 %v1698, %v250
    %v1705 = vmul.bf16 %v1698, %v251
    %v1706 = vmul.bf16 %v1698, %v252
    %s1707 = sld [smem:[#allocation9 + $0x101]]
    %p1709 = scmp.ne.f32.partialorder %s1707, %s1707
    %s1710 = sshrl.u32 %s1707, 16
    %s1711 = sand.u32 %s1710, 1
    %s1712 = sadd.s32 32767, %s1711
    %s1713 = sadd.s32 %s1707, %s1712
    %s1714 = sand.u32 %s1713, 4294901760
    %s1715 = scalar_select %p1709, 2143289344, %s1714
    %s1717 = sshrl.u32 %s1715, 16
    %s1718 = sshll.u32 %s1717, 16
    %s1719 = sor.u32 %s1717, %s1718
    %v1720 = vstv %s1719
    %v1722 = vmul.bf16 %v1720, %v297
    %v1723 = vmul.bf16 %v1720, %v298
    %v1724 = vmul.bf16 %v1720, %v299
    %v1725 = vmul.bf16 %v1720, %v300
    %v1726 = vmul.bf16 %v1720, %v301
    %v1727 = vmul.bf16 %v1720, %v302
    %v1728 = vmul.bf16 %v1720, %v303
    %v1729 = vadd.bf16 %v1700, %v1722
    %v1730 = vadd.bf16 %v1701, %v1723
    %v1731 = vadd.bf16 %v1702, %v1724
    %v1732 = vadd.bf16 %v1703, %v1725
    %v1733 = vadd.bf16 %v1704, %v1726
    %v1734 = vadd.bf16 %v1705, %v1727
    %v1735 = vadd.bf16 %v1706, %v1728
    %s1736 = sld [smem:[#allocation9 + $0x102]]
    %p1738 = scmp.ne.f32.partialorder %s1736, %s1736
    %s1739 = sshrl.u32 %s1736, 16
    %s1740 = sand.u32 %s1739, 1
    %s1741 = sadd.s32 32767, %s1740
    %s1742 = sadd.s32 %s1736, %s1741
    %s1743 = sand.u32 %s1742, 4294901760
    %s1744 = scalar_select %p1738, 2143289344, %s1743
    %s1746 = sshrl.u32 %s1744, 16
    %s1747 = sshll.u32 %s1746, 16
    %s1748 = sor.u32 %s1746, %s1747
    %v1749 = vstv %s1748
    %v1751 = vmul.bf16 %v1749, %v348
    %v1752 = vmul.bf16 %v1749, %v349
    %v1753 = vmul.bf16 %v1749, %v350
    %v1754 = vmul.bf16 %v1749, %v351
    %v1755 = vmul.bf16 %v1749, %v352
    %v1756 = vmul.bf16 %v1749, %v353
    %v1757 = vmul.bf16 %v1749, %v354
    %v1758 = vadd.bf16 %v1729, %v1751
    %v1759 = vadd.bf16 %v1730, %v1752
    %v1760 = vadd.bf16 %v1731, %v1753
    %v1761 = vadd.bf16 %v1732, %v1754
    %v1762 = vadd.bf16 %v1733, %v1755
    %v1763 = vadd.bf16 %v1734, %v1756
    %v1764 = vadd.bf16 %v1735, %v1757
    %s1765 = sld [smem:[#allocation10 + $0x2]]
    %p1767 = scmp.ne.f32.partialorder %s1765, %s1765
    %s1768 = sshrl.u32 %s1765, 16
    %s1769 = sand.u32 %s1768, 1
    %s1770 = sadd.s32 32767, %s1769
    %s1771 = sadd.s32 %s1765, %s1770
    %s1772 = sand.u32 %s1771, 4294901760
    %s1773 = scalar_select %p1767, 2143289344, %s1772
    %s1775 = sshrl.u32 %s1773, 16
    %s1776 = sshll.u32 %s1775, 16
    %s1777 = sor.u32 %s1775, %s1776
    %v1778 = vstv %s1777
    %v1780 = vadd.bf16 %v1758, %v1778
    %v1781 = vadd.bf16 %v1759, %v1778
    %v1782 = vadd.bf16 %v1760, %v1778
    %v1783 = vadd.bf16 %v1761, %v1778
    %v1784 = vadd.bf16 %v1762, %v1778
    %v1785 = vadd.bf16 %v1763, %v1778
    %v1786 = vadd.bf16 %v1764, %v1778
    %v1787 = vmax.bf16 %v1780, 0
    %v1788 = vmax.bf16 %v1781, 0
    %v1789 = vmax.bf16 %v1782, 0
    %v1790 = vmax.bf16 %v1783, 0
    %v1791 = vmax.bf16 %v1784, 0
    %v1792 = vmax.bf16 %v1785, 0
    %v1793 = vmax.bf16 %v1786, 0
    %s1794 = scalar_lea.vmem [#allocation12], 784
    %v1795 = vld [vmem:[%s1794] sm:$0xf]
    %v1796 = vld [vmem:[%s1794 + $0x4] sm:$0xf]
    %v1797 = vld [vmem:[%s1794 + $0x8] sm:$0xf]
    %v1798 = vld [vmem:[%s1794 + $0xc] sm:$0xf]
    %v1799 = vld [vmem:[%s1794 + $0x10] sm:$0xf]
    %v1800 = vld [vmem:[%s1794 + $0x14] sm:$0xf]
    %v1801 = vld [vmem:[%s1794 + $0x18] sm:$0xf]
    %v1802 = vld [vmem:[%s1794 + $0x1c] sm:$0xf]
    %v1803 = vld [vmem:[%s1794 + $0x20] sm:$0xf]
    %v1804 = vld [vmem:[%s1794 + $0x24] sm:$0xf]
    %v1805 = vld [vmem:[%s1794 + $0x28] sm:$0xf]
    %v1806 = vld [vmem:[%s1794 + $0x2c] sm:$0xf]
    %v1807 = vld [vmem:[%s1794 + $0x30] sm:$0xf]
    %v1808 = vld [vmem:[%s1794 + $0x34] sm:$0xf]
    %v1809 = vld [vmem:[%s1794 + $0x38] sm:$0xf]
    %v1810 = vld [vmem:[%s1794 + $0x3c] sm:$0xf]
    %v1811 = vld [vmem:[%s1794 + $0x40] sm:$0xf]
    %v1812 = vld [vmem:[%s1794 + $0x44] sm:$0xf]
    %v1813 = vld [vmem:[%s1794 + $0x48] sm:$0xf]
    %v1814 = vld [vmem:[%s1794 + $0x4c] sm:$0xf]
    %v1815 = vld [vmem:[%s1794 + $0x50] sm:$0xf]
    %v1816 = vld [vmem:[%s1794 + $0x54] sm:$0xf]
    %v1817 = vld [vmem:[%s1794 + $0x58] sm:$0xf]
    %v1818 = vld [vmem:[%s1794 + $0x5c] sm:$0xf]
    %v1819 = vld [vmem:[%s1794 + $0x60] sm:$0xf]
    %v1820 = vld [vmem:[%s1794 + $0x64] sm:$0xf]
    %v1821 = vld [vmem:[%s1794 + $0x68] sm:$0xf]
    %v1822 = vld [vmem:[%s1794 + $0x6c] sm:$0xf]
    %v1823 = vld [vmem:[%s1794 + $0x70] sm:$0xf]
    %v1824 = vld [vmem:[%s1794 + $0x74] sm:$0xf]
    %v1825 = vld [vmem:[%s1794 + $0x78] sm:$0xf]
    %v1826 = vld [vmem:[%s1794 + $0x7c] sm:$0xf]
    %v1827 = vld [vmem:[%s1794 + $0x80] sm:$0xf]
    %v1828 = vld [vmem:[%s1794 + $0x84] sm:$0xf]
    %v1829 = vld [vmem:[%s1794 + $0x88] sm:$0xf]
    %v1830 = vld [vmem:[%s1794 + $0x8c] sm:$0xf]
    %v1831 = vld [vmem:[%s1794 + $0x90] sm:$0xf]
    %v1832 = vld [vmem:[%s1794 + $0x94] sm:$0xf]
    %v1833 = vld [vmem:[%s1794 + $0x98] sm:$0xf]
    %v1834 = vld [vmem:[%s1794 + $0x9c] sm:$0xf]
    %v1835 = vld [vmem:[%s1794 + $0xa0] sm:$0xf]
    %v1836 = vld [vmem:[%s1794 + $0xa4] sm:$0xf]
    %v1837 = vld [vmem:[%s1794 + $0xa8] sm:$0xf]
    %v1838 = vld [vmem:[%s1794 + $0xac] sm:$0xf]
    %v1839 = vld [vmem:[%s1794 + $0xb0] sm:$0xf]
    %v1840 = vld [vmem:[%s1794 + $0xb4] sm:$0xf]
    %v1841 = vld [vmem:[%s1794 + $0xb8] sm:$0xf]
    %v1842 = vld [vmem:[%s1794 + $0xbc] sm:$0xf]
    %v1843 = vld [vmem:[%s1794 + $0xc0] sm:$0xf]
    %v1844 = vld [vmem:[%s1794 + $0xc4] sm:$0xf]
    %v1845 = vld [vmem:[%s1794 + $0xc8] sm:$0xf]
    %v1846 = vld [vmem:[%s1794 + $0xcc] sm:$0xf]
    %v1847 = vld [vmem:[%s1794 + $0xd0] sm:$0xf]
    %v1848 = vld [vmem:[%s1794 + $0xd4] sm:$0xf]
    %v1849 = vld [vmem:[%s1794 + $0xd8] sm:$0xf]
    %v1850 = vld [vmem:[%s1794 + $0xdc] sm:$0xf]
    %v1851 = vld [vmem:[%s1794 + $0xe0] sm:$0xf]
    %v1852 = vld [vmem:[%s1794 + $0xe4] sm:$0xf]
    %v1853 = vld [vmem:[%s1794 + $0xe8] sm:$0xf]
    %v1854 = vld [vmem:[%s1794 + $0xec] sm:$0xf]
    %v1855 = vld [vmem:[%s1794 + $0xf0] sm:$0xf]
    %v1856 = vld [vmem:[%s1794 + $0xf4] sm:$0xf]
    %v1857 = vld [vmem:[%s1794 + $0xf8] sm:$0xf]
    %v1858 = vld [vmem:[%s1794 + $0xfc] sm:$0xf]
    %v1859 = vld [vmem:[%s1794 + $0x100] sm:$0xf]
    %v1860 = vld [vmem:[%s1794 + $0x104] sm:$0xf]
    %v1861 = vld [vmem:[%s1794 + $0x108] sm:$0xf]
    %v1862 = vld [vmem:[%s1794 + $0x10c] sm:$0xf]
    %v1863 = vld [vmem:[%s1794 + $0x110] sm:$0xf]
    %v1864 = vld [vmem:[%s1794 + $0x114] sm:$0xf]
    %v1865 = vld [vmem:[%s1794 + $0x118] sm:$0xf]
    %v1866 = vld [vmem:[%s1794 + $0x11c] sm:$0xf]
    %v1867 = vld [vmem:[%s1794 + $0x120] sm:$0xf]
    %v1868 = vld [vmem:[%s1794 + $0x124] sm:$0xf]
    %v1869 = vld [vmem:[%s1794 + $0x128] sm:$0xf]
    %v1870 = vld [vmem:[%s1794 + $0x12c] sm:$0xf]
    %v1871 = vld [vmem:[%s1794 + $0x130] sm:$0xf]
    %v1872 = vld [vmem:[%s1794 + $0x134] sm:$0xf]
    %v1873 = vld [vmem:[%s1794 + $0x138] sm:$0xf]
    %v1874 = vld [vmem:[%s1794 + $0x13c] sm:$0xf]
    %v1875 = vld [vmem:[%s1794 + $0x140] sm:$0xf]
    %v1876 = vld [vmem:[%s1794 + $0x144] sm:$0xf]
    %v1877 = vld [vmem:[%s1794 + $0x148] sm:$0xf]
    %v1878 = vld [vmem:[%s1794 + $0x14c] sm:$0xf]
    %v1879 = vld [vmem:[%s1794 + $0x150] sm:$0xf]
    %v1880 = vld [vmem:[%s1794 + $0x154] sm:$0xf]
    %v1881 = vld [vmem:[%s1794 + $0x158] sm:$0xf]
    %v1882 = vld [vmem:[%s1794 + $0x15c] sm:$0xf]
    %v1883 = vld [vmem:[%s1794 + $0x160] sm:$0xf]
    %v1884 = vld [vmem:[%s1794 + $0x164] sm:$0xf]
    %v1885 = vld [vmem:[%s1794 + $0x168] sm:$0xf]
    %v1886 = vld [vmem:[%s1794 + $0x16c] sm:$0xf]
    %v1887 = vld [vmem:[%s1794 + $0x170] sm:$0xf]
    %v1888 = vld [vmem:[%s1794 + $0x174] sm:$0xf]
    %v1889 = vld [vmem:[%s1794 + $0x178] sm:$0xf]
    %v1890 = vld [vmem:[%s1794 + $0x17c] sm:$0xf]
    %v1891 = vld [vmem:[%s1794 + $0x180] sm:$0xf]
    %v1892 = vld [vmem:[%s1794 + $0x184] sm:$0xf]
    %v1991 = vunpack.c.l.b16 %v1795
    %v1992 = vunpack.c.l.b16 %v1796
    %v1993 = vunpack.c.l.b16 %v1797
    %v1994 = vunpack.c.l.b16 %v1798
    %v1995 = vunpack.c.l.b16 %v1799
    %v1996 = vunpack.c.l.b16 %v1800
    %v1997 = vunpack.c.l.b16 %v1801
    %v1998 = vunpack.c.l.b16 %v1802
    %v1999 = vunpack.c.l.b16 %v1803
    %v2000 = vunpack.c.l.b16 %v1804
    %v2001 = vunpack.c.l.b16 %v1805
    %v2002 = vunpack.c.l.b16 %v1806
    %v2003 = vunpack.c.l.b16 %v1807
    %v2004 = vunpack.c.l.b16 %v1808
    %v2005 = vunpack.c.l.b16 %v1809
    %v2006 = vunpack.c.l.b16 %v1810
    %v2007 = vunpack.c.l.b16 %v1811
    %v2008 = vunpack.c.l.b16 %v1812
    %v2009 = vunpack.c.l.b16 %v1813
    %v2010 = vunpack.c.l.b16 %v1814
    %v2011 = vunpack.c.l.b16 %v1815
    %v2012 = vunpack.c.l.b16 %v1816
    %v2013 = vunpack.c.l.b16 %v1817
    %v2014 = vunpack.c.l.b16 %v1818
    %v2015 = vunpack.c.l.b16 %v1819
    %v2016 = vunpack.c.l.b16 %v1820
    %v2017 = vunpack.c.l.b16 %v1821
    %v2018 = vunpack.c.l.b16 %v1822
    %v2019 = vunpack.c.l.b16 %v1823
    %v2020 = vunpack.c.l.b16 %v1824
    %v2021 = vunpack.c.l.b16 %v1825
    %v2022 = vunpack.c.l.b16 %v1826
    %v2023 = vunpack.c.l.b16 %v1827
    %v2024 = vunpack.c.l.b16 %v1828
    %v2025 = vunpack.c.l.b16 %v1829
    %v2026 = vunpack.c.l.b16 %v1830
    %v2027 = vunpack.c.l.b16 %v1831
    %v2028 = vunpack.c.l.b16 %v1832
    %v2029 = vunpack.c.l.b16 %v1833
    %v2030 = vunpack.c.l.b16 %v1834
    %v2031 = vunpack.c.l.b16 %v1835
    %v2032 = vunpack.c.l.b16 %v1836
    %v2033 = vunpack.c.l.b16 %v1837
    %v2034 = vunpack.c.l.b16 %v1838
    %v2035 = vunpack.c.l.b16 %v1839
    %v2036 = vunpack.c.l.b16 %v1840
    %v2037 = vunpack.c.l.b16 %v1841
    %v2038 = vunpack.c.l.b16 %v1842
    %v2039 = vunpack.c.l.b16 %v1843
    %v2040 = vunpack.c.l.b16 %v1844
    %v2041 = vunpack.c.l.b16 %v1845
    %v2042 = vunpack.c.l.b16 %v1846
    %v2043 = vunpack.c.l.b16 %v1847
    %v2044 = vunpack.c.l.b16 %v1848
    %v2045 = vunpack.c.l.b16 %v1849
    %v2046 = vunpack.c.l.b16 %v1850
    %v2047 = vunpack.c.l.b16 %v1851
    %v2048 = vunpack.c.l.b16 %v1852
    %v2049 = vunpack.c.l.b16 %v1853
    %v2050 = vunpack.c.l.b16 %v1854
    %v2051 = vunpack.c.l.b16 %v1855
    %v2052 = vunpack.c.l.b16 %v1856
    %v2053 = vunpack.c.l.b16 %v1857
    %v2054 = vunpack.c.l.b16 %v1858
    %v2055 = vunpack.c.l.b16 %v1859
    %v2056 = vunpack.c.l.b16 %v1860
    %v2057 = vunpack.c.l.b16 %v1861
    %v2058 = vunpack.c.l.b16 %v1862
    %v2059 = vunpack.c.l.b16 %v1863
    %v2060 = vunpack.c.l.b16 %v1864
    %v2061 = vunpack.c.l.b16 %v1865
    %v2062 = vunpack.c.l.b16 %v1866
    %v2063 = vunpack.c.l.b16 %v1867
    %v2064 = vunpack.c.l.b16 %v1868
    %v2065 = vunpack.c.l.b16 %v1869
    %v2066 = vunpack.c.l.b16 %v1870
    %v2067 = vunpack.c.l.b16 %v1871
    %v2068 = vunpack.c.l.b16 %v1872
    %v2069 = vunpack.c.l.b16 %v1873
    %v2070 = vunpack.c.l.b16 %v1874
    %v2071 = vunpack.c.l.b16 %v1875
    %v2072 = vunpack.c.l.b16 %v1876
    %v2073 = vunpack.c.l.b16 %v1877
    %v2074 = vunpack.c.l.b16 %v1878
    %v2075 = vunpack.c.l.b16 %v1879
    %v2076 = vunpack.c.l.b16 %v1880
    %v2077 = vunpack.c.l.b16 %v1881
    %v2078 = vunpack.c.l.b16 %v1882
    %v2079 = vunpack.c.l.b16 %v1883
    %v2080 = vunpack.c.l.b16 %v1884
    %v2081 = vunpack.c.l.b16 %v1885
    %v2082 = vunpack.c.l.b16 %v1886
    %v2083 = vunpack.c.l.b16 %v1887
    %v2084 = vunpack.c.l.b16 %v1888
    %v2085 = vunpack.c.l.b16 %v1889
    %v2086 = vunpack.c.l.b16 %v1890
    %v2087 = vunpack.c.l.b16 %v1891
    %v2088 = vunpack.c.l.b16 %v1892
    %v2089 = vpack.c.b16 %v1992, %v1991
    %v2090 = vpack.c.b16 %v1994, %v1993
    %v2091 = vpack.c.b16 %v1996, %v1995
    %v2092 = vpack.c.b16 %v1998, %v1997
    %v2093 = vpack.c.b16 %v2000, %v1999
    %v2094 = vpack.c.b16 %v2002, %v2001
    %v2095 = vpack.c.b16 %v2004, %v2003
    %v2096 = vpack.c.b16 %v2006, %v2005
    %v2097 = vpack.c.b16 %v2008, %v2007
    %v2098 = vpack.c.b16 %v2010, %v2009
    %v2099 = vpack.c.b16 %v2012, %v2011
    %v2100 = vpack.c.b16 %v2014, %v2013
    %v2101 = vpack.c.b16 %v2016, %v2015
    %v2102 = vpack.c.b16 %v2018, %v2017
    %v2103 = vpack.c.b16 %v2020, %v2019
    %v2104 = vpack.c.b16 %v2022, %v2021
    %v2105 = vpack.c.b16 %v2024, %v2023
    %v2106 = vpack.c.b16 %v2026, %v2025
    %v2107 = vpack.c.b16 %v2028, %v2027
    %v2108 = vpack.c.b16 %v2030, %v2029
    %v2109 = vpack.c.b16 %v2032, %v2031
    %v2110 = vpack.c.b16 %v2034, %v2033
    %v2111 = vpack.c.b16 %v2036, %v2035
    %v2112 = vpack.c.b16 %v2038, %v2037
    %v2113 = vpack.c.b16 %v2040, %v2039
    %v2114 = vpack.c.b16 %v2042, %v2041
    %v2115 = vpack.c.b16 %v2044, %v2043
    %v2116 = vpack.c.b16 %v2046, %v2045
    %v2117 = vpack.c.b16 %v2048, %v2047
    %v2118 = vpack.c.b16 %v2050, %v2049
    %v2119 = vpack.c.b16 %v2052, %v2051
    %v2120 = vpack.c.b16 %v2054, %v2053
    %v2121 = vpack.c.b16 %v2056, %v2055
    %v2122 = vpack.c.b16 %v2058, %v2057
    %v2123 = vpack.c.b16 %v2060, %v2059
    %v2124 = vpack.c.b16 %v2062, %v2061
    %v2125 = vpack.c.b16 %v2064, %v2063
    %v2126 = vpack.c.b16 %v2066, %v2065
    %v2127 = vpack.c.b16 %v2068, %v2067
    %v2128 = vpack.c.b16 %v2070, %v2069
    %v2129 = vpack.c.b16 %v2072, %v2071
    %v2130 = vpack.c.b16 %v2074, %v2073
    %v2131 = vpack.c.b16 %v2076, %v2075
    %v2132 = vpack.c.b16 %v2078, %v2077
    %v2133 = vpack.c.b16 %v2080, %v2079
    %v2134 = vpack.c.b16 %v2082, %v2081
    %v2135 = vpack.c.b16 %v2084, %v2083
    %v2136 = vpack.c.b16 %v2086, %v2085
    %v2137 = vpack.c.b16 %v2088, %v2087
    %v2188 = vsel %vm1064, %v1793, 0
    %2190 = vmatprep.subr.bf16.mxu0 0
    %2191 = vmatpush1.bf16.msra.mxu0 %v2096
    %2192 = vmatprep.subr.bf16.mxu0 0
    %2193 = vmatpush1.bf16.msra.mxu0 %v2095
    %2194 = vmatprep.subr.bf16.mxu0 0
    %2195 = vmatpush1.bf16.msra.mxu0 %v2094
    %2196 = vmatprep.subr.bf16.mxu0 0
    %2197 = vmatpush1.bf16.msra.mxu0 %v2093
    %2198 = vmatprep.subr.bf16.mxu0 0
    %2199 = vmatpush1.bf16.msra.mxu0 %v2092
    %2200 = vmatprep.subr.bf16.mxu0 0
    %2201 = vmatpush1.bf16.msra.mxu0 %v2091
    %2202 = vmatprep.subr.bf16.mxu0 0
    %2203 = vmatpush1.bf16.msra.mxu0 %v2090
    %2204 = vmatprep.subr.bf16.mxu0 0
    %2205 = vmatpush1.bf16.msra.mxu0 %v2089
    %2206 = vmatprep.subr.bf16.mxu0 0
    %2207 = vmatpush2.bf16.msra.mxu0 %v2104
    %2208 = vmatprep.subr.bf16.mxu0 0
    %2209 = vmatpush2.bf16.msra.mxu0 %v2103
    %2210 = vmatprep.subr.bf16.mxu0 0
    %2211 = vmatpush2.bf16.msra.mxu0 %v2102
    %2212 = vmatprep.subr.bf16.mxu0 0
    %2213 = vmatpush2.bf16.msra.mxu0 %v2101
    %2214 = vmatprep.subr.bf16.mxu0 0
    %2215 = vmatpush2.bf16.msra.mxu0 %v2100
    %2216 = vmatprep.subr.bf16.mxu0 0
    %2217 = vmatpush2.bf16.msra.mxu0 %v2099
    %2218 = vmatprep.subr.bf16.mxu0 0
    %2219 = vmatpush2.bf16.msra.mxu0 %v2098
    %2220 = vmatprep.subr.bf16.mxu0 0
    %2221 = vmatpush2.bf16.msra.mxu0 %v2097
    %2222 = vmatprep.mubr.bf16.mxu0 %v1788
    %2223 = vmatmul.mubr.bf16.gmra.mxu0 %v1787
    %v2224 = vpop.f32.mrf.mxu0
    %v2225 = vadd.f32 0.0, %v2224
    %v2226 = vpop.f32.mrf.mxu0
    %v2227 = vpop.f32.mrf.mxu0
    %v2228 = vpop.f32.mrf.mxu0
    %2229 = vdwg.mxu0
    %2230 = vmatprep.subr.bf16.mxu0 0
    %2231 = vmatpush1.bf16.msra.mxu0 %v2112
    %2232 = vmatprep.subr.bf16.mxu0 0
    %2233 = vmatpush1.bf16.msra.mxu0 %v2111
    %2234 = vmatprep.subr.bf16.mxu0 0
    %2235 = vmatpush1.bf16.msra.mxu0 %v2110
    %2236 = vmatprep.subr.bf16.mxu0 0
    %2237 = vmatpush1.bf16.msra.mxu0 %v2109
    %2238 = vmatprep.subr.bf16.mxu0 0
    %2239 = vmatpush1.bf16.msra.mxu0 %v2108
    %2240 = vmatprep.subr.bf16.mxu0 0
    %2241 = vmatpush1.bf16.msra.mxu0 %v2107
    %2242 = vmatprep.subr.bf16.mxu0 0
    %2243 = vmatpush1.bf16.msra.mxu0 %v2106
    %2244 = vmatprep.subr.bf16.mxu0 0
    %2245 = vmatpush1.bf16.msra.mxu0 %v2105
    %2246 = vmatprep.subr.bf16.mxu0 0
    %2247 = vmatpush2.bf16.msra.mxu0 %v2120
    %2248 = vmatprep.subr.bf16.mxu0 0
    %2249 = vmatpush2.bf16.msra.mxu0 %v2119
    %2250 = vmatprep.subr.bf16.mxu0 0
    %2251 = vmatpush2.bf16.msra.mxu0 %v2118
    %2252 = vmatprep.subr.bf16.mxu0 0
    %2253 = vmatpush2.bf16.msra.mxu0 %v2117
    %2254 = vmatprep.subr.bf16.mxu0 0
    %2255 = vmatpush2.bf16.msra.mxu0 %v2116
    %2256 = vmatprep.subr.bf16.mxu0 0
    %2257 = vmatpush2.bf16.msra.mxu0 %v2115
    %2258 = vmatprep.subr.bf16.mxu0 0
    %2259 = vmatpush2.bf16.msra.mxu0 %v2114
    %2260 = vmatprep.subr.bf16.mxu0 0
    %2261 = vmatpush2.bf16.msra.mxu0 %v2113
    %2262 = vmatprep.mubr.bf16.mxu0 %v1790
    %2263 = vmatmul.mubr.bf16.gmra.mxu0 %v1789
    %v2264 = vpop.f32.mrf.mxu0
    %v2265 = vadd.f32 %v2225, %v2264
    %v2266 = vpop.f32.mrf.mxu0
    %v2267 = vpop.f32.mrf.mxu0
    %v2268 = vpop.f32.mrf.mxu0
    %2269 = vdwg.mxu0
    %2270 = vmatprep.subr.bf16.mxu0 0
    %2271 = vmatpush1.bf16.msra.mxu0 %v2128
    %2272 = vmatprep.subr.bf16.mxu0 0
    %2273 = vmatpush1.bf16.msra.mxu0 %v2127
    %2274 = vmatprep.subr.bf16.mxu0 0
    %2275 = vmatpush1.bf16.msra.mxu0 %v2126
    %2276 = vmatprep.subr.bf16.mxu0 0
    %2277 = vmatpush1.bf16.msra.mxu0 %v2125
    %2278 = vmatprep.subr.bf16.mxu0 0
    %2279 = vmatpush1.bf16.msra.mxu0 %v2124
    %2280 = vmatprep.subr.bf16.mxu0 0
    %2281 = vmatpush1.bf16.msra.mxu0 %v2123
    %2282 = vmatprep.subr.bf16.mxu0 0
    %2283 = vmatpush1.bf16.msra.mxu0 %v2122
    %2284 = vmatprep.subr.bf16.mxu0 0
    %2285 = vmatpush1.bf16.msra.mxu0 %v2121
    %2286 = vmatprep.subr.bf16.mxu0 0
    %2287 = vmatpush2.bf16.msra.mxu0 %v2136
    %2288 = vmatprep.subr.bf16.mxu0 0
    %2289 = vmatpush2.bf16.msra.mxu0 %v2135
    %2290 = vmatprep.subr.bf16.mxu0 0
    %2291 = vmatpush2.bf16.msra.mxu0 %v2134
    %2292 = vmatprep.subr.bf16.mxu0 0
    %2293 = vmatpush2.bf16.msra.mxu0 %v2133
    %2294 = vmatprep.subr.bf16.mxu0 0
    %2295 = vmatpush2.bf16.msra.mxu0 %v2132
    %2296 = vmatprep.subr.bf16.mxu0 0
    %2297 = vmatpush2.bf16.msra.mxu0 %v2131
    %2298 = vmatprep.subr.bf16.mxu0 0
    %2299 = vmatpush2.bf16.msra.mxu0 %v2130
    %2300 = vmatprep.subr.bf16.mxu0 0
    %2301 = vmatpush2.bf16.msra.mxu0 %v2129
    %2302 = vmatprep.mubr.bf16.mxu0 %v1792
    %2303 = vmatmul.mubr.bf16.gmra.mxu0 %v1791
    %v2304 = vpop.f32.mrf.mxu0
    %v2305 = vadd.f32 %v2265, %v2304
    %v2306 = vpop.f32.mrf.mxu0
    %v2307 = vpop.f32.mrf.mxu0
    %v2308 = vpop.f32.mrf.mxu0
    %2309 = vdwg.mxu0
    %2310 = vmatprep.subr.bf16.mxu0 0
    %2311 = vmatpush1.bf16.msra.mxu0 0
    %2312 = vmatprep.subr.bf16.mxu0 0
    %2313 = vmatpush1.bf16.msra.mxu0 0
    %2314 = vmatprep.subr.bf16.mxu0 0
    %2315 = vmatpush1.bf16.msra.mxu0 0
    %2316 = vmatprep.subr.bf16.mxu0 0
    %2317 = vmatpush1.bf16.msra.mxu0 0
    %2318 = vmatprep.subr.bf16.mxu0 0
    %2319 = vmatpush1.bf16.msra.mxu0 0
    %2320 = vmatprep.subr.bf16.mxu0 0
    %2321 = vmatpush1.bf16.msra.mxu0 0
    %2322 = vmatprep.subr.bf16.mxu0 0
    %2323 = vmatpush1.bf16.msra.mxu0 0
    %2324 = vmatprep.subr.bf16.mxu0 0
    %2325 = vmatpush1.bf16.msra.mxu0 %v2137
    %2326 = vmatprep.subr.bf16.mxu0 0
    %2327 = vmatpush2.bf16.msra.mxu0 0
    %2328 = vmatprep.subr.bf16.mxu0 0
    %2329 = vmatpush2.bf16.msra.mxu0 0
    %2330 = vmatprep.subr.bf16.mxu0 0
    %2331 = vmatpush2.bf16.msra.mxu0 0
    %2332 = vmatprep.subr.bf16.mxu0 0
    %2333 = vmatpush2.bf16.msra.mxu0 0
    %2334 = vmatprep.subr.bf16.mxu0 0
    %2335 = vmatpush2.bf16.msra.mxu0 0
    %2336 = vmatprep.subr.bf16.mxu0 0
    %2337 = vmatpush2.bf16.msra.mxu0 0
    %2338 = vmatprep.subr.bf16.mxu0 0
    %2339 = vmatpush2.bf16.msra.mxu0 0
    %2340 = vmatprep.subr.bf16.mxu0 0
    %2341 = vmatpush2.bf16.msra.mxu0 0
    %2342 = vmatprep.mubr.bf16.mxu0 0
    %2343 = vmatmul.mubr.bf16.gmra.mxu0 %v2188
    %v2344 = vpop.f32.mrf.mxu0
    %v2345 = vadd.f32 %v2305, %v2344
    %v2346 = vpop.f32.mrf.mxu0
    %v2347 = vpop.f32.mrf.mxu0
    %v2348 = vpop.f32.mrf.mxu0
    %2349 = vdwg.mxu0
    %v2350 = vadd.f32 %v1680, %v2345
    %s2351 = sld [smem:[#allocation9 + $0x180]]
    %p2353 = scmp.ne.f32.partialorder %s2351, %s2351
    %s2354 = sshrl.u32 %s2351, 16
    %s2355 = sand.u32 %s2354, 1
    %s2356 = sadd.s32 32767, %s2355
    %s2357 = sadd.s32 %s2351, %s2356
    %s2358 = sand.u32 %s2357, 4294901760
    %s2359 = scalar_select %p2353, 2143289344, %s2358
    %s2361 = sshrl.u32 %s2359, 16
    %s2362 = sshll.u32 %s2361, 16
    %s2363 = sor.u32 %s2361, %s2362
    %v2364 = vstv %s2363
    %v2366 = vmul.bf16 %v2364, %v246
    %v2367 = vmul.bf16 %v2364, %v247
    %v2368 = vmul.bf16 %v2364, %v248
    %v2369 = vmul.bf16 %v2364, %v249
    %v2370 = vmul.bf16 %v2364, %v250
    %v2371 = vmul.bf16 %v2364, %v251
    %v2372 = vmul.bf16 %v2364, %v252
    %s2373 = sld [smem:[#allocation9 + $0x181]]
    %p2375 = scmp.ne.f32.partialorder %s2373, %s2373
    %s2376 = sshrl.u32 %s2373, 16
    %s2377 = sand.u32 %s2376, 1
    %s2378 = sadd.s32 32767, %s2377
    %s2379 = sadd.s32 %s2373, %s2378
    %s2380 = sand.u32 %s2379, 4294901760
    %s2381 = scalar_select %p2375, 2143289344, %s2380
    %s2383 = sshrl.u32 %s2381, 16
    %s2384 = sshll.u32 %s2383, 16
    %s2385 = sor.u32 %s2383, %s2384
    %v2386 = vstv %s2385
    %v2388 = vmul.bf16 %v2386, %v297
    %v2389 = vmul.bf16 %v2386, %v298
    %v2390 = vmul.bf16 %v2386, %v299
    %v2391 = vmul.bf16 %v2386, %v300
    %v2392 = vmul.bf16 %v2386, %v301
    %v2393 = vmul.bf16 %v2386, %v302
    %v2394 = vmul.bf16 %v2386, %v303
    %v2395 = vadd.bf16 %v2366, %v2388
    %v2396 = vadd.bf16 %v2367, %v2389
    %v2397 = vadd.bf16 %v2368, %v2390
    %v2398 = vadd.bf16 %v2369, %v2391
    %v2399 = vadd.bf16 %v2370, %v2392
    %v2400 = vadd.bf16 %v2371, %v2393
    %v2401 = vadd.bf16 %v2372, %v2394
    %s2402 = sld [smem:[#allocation9 + $0x182]]
    %p2404 = scmp.ne.f32.partialorder %s2402, %s2402
    %s2405 = sshrl.u32 %s2402, 16
    %s2406 = sand.u32 %s2405, 1
    %s2407 = sadd.s32 32767, %s2406
    %s2408 = sadd.s32 %s2402, %s2407
    %s2409 = sand.u32 %s2408, 4294901760
    %s2410 = scalar_select %p2404, 2143289344, %s2409
    %s2412 = sshrl.u32 %s2410, 16
    %s2413 = sshll.u32 %s2412, 16
    %s2414 = sor.u32 %s2412, %s2413
    %v2415 = vstv %s2414
    %v2417 = vmul.bf16 %v2415, %v348
    %v2418 = vmul.bf16 %v2415, %v349
    %v2419 = vmul.bf16 %v2415, %v350
    %v2420 = vmul.bf16 %v2415, %v351
    %v2421 = vmul.bf16 %v2415, %v352
    %v2422 = vmul.bf16 %v2415, %v353
    %v2423 = vmul.bf16 %v2415, %v354
    %v2424 = vadd.bf16 %v2395, %v2417
    %v2425 = vadd.bf16 %v2396, %v2418
    %v2426 = vadd.bf16 %v2397, %v2419
    %v2427 = vadd.bf16 %v2398, %v2420
    %v2428 = vadd.bf16 %v2399, %v2421
    %v2429 = vadd.bf16 %v2400, %v2422
    %v2430 = vadd.bf16 %v2401, %v2423
    %s2431 = sld [smem:[#allocation10 + $0x3]]
    %p2433 = scmp.ne.f32.partialorder %s2431, %s2431
    %s2434 = sshrl.u32 %s2431, 16
    %s2435 = sand.u32 %s2434, 1
    %s2436 = sadd.s32 32767, %s2435
    %s2437 = sadd.s32 %s2431, %s2436
    %s2438 = sand.u32 %s2437, 4294901760
    %s2439 = scalar_select %p2433, 2143289344, %s2438
    %s2441 = sshrl.u32 %s2439, 16
    %s2442 = sshll.u32 %s2441, 16
    %s2443 = sor.u32 %s2441, %s2442
    %v2444 = vstv %s2443
    %v2446 = vadd.bf16 %v2424, %v2444
    %v2447 = vadd.bf16 %v2425, %v2444
    %v2448 = vadd.bf16 %v2426, %v2444
    %v2449 = vadd.bf16 %v2427, %v2444
    %v2450 = vadd.bf16 %v2428, %v2444
    %v2451 = vadd.bf16 %v2429, %v2444
    %v2452 = vadd.bf16 %v2430, %v2444
    %v2453 = vmax.bf16 %v2446, 0
    %v2454 = vmax.bf16 %v2447, 0
    %v2455 = vmax.bf16 %v2448, 0
    %v2456 = vmax.bf16 %v2449, 0
    %v2457 = vmax.bf16 %v2450, 0
    %v2458 = vmax.bf16 %v2451, 0
    %v2459 = vmax.bf16 %v2452, 0
    %s2460 = scalar_lea.vmem [#allocation12], 1176
    %v2461 = vld [vmem:[%s2460] sm:$0xf]
    %v2462 = vld [vmem:[%s2460 + $0x4] sm:$0xf]
    %v2463 = vld [vmem:[%s2460 + $0x8] sm:$0xf]
    %v2464 = vld [vmem:[%s2460 + $0xc] sm:$0xf]
    %v2465 = vld [vmem:[%s2460 + $0x10] sm:$0xf]
    %v2466 = vld [vmem:[%s2460 + $0x14] sm:$0xf]
    %v2467 = vld [vmem:[%s2460 + $0x18] sm:$0xf]
    %v2468 = vld [vmem:[%s2460 + $0x1c] sm:$0xf]
    %v2469 = vld [vmem:[%s2460 + $0x20] sm:$0xf]
    %v2470 = vld [vmem:[%s2460 + $0x24] sm:$0xf]
    %v2471 = vld [vmem:[%s2460 + $0x28] sm:$0xf]
    %v2472 = vld [vmem:[%s2460 + $0x2c] sm:$0xf]
    %v2473 = vld [vmem:[%s2460 + $0x30] sm:$0xf]
    %v2474 = vld [vmem:[%s2460 + $0x34] sm:$0xf]
    %v2475 = vld [vmem:[%s2460 + $0x38] sm:$0xf]
    %v2476 = vld [vmem:[%s2460 + $0x3c] sm:$0xf]
    %v2477 = vld [vmem:[%s2460 + $0x40] sm:$0xf]
    %v2478 = vld [vmem:[%s2460 + $0x44] sm:$0xf]
    %v2479 = vld [vmem:[%s2460 + $0x48] sm:$0xf]
    %v2480 = vld [vmem:[%s2460 + $0x4c] sm:$0xf]
    %v2481 = vld [vmem:[%s2460 + $0x50] sm:$0xf]
    %v2482 = vld [vmem:[%s2460 + $0x54] sm:$0xf]
    %v2483 = vld [vmem:[%s2460 + $0x58] sm:$0xf]
    %v2484 = vld [vmem:[%s2460 + $0x5c] sm:$0xf]
    %v2485 = vld [vmem:[%s2460 + $0x60] sm:$0xf]
    %v2486 = vld [vmem:[%s2460 + $0x64] sm:$0xf]
    %v2487 = vld [vmem:[%s2460 + $0x68] sm:$0xf]
    %v2488 = vld [vmem:[%s2460 + $0x6c] sm:$0xf]
    %v2489 = vld [vmem:[%s2460 + $0x70] sm:$0xf]
    %v2490 = vld [vmem:[%s2460 + $0x74] sm:$0xf]
    %v2491 = vld [vmem:[%s2460 + $0x78] sm:$0xf]
    %v2492 = vld [vmem:[%s2460 + $0x7c] sm:$0xf]
    %v2493 = vld [vmem:[%s2460 + $0x80] sm:$0xf]
    %v2494 = vld [vmem:[%s2460 + $0x84] sm:$0xf]
    %v2495 = vld [vmem:[%s2460 + $0x88] sm:$0xf]
    %v2496 = vld [vmem:[%s2460 + $0x8c] sm:$0xf]
    %v2497 = vld [vmem:[%s2460 + $0x90] sm:$0xf]
    %v2498 = vld [vmem:[%s2460 + $0x94] sm:$0xf]
    %v2499 = vld [vmem:[%s2460 + $0x98] sm:$0xf]
    %v2500 = vld [vmem:[%s2460 + $0x9c] sm:$0xf]
    %v2501 = vld [vmem:[%s2460 + $0xa0] sm:$0xf]
    %v2502 = vld [vmem:[%s2460 + $0xa4] sm:$0xf]
    %v2503 = vld [vmem:[%s2460 + $0xa8] sm:$0xf]
    %v2504 = vld [vmem:[%s2460 + $0xac] sm:$0xf]
    %v2505 = vld [vmem:[%s2460 + $0xb0] sm:$0xf]
    %v2506 = vld [vmem:[%s2460 + $0xb4] sm:$0xf]
    %v2507 = vld [vmem:[%s2460 + $0xb8] sm:$0xf]
    %v2508 = vld [vmem:[%s2460 + $0xbc] sm:$0xf]
    %v2509 = vld [vmem:[%s2460 + $0xc0] sm:$0xf]
    %v2510 = vld [vmem:[%s2460 + $0xc4] sm:$0xf]
    %v2511 = vld [vmem:[%s2460 + $0xc8] sm:$0xf]
    %v2512 = vld [vmem:[%s2460 + $0xcc] sm:$0xf]
    %v2513 = vld [vmem:[%s2460 + $0xd0] sm:$0xf]
    %v2514 = vld [vmem:[%s2460 + $0xd4] sm:$0xf]
    %v2515 = vld [vmem:[%s2460 + $0xd8] sm:$0xf]
    %v2516 = vld [vmem:[%s2460 + $0xdc] sm:$0xf]
    %v2517 = vld [vmem:[%s2460 + $0xe0] sm:$0xf]
    %v2518 = vld [vmem:[%s2460 + $0xe4] sm:$0xf]
    %v2519 = vld [vmem:[%s2460 + $0xe8] sm:$0xf]
    %v2520 = vld [vmem:[%s2460 + $0xec] sm:$0xf]
    %v2521 = vld [vmem:[%s2460 + $0xf0] sm:$0xf]
    %v2522 = vld [vmem:[%s2460 + $0xf4] sm:$0xf]
    %v2523 = vld [vmem:[%s2460 + $0xf8] sm:$0xf]
    %v2524 = vld [vmem:[%s2460 + $0xfc] sm:$0xf]
    %v2525 = vld [vmem:[%s2460 + $0x100] sm:$0xf]
    %v2526 = vld [vmem:[%s2460 + $0x104] sm:$0xf]
    %v2527 = vld [vmem:[%s2460 + $0x108] sm:$0xf]
    %v2528 = vld [vmem:[%s2460 + $0x10c] sm:$0xf]
    %v2529 = vld [vmem:[%s2460 + $0x110] sm:$0xf]
    %v2530 = vld [vmem:[%s2460 + $0x114] sm:$0xf]
    %v2531 = vld [vmem:[%s2460 + $0x118] sm:$0xf]
    %v2532 = vld [vmem:[%s2460 + $0x11c] sm:$0xf]
    %v2533 = vld [vmem:[%s2460 + $0x120] sm:$0xf]
    %v2534 = vld [vmem:[%s2460 + $0x124] sm:$0xf]
    %v2535 = vld [vmem:[%s2460 + $0x128] sm:$0xf]
    %v2536 = vld [vmem:[%s2460 + $0x12c] sm:$0xf]
    %v2537 = vld [vmem:[%s2460 + $0x130] sm:$0xf]
    %v2538 = vld [vmem:[%s2460 + $0x134] sm:$0xf]
    %v2539 = vld [vmem:[%s2460 + $0x138] sm:$0xf]
    %v2540 = vld [vmem:[%s2460 + $0x13c] sm:$0xf]
    %v2541 = vld [vmem:[%s2460 + $0x140] sm:$0xf]
    %v2542 = vld [vmem:[%s2460 + $0x144] sm:$0xf]
    %v2543 = vld [vmem:[%s2460 + $0x148] sm:$0xf]
    %v2544 = vld [vmem:[%s2460 + $0x14c] sm:$0xf]
    %v2545 = vld [vmem:[%s2460 + $0x150] sm:$0xf]
    %v2546 = vld [vmem:[%s2460 + $0x154] sm:$0xf]
    %v2547 = vld [vmem:[%s2460 + $0x158] sm:$0xf]
    %v2548 = vld [vmem:[%s2460 + $0x15c] sm:$0xf]
    %v2549 = vld [vmem:[%s2460 + $0x160] sm:$0xf]
    %v2550 = vld [vmem:[%s2460 + $0x164] sm:$0xf]
    %v2551 = vld [vmem:[%s2460 + $0x168] sm:$0xf]
    %v2552 = vld [vmem:[%s2460 + $0x16c] sm:$0xf]
    %v2553 = vld [vmem:[%s2460 + $0x170] sm:$0xf]
    %v2554 = vld [vmem:[%s2460 + $0x174] sm:$0xf]
    %v2555 = vld [vmem:[%s2460 + $0x178] sm:$0xf]
    %v2556 = vld [vmem:[%s2460 + $0x17c] sm:$0xf]
    %v2557 = vld [vmem:[%s2460 + $0x180] sm:$0xf]
    %v2558 = vld [vmem:[%s2460 + $0x184] sm:$0xf]
    %v2657 = vunpack.c.l.b16 %v2461
    %v2658 = vunpack.c.l.b16 %v2462
    %v2659 = vunpack.c.l.b16 %v2463
    %v2660 = vunpack.c.l.b16 %v2464
    %v2661 = vunpack.c.l.b16 %v2465
    %v2662 = vunpack.c.l.b16 %v2466
    %v2663 = vunpack.c.l.b16 %v2467
    %v2664 = vunpack.c.l.b16 %v2468
    %v2665 = vunpack.c.l.b16 %v2469
    %v2666 = vunpack.c.l.b16 %v2470
    %v2667 = vunpack.c.l.b16 %v2471
    %v2668 = vunpack.c.l.b16 %v2472
    %v2669 = vunpack.c.l.b16 %v2473
    %v2670 = vunpack.c.l.b16 %v2474
    %v2671 = vunpack.c.l.b16 %v2475
    %v2672 = vunpack.c.l.b16 %v2476
    %v2673 = vunpack.c.l.b16 %v2477
    %v2674 = vunpack.c.l.b16 %v2478
    %v2675 = vunpack.c.l.b16 %v2479
    %v2676 = vunpack.c.l.b16 %v2480
    %v2677 = vunpack.c.l.b16 %v2481
    %v2678 = vunpack.c.l.b16 %v2482
    %v2679 = vunpack.c.l.b16 %v2483
    %v2680 = vunpack.c.l.b16 %v2484
    %v2681 = vunpack.c.l.b16 %v2485
    %v2682 = vunpack.c.l.b16 %v2486
    %v2683 = vunpack.c.l.b16 %v2487
    %v2684 = vunpack.c.l.b16 %v2488
    %v2685 = vunpack.c.l.b16 %v2489
    %v2686 = vunpack.c.l.b16 %v2490
    %v2687 = vunpack.c.l.b16 %v2491
    %v2688 = vunpack.c.l.b16 %v2492
    %v2689 = vunpack.c.l.b16 %v2493
    %v2690 = vunpack.c.l.b16 %v2494
    %v2691 = vunpack.c.l.b16 %v2495
    %v2692 = vunpack.c.l.b16 %v2496
    %v2693 = vunpack.c.l.b16 %v2497
    %v2694 = vunpack.c.l.b16 %v2498
    %v2695 = vunpack.c.l.b16 %v2499
    %v2696 = vunpack.c.l.b16 %v2500
    %v2697 = vunpack.c.l.b16 %v2501
    %v2698 = vunpack.c.l.b16 %v2502
    %v2699 = vunpack.c.l.b16 %v2503
    %v2700 = vunpack.c.l.b16 %v2504
    %v2701 = vunpack.c.l.b16 %v2505
    %v2702 = vunpack.c.l.b16 %v2506
    %v2703 = vunpack.c.l.b16 %v2507
    %v2704 = vunpack.c.l.b16 %v2508
    %v2705 = vunpack.c.l.b16 %v2509
    %v2706 = vunpack.c.l.b16 %v2510
    %v2707 = vunpack.c.l.b16 %v2511
    %v2708 = vunpack.c.l.b16 %v2512
    %v2709 = vunpack.c.l.b16 %v2513
    %v2710 = vunpack.c.l.b16 %v2514
    %v2711 = vunpack.c.l.b16 %v2515
    %v2712 = vunpack.c.l.b16 %v2516
    %v2713 = vunpack.c.l.b16 %v2517
    %v2714 = vunpack.c.l.b16 %v2518
    %v2715 = vunpack.c.l.b16 %v2519
    %v2716 = vunpack.c.l.b16 %v2520
    %v2717 = vunpack.c.l.b16 %v2521
    %v2718 = vunpack.c.l.b16 %v2522
    %v2719 = vunpack.c.l.b16 %v2523
    %v2720 = vunpack.c.l.b16 %v2524
    %v2721 = vunpack.c.l.b16 %v2525
    %v2722 = vunpack.c.l.b16 %v2526
    %v2723 = vunpack.c.l.b16 %v2527
    %v2724 = vunpack.c.l.b16 %v2528
    %v2725 = vunpack.c.l.b16 %v2529
    %v2726 = vunpack.c.l.b16 %v2530
    %v2727 = vunpack.c.l.b16 %v2531
    %v2728 = vunpack.c.l.b16 %v2532
    %v2729 = vunpack.c.l.b16 %v2533
    %v2730 = vunpack.c.l.b16 %v2534
    %v2731 = vunpack.c.l.b16 %v2535
    %v2732 = vunpack.c.l.b16 %v2536
    %v2733 = vunpack.c.l.b16 %v2537
    %v2734 = vunpack.c.l.b16 %v2538
    %v2735 = vunpack.c.l.b16 %v2539
    %v2736 = vunpack.c.l.b16 %v2540
    %v2737 = vunpack.c.l.b16 %v2541
    %v2738 = vunpack.c.l.b16 %v2542
    %v2739 = vunpack.c.l.b16 %v2543
    %v2740 = vunpack.c.l.b16 %v2544
    %v2741 = vunpack.c.l.b16 %v2545
    %v2742 = vunpack.c.l.b16 %v2546
    %v2743 = vunpack.c.l.b16 %v2547
    %v2744 = vunpack.c.l.b16 %v2548
    %v2745 = vunpack.c.l.b16 %v2549
    %v2746 = vunpack.c.l.b16 %v2550
    %v2747 = vunpack.c.l.b16 %v2551
    %v2748 = vunpack.c.l.b16 %v2552
    %v2749 = vunpack.c.l.b16 %v2553
    %v2750 = vunpack.c.l.b16 %v2554
    %v2751 = vunpack.c.l.b16 %v2555
    %v2752 = vunpack.c.l.b16 %v2556
    %v2753 = vunpack.c.l.b16 %v2557
    %v2754 = vunpack.c.l.b16 %v2558
    %v2755 = vpack.c.b16 %v2658, %v2657
    %v2756 = vpack.c.b16 %v2660, %v2659
    %v2757 = vpack.c.b16 %v2662, %v2661
    %v2758 = vpack.c.b16 %v2664, %v2663
    %v2759 = vpack.c.b16 %v2666, %v2665
    %v2760 = vpack.c.b16 %v2668, %v2667
    %v2761 = vpack.c.b16 %v2670, %v2669
    %v2762 = vpack.c.b16 %v2672, %v2671
    %v2763 = vpack.c.b16 %v2674, %v2673
    %v2764 = vpack.c.b16 %v2676, %v2675
    %v2765 = vpack.c.b16 %v2678, %v2677
    %v2766 = vpack.c.b16 %v2680, %v2679
    %v2767 = vpack.c.b16 %v2682, %v2681
    %v2768 = vpack.c.b16 %v2684, %v2683
    %v2769 = vpack.c.b16 %v2686, %v2685
    %v2770 = vpack.c.b16 %v2688, %v2687
    %v2771 = vpack.c.b16 %v2690, %v2689
    %v2772 = vpack.c.b16 %v2692, %v2691
    %v2773 = vpack.c.b16 %v2694, %v2693
    %v2774 = vpack.c.b16 %v2696, %v2695
    %v2775 = vpack.c.b16 %v2698, %v2697
    %v2776 = vpack.c.b16 %v2700, %v2699
    %v2777 = vpack.c.b16 %v2702, %v2701
    %v2778 = vpack.c.b16 %v2704, %v2703
    %v2779 = vpack.c.b16 %v2706, %v2705
    %v2780 = vpack.c.b16 %v2708, %v2707
    %v2781 = vpack.c.b16 %v2710, %v2709
    %v2782 = vpack.c.b16 %v2712, %v2711
    %v2783 = vpack.c.b16 %v2714, %v2713
    %v2784 = vpack.c.b16 %v2716, %v2715
    %v2785 = vpack.c.b16 %v2718, %v2717
    %v2786 = vpack.c.b16 %v2720, %v2719
    %v2787 = vpack.c.b16 %v2722, %v2721
    %v2788 = vpack.c.b16 %v2724, %v2723
    %v2789 = vpack.c.b16 %v2726, %v2725
    %v2790 = vpack.c.b16 %v2728, %v2727
    %v2791 = vpack.c.b16 %v2730, %v2729
    %v2792 = vpack.c.b16 %v2732, %v2731
    %v2793 = vpack.c.b16 %v2734, %v2733
    %v2794 = vpack.c.b16 %v2736, %v2735
    %v2795 = vpack.c.b16 %v2738, %v2737
    %v2796 = vpack.c.b16 %v2740, %v2739
    %v2797 = vpack.c.b16 %v2742, %v2741
    %v2798 = vpack.c.b16 %v2744, %v2743
    %v2799 = vpack.c.b16 %v2746, %v2745
    %v2800 = vpack.c.b16 %v2748, %v2747
    %v2801 = vpack.c.b16 %v2750, %v2749
    %v2802 = vpack.c.b16 %v2752, %v2751
    %v2803 = vpack.c.b16 %v2754, %v2753
    %v2854 = vsel %vm1064, %v2459, 0
    %2856 = vmatprep.subr.bf16.mxu0 0
    %2857 = vmatpush1.bf16.msra.mxu0 %v2762
    %2858 = vmatprep.subr.bf16.mxu0 0
    %2859 = vmatpush1.bf16.msra.mxu0 %v2761
    %2860 = vmatprep.subr.bf16.mxu0 0
    %2861 = vmatpush1.bf16.msra.mxu0 %v2760
    %2862 = vmatprep.subr.bf16.mxu0 0
    %2863 = vmatpush1.bf16.msra.mxu0 %v2759
    %2864 = vmatprep.subr.bf16.mxu0 0
    %2865 = vmatpush1.bf16.msra.mxu0 %v2758
    %2866 = vmatprep.subr.bf16.mxu0 0
    %2867 = vmatpush1.bf16.msra.mxu0 %v2757
    %2868 = vmatprep.subr.bf16.mxu0 0
    %2869 = vmatpush1.bf16.msra.mxu0 %v2756
    %2870 = vmatprep.subr.bf16.mxu0 0
    %2871 = vmatpush1.bf16.msra.mxu0 %v2755
    %2872 = vmatprep.subr.bf16.mxu0 0
    %2873 = vmatpush2.bf16.msra.mxu0 %v2770
    %2874 = vmatprep.subr.bf16.mxu0 0
    %2875 = vmatpush2.bf16.msra.mxu0 %v2769
    %2876 = vmatprep.subr.bf16.mxu0 0
    %2877 = vmatpush2.bf16.msra.mxu0 %v2768
    %2878 = vmatprep.subr.bf16.mxu0 0
    %2879 = vmatpush2.bf16.msra.mxu0 %v2767
    %2880 = vmatprep.subr.bf16.mxu0 0
    %2881 = vmatpush2.bf16.msra.mxu0 %v2766
    %2882 = vmatprep.subr.bf16.mxu0 0
    %2883 = vmatpush2.bf16.msra.mxu0 %v2765
    %2884 = vmatprep.subr.bf16.mxu0 0
    %2885 = vmatpush2.bf16.msra.mxu0 %v2764
    %2886 = vmatprep.subr.bf16.mxu0 0
    %2887 = vmatpush2.bf16.msra.mxu0 %v2763
    %2888 = vmatprep.mubr.bf16.mxu0 %v2454
    %2889 = vmatmul.mubr.bf16.gmra.mxu0 %v2453
    %v2890 = vpop.f32.mrf.mxu0
    %v2891 = vadd.f32 0.0, %v2890
    %v2892 = vpop.f32.mrf.mxu0
    %v2893 = vpop.f32.mrf.mxu0
    %v2894 = vpop.f32.mrf.mxu0
    %2895 = vdwg.mxu0
    %2896 = vmatprep.subr.bf16.mxu0 0
    %2897 = vmatpush1.bf16.msra.mxu0 %v2778
    %2898 = vmatprep.subr.bf16.mxu0 0
    %2899 = vmatpush1.bf16.msra.mxu0 %v2777
    %2900 = vmatprep.subr.bf16.mxu0 0
    %2901 = vmatpush1.bf16.msra.mxu0 %v2776
    %2902 = vmatprep.subr.bf16.mxu0 0
    %2903 = vmatpush1.bf16.msra.mxu0 %v2775
    %2904 = vmatprep.subr.bf16.mxu0 0
    %2905 = vmatpush1.bf16.msra.mxu0 %v2774
    %2906 = vmatprep.subr.bf16.mxu0 0
    %2907 = vmatpush1.bf16.msra.mxu0 %v2773
    %2908 = vmatprep.subr.bf16.mxu0 0
    %2909 = vmatpush1.bf16.msra.mxu0 %v2772
    %2910 = vmatprep.subr.bf16.mxu0 0
    %2911 = vmatpush1.bf16.msra.mxu0 %v2771
    %2912 = vmatprep.subr.bf16.mxu0 0
    %2913 = vmatpush2.bf16.msra.mxu0 %v2786
    %2914 = vmatprep.subr.bf16.mxu0 0
    %2915 = vmatpush2.bf16.msra.mxu0 %v2785
    %2916 = vmatprep.subr.bf16.mxu0 0
    %2917 = vmatpush2.bf16.msra.mxu0 %v2784
    %2918 = vmatprep.subr.bf16.mxu0 0
    %2919 = vmatpush2.bf16.msra.mxu0 %v2783
    %2920 = vmatprep.subr.bf16.mxu0 0
    %2921 = vmatpush2.bf16.msra.mxu0 %v2782
    %2922 = vmatprep.subr.bf16.mxu0 0
    %2923 = vmatpush2.bf16.msra.mxu0 %v2781
    %2924 = vmatprep.subr.bf16.mxu0 0
    %2925 = vmatpush2.bf16.msra.mxu0 %v2780
    %2926 = vmatprep.subr.bf16.mxu0 0
    %2927 = vmatpush2.bf16.msra.mxu0 %v2779
    %2928 = vmatprep.mubr.bf16.mxu0 %v2456
    %2929 = vmatmul.mubr.bf16.gmra.mxu0 %v2455
    %v2930 = vpop.f32.mrf.mxu0
    %v2931 = vadd.f32 %v2891, %v2930
    %v2932 = vpop.f32.mrf.mxu0
    %v2933 = vpop.f32.mrf.mxu0
    %v2934 = vpop.f32.mrf.mxu0
    %2935 = vdwg.mxu0
    %2936 = vmatprep.subr.bf16.mxu0 0
    %2937 = vmatpush1.bf16.msra.mxu0 %v2794
    %2938 = vmatprep.subr.bf16.mxu0 0
    %2939 = vmatpush1.bf16.msra.mxu0 %v2793
    %2940 = vmatprep.subr.bf16.mxu0 0
    %2941 = vmatpush1.bf16.msra.mxu0 %v2792
    %2942 = vmatprep.subr.bf16.mxu0 0
    %2943 = vmatpush1.bf16.msra.mxu0 %v2791
    %2944 = vmatprep.subr.bf16.mxu0 0
    %2945 = vmatpush1.bf16.msra.mxu0 %v2790
    %2946 = vmatprep.subr.bf16.mxu0 0
    %2947 = vmatpush1.bf16.msra.mxu0 %v2789
    %2948 = vmatprep.subr.bf16.mxu0 0
    %2949 = vmatpush1.bf16.msra.mxu0 %v2788
    %2950 = vmatprep.subr.bf16.mxu0 0
    %2951 = vmatpush1.bf16.msra.mxu0 %v2787
    %2952 = vmatprep.subr.bf16.mxu0 0
    %2953 = vmatpush2.bf16.msra.mxu0 %v2802
    %2954 = vmatprep.subr.bf16.mxu0 0
    %2955 = vmatpush2.bf16.msra.mxu0 %v2801
    %2956 = vmatprep.subr.bf16.mxu0 0
    %2957 = vmatpush2.bf16.msra.mxu0 %v2800
    %2958 = vmatprep.subr.bf16.mxu0 0
    %2959 = vmatpush2.bf16.msra.mxu0 %v2799
    %2960 = vmatprep.subr.bf16.mxu0 0
    %2961 = vmatpush2.bf16.msra.mxu0 %v2798
    %2962 = vmatprep.subr.bf16.mxu0 0
    %2963 = vmatpush2.bf16.msra.mxu0 %v2797
    %2964 = vmatprep.subr.bf16.mxu0 0
    %2965 = vmatpush2.bf16.msra.mxu0 %v2796
    %2966 = vmatprep.subr.bf16.mxu0 0
    %2967 = vmatpush2.bf16.msra.mxu0 %v2795
    %2968 = vmatprep.mubr.bf16.mxu0 %v2458
    %2969 = vmatmul.mubr.bf16.gmra.mxu0 %v2457
    %v2970 = vpop.f32.mrf.mxu0
    %v2971 = vadd.f32 %v2931, %v2970
    %v2972 = vpop.f32.mrf.mxu0
    %v2973 = vpop.f32.mrf.mxu0
    %v2974 = vpop.f32.mrf.mxu0
    %2975 = vdwg.mxu0
    %2976 = vmatprep.subr.bf16.mxu0 0
    %2977 = vmatpush1.bf16.msra.mxu0 0
    %2978 = vmatprep.subr.bf16.mxu0 0
    %2979 = vmatpush1.bf16.msra.mxu0 0
    %2980 = vmatprep.subr.bf16.mxu0 0
    %2981 = vmatpush1.bf16.msra.mxu0 0
    %2982 = vmatprep.subr.bf16.mxu0 0
    %2983 = vmatpush1.bf16.msra.mxu0 0
    %2984 = vmatprep.subr.bf16.mxu0 0
    %2985 = vmatpush1.bf16.msra.mxu0 0
    %2986 = vmatprep.subr.bf16.mxu0 0
    %2987 = vmatpush1.bf16.msra.mxu0 0
    %2988 = vmatprep.subr.bf16.mxu0 0
    %2989 = vmatpush1.bf16.msra.mxu0 0
    %2990 = vmatprep.subr.bf16.mxu0 0
    %2991 = vmatpush1.bf16.msra.mxu0 %v2803
    %2992 = vmatprep.subr.bf16.mxu0 0
    %2993 = vmatpush2.bf16.msra.mxu0 0
    %2994 = vmatprep.subr.bf16.mxu0 0
    %2995 = vmatpush2.bf16.msra.mxu0 0
    %2996 = vmatprep.subr.bf16.mxu0 0
    %2997 = vmatpush2.bf16.msra.mxu0 0
    %2998 = vmatprep.subr.bf16.mxu0 0
    %2999 = vmatpush2.bf16.msra.mxu0 0
    %3000 = vmatprep.subr.bf16.mxu0 0
    %3001 = vmatpush2.bf16.msra.mxu0 0
    %3002 = vmatprep.subr.bf16.mxu0 0
    %3003 = vmatpush2.bf16.msra.mxu0 0
    %3004 = vmatprep.subr.bf16.mxu0 0
    %3005 = vmatpush2.bf16.msra.mxu0 0
    %3006 = vmatprep.subr.bf16.mxu0 0
    %3007 = vmatpush2.bf16.msra.mxu0 0
    %3008 = vmatprep.mubr.bf16.mxu0 0
    %3009 = vmatmul.mubr.bf16.gmra.mxu0 %v2854
    %v3010 = vpop.f32.mrf.mxu0
    %v3011 = vadd.f32 %v2971, %v3010
    %v3012 = vpop.f32.mrf.mxu0
    %v3013 = vpop.f32.mrf.mxu0
    %v3014 = vpop.f32.mrf.mxu0
    %3015 = vdwg.mxu0
    %v3016 = vadd.f32 %v2350, %v3011
    %s3017 = sld [smem:[#allocation9 + $0x200]]
    %p3019 = scmp.ne.f32.partialorder %s3017, %s3017
    %s3020 = sshrl.u32 %s3017, 16
    %s3021 = sand.u32 %s3020, 1
    %s3022 = sadd.s32 32767, %s3021
    %s3023 = sadd.s32 %s3017, %s3022
    %s3024 = sand.u32 %s3023, 4294901760
    %s3025 = scalar_select %p3019, 2143289344, %s3024
    %s3027 = sshrl.u32 %s3025, 16
    %s3028 = sshll.u32 %s3027, 16
    %s3029 = sor.u32 %s3027, %s3028
    %v3030 = vstv %s3029
    %v3032 = vmul.bf16 %v3030, %v246
    %v3033 = vmul.bf16 %v3030, %v247
    %v3034 = vmul.bf16 %v3030, %v248
    %v3035 = vmul.bf16 %v3030, %v249
    %v3036 = vmul.bf16 %v3030, %v250
    %v3037 = vmul.bf16 %v3030, %v251
    %v3038 = vmul.bf16 %v3030, %v252
    %s3039 = sld [smem:[#allocation9 + $0x201]]
    %p3041 = scmp.ne.f32.partialorder %s3039, %s3039
    %s3042 = sshrl.u32 %s3039, 16
    %s3043 = sand.u32 %s3042, 1
    %s3044 = sadd.s32 32767, %s3043
    %s3045 = sadd.s32 %s3039, %s3044
    %s3046 = sand.u32 %s3045, 4294901760
    %s3047 = scalar_select %p3041, 2143289344, %s3046
    %s3049 = sshrl.u32 %s3047, 16
    %s3050 = sshll.u32 %s3049, 16
    %s3051 = sor.u32 %s3049, %s3050
    %v3052 = vstv %s3051
    %v3054 = vmul.bf16 %v3052, %v297
    %v3055 = vmul.bf16 %v3052, %v298
    %v3056 = vmul.bf16 %v3052, %v299
    %v3057 = vmul.bf16 %v3052, %v300
    %v3058 = vmul.bf16 %v3052, %v301
    %v3059 = vmul.bf16 %v3052, %v302
    %v3060 = vmul.bf16 %v3052, %v303
    %v3061 = vadd.bf16 %v3032, %v3054
    %v3062 = vadd.bf16 %v3033, %v3055
    %v3063 = vadd.bf16 %v3034, %v3056
    %v3064 = vadd.bf16 %v3035, %v3057
    %v3065 = vadd.bf16 %v3036, %v3058
    %v3066 = vadd.bf16 %v3037, %v3059
    %v3067 = vadd.bf16 %v3038, %v3060
    %s3068 = sld [smem:[#allocation9 + $0x202]]
    %p3070 = scmp.ne.f32.partialorder %s3068, %s3068
    %s3071 = sshrl.u32 %s3068, 16
    %s3072 = sand.u32 %s3071, 1
    %s3073 = sadd.s32 32767, %s3072
    %s3074 = sadd.s32 %s3068, %s3073
    %s3075 = sand.u32 %s3074, 4294901760
    %s3076 = scalar_select %p3070, 2143289344, %s3075
    %s3078 = sshrl.u32 %s3076, 16
    %s3079 = sshll.u32 %s3078, 16
    %s3080 = sor.u32 %s3078, %s3079
    %v3081 = vstv %s3080
    %v3083 = vmul.bf16 %v3081, %v348
    %v3084 = vmul.bf16 %v3081, %v349
    %v3085 = vmul.bf16 %v3081, %v350
    %v3086 = vmul.bf16 %v3081, %v351
    %v3087 = vmul.bf16 %v3081, %v352
    %v3088 = vmul.bf16 %v3081, %v353
    %v3089 = vmul.bf16 %v3081, %v354
    %v3090 = vadd.bf16 %v3061, %v3083
    %v3091 = vadd.bf16 %v3062, %v3084
    %v3092 = vadd.bf16 %v3063, %v3085
    %v3093 = vadd.bf16 %v3064, %v3086
    %v3094 = vadd.bf16 %v3065, %v3087
    %v3095 = vadd.bf16 %v3066, %v3088
    %v3096 = vadd.bf16 %v3067, %v3089
    %s3097 = sld [smem:[#allocation10 + $0x4]]
    %p3099 = scmp.ne.f32.partialorder %s3097, %s3097
    %s3100 = sshrl.u32 %s3097, 16
    %s3101 = sand.u32 %s3100, 1
    %s3102 = sadd.s32 32767, %s3101
    %s3103 = sadd.s32 %s3097, %s3102
    %s3104 = sand.u32 %s3103, 4294901760
    %s3105 = scalar_select %p3099, 2143289344, %s3104
    %s3107 = sshrl.u32 %s3105, 16
    %s3108 = sshll.u32 %s3107, 16
    %s3109 = sor.u32 %s3107, %s3108
    %v3110 = vstv %s3109
    %v3112 = vadd.bf16 %v3090, %v3110
    %v3113 = vadd.bf16 %v3091, %v3110
    %v3114 = vadd.bf16 %v3092, %v3110
    %v3115 = vadd.bf16 %v3093, %v3110
    %v3116 = vadd.bf16 %v3094, %v3110
    %v3117 = vadd.bf16 %v3095, %v3110
    %v3118 = vadd.bf16 %v3096, %v3110
    %v3119 = vmax.bf16 %v3112, 0
    %v3120 = vmax.bf16 %v3113, 0
    %v3121 = vmax.bf16 %v3114, 0
    %v3122 = vmax.bf16 %v3115, 0
    %v3123 = vmax.bf16 %v3116, 0
    %v3124 = vmax.bf16 %v3117, 0
    %v3125 = vmax.bf16 %v3118, 0
    %s3126 = scalar_lea.vmem [#allocation12], 1568
    %v3127 = vld [vmem:[%s3126] sm:$0xf]
    %v3128 = vld [vmem:[%s3126 + $0x4] sm:$0xf]
    %v3129 = vld [vmem:[%s3126 + $0x8] sm:$0xf]
    %v3130 = vld [vmem:[%s3126 + $0xc] sm:$0xf]
    %v3131 = vld [vmem:[%s3126 + $0x10] sm:$0xf]
    %v3132 = vld [vmem:[%s3126 + $0x14] sm:$0xf]
    %v3133 = vld [vmem:[%s3126 + $0x18] sm:$0xf]
    %v3134 = vld [vmem:[%s3126 + $0x1c] sm:$0xf]
    %v3135 = vld [vmem:[%s3126 + $0x20] sm:$0xf]
    %v3136 = vld [vmem:[%s3126 + $0x24] sm:$0xf]
    %v3137 = vld [vmem:[%s3126 + $0x28] sm:$0xf]
    %v3138 = vld [vmem:[%s3126 + $0x2c] sm:$0xf]
    %v3139 = vld [vmem:[%s3126 + $0x30] sm:$0xf]
    %v3140 = vld [vmem:[%s3126 + $0x34] sm:$0xf]
    %v3141 = vld [vmem:[%s3126 + $0x38] sm:$0xf]
    %v3142 = vld [vmem:[%s3126 + $0x3c] sm:$0xf]
    %v3143 = vld [vmem:[%s3126 + $0x40] sm:$0xf]
    %v3144 = vld [vmem:[%s3126 + $0x44] sm:$0xf]
    %v3145 = vld [vmem:[%s3126 + $0x48] sm:$0xf]
    %v3146 = vld [vmem:[%s3126 + $0x4c] sm:$0xf]
    %v3147 = vld [vmem:[%s3126 + $0x50] sm:$0xf]
    %v3148 = vld [vmem:[%s3126 + $0x54] sm:$0xf]
    %v3149 = vld [vmem:[%s3126 + $0x58] sm:$0xf]
    %v3150 = vld [vmem:[%s3126 + $0x5c] sm:$0xf]
    %v3151 = vld [vmem:[%s3126 + $0x60] sm:$0xf]
    %v3152 = vld [vmem:[%s3126 + $0x64] sm:$0xf]
    %v3153 = vld [vmem:[%s3126 + $0x68] sm:$0xf]
    %v3154 = vld [vmem:[%s3126 + $0x6c] sm:$0xf]
    %v3155 = vld [vmem:[%s3126 + $0x70] sm:$0xf]
    %v3156 = vld [vmem:[%s3126 + $0x74] sm:$0xf]
    %v3157 = vld [vmem:[%s3126 + $0x78] sm:$0xf]
    %v3158 = vld [vmem:[%s3126 + $0x7c] sm:$0xf]
    %v3159 = vld [vmem:[%s3126 + $0x80] sm:$0xf]
    %v3160 = vld [vmem:[%s3126 + $0x84] sm:$0xf]
    %v3161 = vld [vmem:[%s3126 + $0x88] sm:$0xf]
    %v3162 = vld [vmem:[%s3126 + $0x8c] sm:$0xf]
    %v3163 = vld [vmem:[%s3126 + $0x90] sm:$0xf]
    %v3164 = vld [vmem:[%s3126 + $0x94] sm:$0xf]
    %v3165 = vld [vmem:[%s3126 + $0x98] sm:$0xf]
    %v3166 = vld [vmem:[%s3126 + $0x9c] sm:$0xf]
    %v3167 = vld [vmem:[%s3126 + $0xa0] sm:$0xf]
    %v3168 = vld [vmem:[%s3126 + $0xa4] sm:$0xf]
    %v3169 = vld [vmem:[%s3126 + $0xa8] sm:$0xf]
    %v3170 = vld [vmem:[%s3126 + $0xac] sm:$0xf]
    %v3171 = vld [vmem:[%s3126 + $0xb0] sm:$0xf]
    %v3172 = vld [vmem:[%s3126 + $0xb4] sm:$0xf]
    %v3173 = vld [vmem:[%s3126 + $0xb8] sm:$0xf]
    %v3174 = vld [vmem:[%s3126 + $0xbc] sm:$0xf]
    %v3175 = vld [vmem:[%s3126 + $0xc0] sm:$0xf]
    %v3176 = vld [vmem:[%s3126 + $0xc4] sm:$0xf]
    %v3177 = vld [vmem:[%s3126 + $0xc8] sm:$0xf]
    %v3178 = vld [vmem:[%s3126 + $0xcc] sm:$0xf]
    %v3179 = vld [vmem:[%s3126 + $0xd0] sm:$0xf]
    %v3180 = vld [vmem:[%s3126 + $0xd4] sm:$0xf]
    %v3181 = vld [vmem:[%s3126 + $0xd8] sm:$0xf]
    %v3182 = vld [vmem:[%s3126 + $0xdc] sm:$0xf]
    %v3183 = vld [vmem:[%s3126 + $0xe0] sm:$0xf]
    %v3184 = vld [vmem:[%s3126 + $0xe4] sm:$0xf]
    %v3185 = vld [vmem:[%s3126 + $0xe8] sm:$0xf]
    %v3186 = vld [vmem:[%s3126 + $0xec] sm:$0xf]
    %v3187 = vld [vmem:[%s3126 + $0xf0] sm:$0xf]
    %v3188 = vld [vmem:[%s3126 + $0xf4] sm:$0xf]
    %v3189 = vld [vmem:[%s3126 + $0xf8] sm:$0xf]
    %v3190 = vld [vmem:[%s3126 + $0xfc] sm:$0xf]
    %v3191 = vld [vmem:[%s3126 + $0x100] sm:$0xf]
    %v3192 = vld [vmem:[%s3126 + $0x104] sm:$0xf]
    %v3193 = vld [vmem:[%s3126 + $0x108] sm:$0xf]
    %v3194 = vld [vmem:[%s3126 + $0x10c] sm:$0xf]
    %v3195 = vld [vmem:[%s3126 + $0x110] sm:$0xf]
    %v3196 = vld [vmem:[%s3126 + $0x114] sm:$0xf]
    %v3197 = vld [vmem:[%s3126 + $0x118] sm:$0xf]
    %v3198 = vld [vmem:[%s3126 + $0x11c] sm:$0xf]
    %v3199 = vld [vmem:[%s3126 + $0x120] sm:$0xf]
    %v3200 = vld [vmem:[%s3126 + $0x124] sm:$0xf]
    %v3201 = vld [vmem:[%s3126 + $0x128] sm:$0xf]
    %v3202 = vld [vmem:[%s3126 + $0x12c] sm:$0xf]
    %v3203 = vld [vmem:[%s3126 + $0x130] sm:$0xf]
    %v3204 = vld [vmem:[%s3126 + $0x134] sm:$0xf]
    %v3205 = vld [vmem:[%s3126 + $0x138] sm:$0xf]
    %v3206 = vld [vmem:[%s3126 + $0x13c] sm:$0xf]
    %v3207 = vld [vmem:[%s3126 + $0x140] sm:$0xf]
    %v3208 = vld [vmem:[%s3126 + $0x144] sm:$0xf]
    %v3209 = vld [vmem:[%s3126 + $0x148] sm:$0xf]
    %v3210 = vld [vmem:[%s3126 + $0x14c] sm:$0xf]
    %v3211 = vld [vmem:[%s3126 + $0x150] sm:$0xf]
    %v3212 = vld [vmem:[%s3126 + $0x154] sm:$0xf]
    %v3213 = vld [vmem:[%s3126 + $0x158] sm:$0xf]
    %v3214 = vld [vmem:[%s3126 + $0x15c] sm:$0xf]
    %v3215 = vld [vmem:[%s3126 + $0x160] sm:$0xf]
    %v3216 = vld [vmem:[%s3126 + $0x164] sm:$0xf]
    %v3217 = vld [vmem:[%s3126 + $0x168] sm:$0xf]
    %v3218 = vld [vmem:[%s3126 + $0x16c] sm:$0xf]
    %v3219 = vld [vmem:[%s3126 + $0x170] sm:$0xf]
    %v3220 = vld [vmem:[%s3126 + $0x174] sm:$0xf]
    %v3221 = vld [vmem:[%s3126 + $0x178] sm:$0xf]
    %v3222 = vld [vmem:[%s3126 + $0x17c] sm:$0xf]
    %v3223 = vld [vmem:[%s3126 + $0x180] sm:$0xf]
    %v3224 = vld [vmem:[%s3126 + $0x184] sm:$0xf]
    %v3323 = vunpack.c.l.b16 %v3127
    %v3324 = vunpack.c.l.b16 %v3128
    %v3325 = vunpack.c.l.b16 %v3129
    %v3326 = vunpack.c.l.b16 %v3130
    %v3327 = vunpack.c.l.b16 %v3131
    %v3328 = vunpack.c.l.b16 %v3132
    %v3329 = vunpack.c.l.b16 %v3133
    %v3330 = vunpack.c.l.b16 %v3134
    %v3331 = vunpack.c.l.b16 %v3135
    %v3332 = vunpack.c.l.b16 %v3136
    %v3333 = vunpack.c.l.b16 %v3137
    %v3334 = vunpack.c.l.b16 %v3138
    %v3335 = vunpack.c.l.b16 %v3139
    %v3336 = vunpack.c.l.b16 %v3140
    %v3337 = vunpack.c.l.b16 %v3141
    %v3338 = vunpack.c.l.b16 %v3142
    %v3339 = vunpack.c.l.b16 %v3143
    %v3340 = vunpack.c.l.b16 %v3144
    %v3341 = vunpack.c.l.b16 %v3145
    %v3342 = vunpack.c.l.b16 %v3146
    %v3343 = vunpack.c.l.b16 %v3147
    %v3344 = vunpack.c.l.b16 %v3148
    %v3345 = vunpack.c.l.b16 %v3149
    %v3346 = vunpack.c.l.b16 %v3150
    %v3347 = vunpack.c.l.b16 %v3151
    %v3348 = vunpack.c.l.b16 %v3152
    %v3349 = vunpack.c.l.b16 %v3153
    %v3350 = vunpack.c.l.b16 %v3154
    %v3351 = vunpack.c.l.b16 %v3155
    %v3352 = vunpack.c.l.b16 %v3156
    %v3353 = vunpack.c.l.b16 %v3157
    %v3354 = vunpack.c.l.b16 %v3158
    %v3355 = vunpack.c.l.b16 %v3159
    %v3356 = vunpack.c.l.b16 %v3160
    %v3357 = vunpack.c.l.b16 %v3161
    %v3358 = vunpack.c.l.b16 %v3162
    %v3359 = vunpack.c.l.b16 %v3163
    %v3360 = vunpack.c.l.b16 %v3164
    %v3361 = vunpack.c.l.b16 %v3165
    %v3362 = vunpack.c.l.b16 %v3166
    %v3363 = vunpack.c.l.b16 %v3167
    %v3364 = vunpack.c.l.b16 %v3168
    %v3365 = vunpack.c.l.b16 %v3169
    %v3366 = vunpack.c.l.b16 %v3170
    %v3367 = vunpack.c.l.b16 %v3171
    %v3368 = vunpack.c.l.b16 %v3172
    %v3369 = vunpack.c.l.b16 %v3173
    %v3370 = vunpack.c.l.b16 %v3174
    %v3371 = vunpack.c.l.b16 %v3175
    %v3372 = vunpack.c.l.b16 %v3176
    %v3373 = vunpack.c.l.b16 %v3177
    %v3374 = vunpack.c.l.b16 %v3178
    %v3375 = vunpack.c.l.b16 %v3179
    %v3376 = vunpack.c.l.b16 %v3180
    %v3377 = vunpack.c.l.b16 %v3181
    %v3378 = vunpack.c.l.b16 %v3182
    %v3379 = vunpack.c.l.b16 %v3183
    %v3380 = vunpack.c.l.b16 %v3184
    %v3381 = vunpack.c.l.b16 %v3185
    %v3382 = vunpack.c.l.b16 %v3186
    %v3383 = vunpack.c.l.b16 %v3187
    %v3384 = vunpack.c.l.b16 %v3188
    %v3385 = vunpack.c.l.b16 %v3189
    %v3386 = vunpack.c.l.b16 %v3190
    %v3387 = vunpack.c.l.b16 %v3191
    %v3388 = vunpack.c.l.b16 %v3192
    %v3389 = vunpack.c.l.b16 %v3193
    %v3390 = vunpack.c.l.b16 %v3194
    %v3391 = vunpack.c.l.b16 %v3195
    %v3392 = vunpack.c.l.b16 %v3196
    %v3393 = vunpack.c.l.b16 %v3197
    %v3394 = vunpack.c.l.b16 %v3198
    %v3395 = vunpack.c.l.b16 %v3199
    %v3396 = vunpack.c.l.b16 %v3200
    %v3397 = vunpack.c.l.b16 %v3201
    %v3398 = vunpack.c.l.b16 %v3202
    %v3399 = vunpack.c.l.b16 %v3203
    %v3400 = vunpack.c.l.b16 %v3204
    %v3401 = vunpack.c.l.b16 %v3205
    %v3402 = vunpack.c.l.b16 %v3206
    %v3403 = vunpack.c.l.b16 %v3207
    %v3404 = vunpack.c.l.b16 %v3208
    %v3405 = vunpack.c.l.b16 %v3209
    %v3406 = vunpack.c.l.b16 %v3210
    %v3407 = vunpack.c.l.b16 %v3211
    %v3408 = vunpack.c.l.b16 %v3212
    %v3409 = vunpack.c.l.b16 %v3213
    %v3410 = vunpack.c.l.b16 %v3214
    %v3411 = vunpack.c.l.b16 %v3215
    %v3412 = vunpack.c.l.b16 %v3216
    %v3413 = vunpack.c.l.b16 %v3217
    %v3414 = vunpack.c.l.b16 %v3218
    %v3415 = vunpack.c.l.b16 %v3219
    %v3416 = vunpack.c.l.b16 %v3220
    %v3417 = vunpack.c.l.b16 %v3221
    %v3418 = vunpack.c.l.b16 %v3222
    %v3419 = vunpack.c.l.b16 %v3223
    %v3420 = vunpack.c.l.b16 %v3224
    %v3421 = vpack.c.b16 %v3324, %v3323
    %v3422 = vpack.c.b16 %v3326, %v3325
    %v3423 = vpack.c.b16 %v3328, %v3327
    %v3424 = vpack.c.b16 %v3330, %v3329
    %v3425 = vpack.c.b16 %v3332, %v3331
    %v3426 = vpack.c.b16 %v3334, %v3333
    %v3427 = vpack.c.b16 %v3336, %v3335
    %v3428 = vpack.c.b16 %v3338, %v3337
    %v3429 = vpack.c.b16 %v3340, %v3339
    %v3430 = vpack.c.b16 %v3342, %v3341
    %v3431 = vpack.c.b16 %v3344, %v3343
    %v3432 = vpack.c.b16 %v3346, %v3345
    %v3433 = vpack.c.b16 %v3348, %v3347
    %v3434 = vpack.c.b16 %v3350, %v3349
    %v3435 = vpack.c.b16 %v3352, %v3351
    %v3436 = vpack.c.b16 %v3354, %v3353
    %v3437 = vpack.c.b16 %v3356, %v3355
    %v3438 = vpack.c.b16 %v3358, %v3357
    %v3439 = vpack.c.b16 %v3360, %v3359
    %v3440 = vpack.c.b16 %v3362, %v3361
    %v3441 = vpack.c.b16 %v3364, %v3363
    %v3442 = vpack.c.b16 %v3366, %v3365
    %v3443 = vpack.c.b16 %v3368, %v3367
    %v3444 = vpack.c.b16 %v3370, %v3369
    %v3445 = vpack.c.b16 %v3372, %v3371
    %v3446 = vpack.c.b16 %v3374, %v3373
    %v3447 = vpack.c.b16 %v3376, %v3375
    %v3448 = vpack.c.b16 %v3378, %v3377
    %v3449 = vpack.c.b16 %v3380, %v3379
    %v3450 = vpack.c.b16 %v3382, %v3381
    %v3451 = vpack.c.b16 %v3384, %v3383
    %v3452 = vpack.c.b16 %v3386, %v3385
    %v3453 = vpack.c.b16 %v3388, %v3387
    %v3454 = vpack.c.b16 %v3390, %v3389
    %v3455 = vpack.c.b16 %v3392, %v3391
    %v3456 = vpack.c.b16 %v3394, %v3393
    %v3457 = vpack.c.b16 %v3396, %v3395
    %v3458 = vpack.c.b16 %v3398, %v3397
    %v3459 = vpack.c.b16 %v3400, %v3399
    %v3460 = vpack.c.b16 %v3402, %v3401
    %v3461 = vpack.c.b16 %v3404, %v3403
    %v3462 = vpack.c.b16 %v3406, %v3405
    %v3463 = vpack.c.b16 %v3408, %v3407
    %v3464 = vpack.c.b16 %v3410, %v3409
    %v3465 = vpack.c.b16 %v3412, %v3411
    %v3466 = vpack.c.b16 %v3414, %v3413
    %v3467 = vpack.c.b16 %v3416, %v3415
    %v3468 = vpack.c.b16 %v3418, %v3417
    %v3469 = vpack.c.b16 %v3420, %v3419
    %v3520 = vsel %vm1064, %v3125, 0
    %3522 = vmatprep.subr.bf16.mxu0 0
    %3523 = vmatpush1.bf16.msra.mxu0 %v3428
    %3524 = vmatprep.subr.bf16.mxu0 0
    %3525 = vmatpush1.bf16.msra.mxu0 %v3427
    %3526 = vmatprep.subr.bf16.mxu0 0
    %3527 = vmatpush1.bf16.msra.mxu0 %v3426
    %3528 = vmatprep.subr.bf16.mxu0 0
    %3529 = vmatpush1.bf16.msra.mxu0 %v3425
    %3530 = vmatprep.subr.bf16.mxu0 0
    %3531 = vmatpush1.bf16.msra.mxu0 %v3424
    %3532 = vmatprep.subr.bf16.mxu0 0
    %3533 = vmatpush1.bf16.msra.mxu0 %v3423
    %3534 = vmatprep.subr.bf16.mxu0 0
    %3535 = vmatpush1.bf16.msra.mxu0 %v3422
    %3536 = vmatprep.subr.bf16.mxu0 0
    %3537 = vmatpush1.bf16.msra.mxu0 %v3421
    %3538 = vmatprep.subr.bf16.mxu0 0
    %3539 = vmatpush2.bf16.msra.mxu0 %v3436
    %3540 = vmatprep.subr.bf16.mxu0 0
    %3541 = vmatpush2.bf16.msra.mxu0 %v3435
    %3542 = vmatprep.subr.bf16.mxu0 0
    %3543 = vmatpush2.bf16.msra.mxu0 %v3434
    %3544 = vmatprep.subr.bf16.mxu0 0
    %3545 = vmatpush2.bf16.msra.mxu0 %v3433
    %3546 = vmatprep.subr.bf16.mxu0 0
    %3547 = vmatpush2.bf16.msra.mxu0 %v3432
    %3548 = vmatprep.subr.bf16.mxu0 0
    %3549 = vmatpush2.bf16.msra.mxu0 %v3431
    %3550 = vmatprep.subr.bf16.mxu0 0
    %3551 = vmatpush2.bf16.msra.mxu0 %v3430
    %3552 = vmatprep.subr.bf16.mxu0 0
    %3553 = vmatpush2.bf16.msra.mxu0 %v3429
    %3554 = vmatprep.mubr.bf16.mxu0 %v3120
    %3555 = vmatmul.mubr.bf16.gmra.mxu0 %v3119
    %v3556 = vpop.f32.mrf.mxu0
    %v3557 = vadd.f32 0.0, %v3556
    %v3558 = vpop.f32.mrf.mxu0
    %v3559 = vpop.f32.mrf.mxu0
    %v3560 = vpop.f32.mrf.mxu0
    %3561 = vdwg.mxu0
    %3562 = vmatprep.subr.bf16.mxu0 0
    %3563 = vmatpush1.bf16.msra.mxu0 %v3444
    %3564 = vmatprep.subr.bf16.mxu0 0
    %3565 = vmatpush1.bf16.msra.mxu0 %v3443
    %3566 = vmatprep.subr.bf16.mxu0 0
    %3567 = vmatpush1.bf16.msra.mxu0 %v3442
    %3568 = vmatprep.subr.bf16.mxu0 0
    %3569 = vmatpush1.bf16.msra.mxu0 %v3441
    %3570 = vmatprep.subr.bf16.mxu0 0
    %3571 = vmatpush1.bf16.msra.mxu0 %v3440
    %3572 = vmatprep.subr.bf16.mxu0 0
    %3573 = vmatpush1.bf16.msra.mxu0 %v3439
    %3574 = vmatprep.subr.bf16.mxu0 0
    %3575 = vmatpush1.bf16.msra.mxu0 %v3438
    %3576 = vmatprep.subr.bf16.mxu0 0
    %3577 = vmatpush1.bf16.msra.mxu0 %v3437
    %3578 = vmatprep.subr.bf16.mxu0 0
    %3579 = vmatpush2.bf16.msra.mxu0 %v3452
    %3580 = vmatprep.subr.bf16.mxu0 0
    %3581 = vmatpush2.bf16.msra.mxu0 %v3451
    %3582 = vmatprep.subr.bf16.mxu0 0
    %3583 = vmatpush2.bf16.msra.mxu0 %v3450
    %3584 = vmatprep.subr.bf16.mxu0 0
    %3585 = vmatpush2.bf16.msra.mxu0 %v3449
    %3586 = vmatprep.subr.bf16.mxu0 0
    %3587 = vmatpush2.bf16.msra.mxu0 %v3448
    %3588 = vmatprep.subr.bf16.mxu0 0
    %3589 = vmatpush2.bf16.msra.mxu0 %v3447
    %3590 = vmatprep.subr.bf16.mxu0 0
    %3591 = vmatpush2.bf16.msra.mxu0 %v3446
    %3592 = vmatprep.subr.bf16.mxu0 0
    %3593 = vmatpush2.bf16.msra.mxu0 %v3445
    %3594 = vmatprep.mubr.bf16.mxu0 %v3122
    %3595 = vmatmul.mubr.bf16.gmra.mxu0 %v3121
    %v3596 = vpop.f32.mrf.mxu0
    %v3597 = vadd.f32 %v3557, %v3596
    %v3598 = vpop.f32.mrf.mxu0
    %v3599 = vpop.f32.mrf.mxu0
    %v3600 = vpop.f32.mrf.mxu0
    %3601 = vdwg.mxu0
    %3602 = vmatprep.subr.bf16.mxu0 0
    %3603 = vmatpush1.bf16.msra.mxu0 %v3460
    %3604 = vmatprep.subr.bf16.mxu0 0
    %3605 = vmatpush1.bf16.msra.mxu0 %v3459
    %3606 = vmatprep.subr.bf16.mxu0 0
    %3607 = vmatpush1.bf16.msra.mxu0 %v3458
    %3608 = vmatprep.subr.bf16.mxu0 0
    %3609 = vmatpush1.bf16.msra.mxu0 %v3457
    %3610 = vmatprep.subr.bf16.mxu0 0
    %3611 = vmatpush1.bf16.msra.mxu0 %v3456
    %3612 = vmatprep.subr.bf16.mxu0 0
    %3613 = vmatpush1.bf16.msra.mxu0 %v3455
    %3614 = vmatprep.subr.bf16.mxu0 0
    %3615 = vmatpush1.bf16.msra.mxu0 %v3454
    %3616 = vmatprep.subr.bf16.mxu0 0
    %3617 = vmatpush1.bf16.msra.mxu0 %v3453
    %3618 = vmatprep.subr.bf16.mxu0 0
    %3619 = vmatpush2.bf16.msra.mxu0 %v3468
    %3620 = vmatprep.subr.bf16.mxu0 0
    %3621 = vmatpush2.bf16.msra.mxu0 %v3467
    %3622 = vmatprep.subr.bf16.mxu0 0
    %3623 = vmatpush2.bf16.msra.mxu0 %v3466
    %3624 = vmatprep.subr.bf16.mxu0 0
    %3625 = vmatpush2.bf16.msra.mxu0 %v3465
    %3626 = vmatprep.subr.bf16.mxu0 0
    %3627 = vmatpush2.bf16.msra.mxu0 %v3464
    %3628 = vmatprep.subr.bf16.mxu0 0
    %3629 = vmatpush2.bf16.msra.mxu0 %v3463
    %3630 = vmatprep.subr.bf16.mxu0 0
    %3631 = vmatpush2.bf16.msra.mxu0 %v3462
    %3632 = vmatprep.subr.bf16.mxu0 0
    %3633 = vmatpush2.bf16.msra.mxu0 %v3461
    %3634 = vmatprep.mubr.bf16.mxu0 %v3124
    %3635 = vmatmul.mubr.bf16.gmra.mxu0 %v3123
    %v3636 = vpop.f32.mrf.mxu0
    %v3637 = vadd.f32 %v3597, %v3636
    %v3638 = vpop.f32.mrf.mxu0
    %v3639 = vpop.f32.mrf.mxu0
    %v3640 = vpop.f32.mrf.mxu0
    %3641 = vdwg.mxu0
    %3642 = vmatprep.subr.bf16.mxu0 0
    %3643 = vmatpush1.bf16.msra.mxu0 0
    %3644 = vmatprep.subr.bf16.mxu0 0
    %3645 = vmatpush1.bf16.msra.mxu0 0
    %3646 = vmatprep.subr.bf16.mxu0 0
    %3647 = vmatpush1.bf16.msra.mxu0 0
    %3648 = vmatprep.subr.bf16.mxu0 0
    %3649 = vmatpush1.bf16.msra.mxu0 0
    %3650 = vmatprep.subr.bf16.mxu0 0
    %3651 = vmatpush1.bf16.msra.mxu0 0
    %3652 = vmatprep.subr.bf16.mxu0 0
    %3653 = vmatpush1.bf16.msra.mxu0 0
    %3654 = vmatprep.subr.bf16.mxu0 0
    %3655 = vmatpush1.bf16.msra.mxu0 0
    %3656 = vmatprep.subr.bf16.mxu0 0
    %3657 = vmatpush1.bf16.msra.mxu0 %v3469
    %3658 = vmatprep.subr.bf16.mxu0 0
    %3659 = vmatpush2.bf16.msra.mxu0 0
    %3660 = vmatprep.subr.bf16.mxu0 0
    %3661 = vmatpush2.bf16.msra.mxu0 0
    %3662 = vmatprep.subr.bf16.mxu0 0
    %3663 = vmatpush2.bf16.msra.mxu0 0
    %3664 = vmatprep.subr.bf16.mxu0 0
    %3665 = vmatpush2.bf16.msra.mxu0 0
    %3666 = vmatprep.subr.bf16.mxu0 0
    %3667 = vmatpush2.bf16.msra.mxu0 0
    %3668 = vmatprep.subr.bf16.mxu0 0
    %3669 = vmatpush2.bf16.msra.mxu0 0
    %3670 = vmatprep.subr.bf16.mxu0 0
    %3671 = vmatpush2.bf16.msra.mxu0 0
    %3672 = vmatprep.subr.bf16.mxu0 0
    %3673 = vmatpush2.bf16.msra.mxu0 0
    %3674 = vmatprep.mubr.bf16.mxu0 0
    %3675 = vmatmul.mubr.bf16.gmra.mxu0 %v3520
    %v3676 = vpop.f32.mrf.mxu0
    %v3677 = vadd.f32 %v3637, %v3676
    %v3678 = vpop.f32.mrf.mxu0
    %v3679 = vpop.f32.mrf.mxu0
    %v3680 = vpop.f32.mrf.mxu0
    %3681 = vdwg.mxu0
    %v3682 = vadd.f32 %v3016, %v3677
    %v3683 = vmax.f32 %v3682, 0.0
    %3684 = vst [vmem:[#allocation14] sm:$0xff] %v3683
    // Predicated region
    $region50: #{tpu_custom_call.1} parent=1 // pred_check
      _
    $region51: #{tpu_custom_call.1} parent=1 // pred_check_branch
      %3686 = sbr.rel (0) target = $region53
    $region52: #{tpu_custom_call.1} parent=1 // pred_region
      %s3688 = ssub.s32 128, 32
      %3689 = vsyncadd [#allocation4], %s3688
      %s3690 = sshll.u32 [#allocation14], 4
      %s3691 = int_to_ptr.vmem [resolvable:$true] %s3690
      %3696 = dma.vmem_to_hbm [thread:$0]  %s3691, 32, %s6, [#allocation4], 32, 32, 2
    $region53: #{tpu_custom_call.1} parent=1 // pred_fallthru
      _
    // Predicated region
    $region54: #{tpu_custom_call.1} parent=1 // pred_check
      _
    $region55: #{tpu_custom_call.1} parent=1 // pred_check_branch
      %3698 = sbr.rel (0) target = $region57
    $region56: #{tpu_custom_call.1} parent=1 // pred_region
      %3699 = dma.done [#allocation4], 128
    $region57: #{tpu_custom_call.1} parent=1 // pred_fallthru
      _
    %3700 = vsyncpa [#allocation3], 1
    %3701 = vsyncpa [#allocation13], 1
    %3702 = vsyncpa [#allocation4], 1
    %3703 = vsyncpa [#allocation5], 1
    %3704 = vsyncpa [#allocation8], 1
    %3705 = vsyncpa [#allocation11], 1

</llo_original>
